<compile_context>
chip_gen: v7x
topology: tpu7x:2x2x1
jax: 0.10.0
libtpu: 0.0.40
codegen_flags: <defaults>
</compile_context>

<pallas_src>
import functools

import jax
import jax.numpy as jnp
from jax.experimental import pallas as pl
from jax.experimental.pallas import tpu as pltpu


def _round_up(x, m):
    return (x + m - 1) // m * m


def _pad_to(x, shape):
    pads = [(0, t - s) for s, t in zip(x.shape, shape)]
    return jnp.pad(x, pads)


def _is_v7x():
    try:
        return "v7" in jax.devices()[0].device_kind.lower()
    except Exception:
        return False


def _pick_chunk(t2, max_chunk=8):
    """Pick the LSTM time-chunk so padded serial steps + per-grid-step overhead is
    minimized (instead of a fixed chunk=8 that can add ~40% wasted steps)."""
    best_c, best_cost = 1, None
    for c in range(1, max_chunk + 1):
        tpad = _round_up(t2, c)
        cost = tpad + 2 * (tpad // c)   # ~2 LSTM-steps of overhead per grid step
        if best_cost is None or cost <= best_cost:
            best_c, best_cost = c, cost
    return best_c


# ---------------------------------------------------------------------------
# Kernel 1: image encoder  = Linear(D -> W) + ReLU    (rows tiled, parallel)
# ---------------------------------------------------------------------------
def _img_encoder_kernel(x_ref, w_ref, b_ref, o_ref):
    y = jnp.dot(x_ref[...], w_ref[...], preferred_element_type=jnp.float32)
    o_ref[...] = jnp.maximum(y + b_ref[...], 0.0).astype(o_ref.dtype)


def image_encoder(x_bf16, w_bf16, b_f32):
    N, D = x_bf16.shape
    Wp = w_bf16.shape[1]
    TM = 256 if N >= 256 else _round_up(N, 8)
    Np = _round_up(N, TM)
    if Np != N:
        x_bf16 = jnp.pad(x_bf16, ((0, Np - N), (0, 0)))
    out = pl.pallas_call(
        _img_encoder_kernel,
        out_shape=jax.ShapeDtypeStruct((Np, Wp), jnp.bfloat16),
        grid=(Np // TM,),
        in_specs=[
            pl.BlockSpec((TM, D), lambda i: (i, 0)),
            pl.BlockSpec((D, Wp), lambda i: (0, 0)),
            pl.BlockSpec((1, Wp), lambda i: (0, 0)),
        ],
        out_specs=pl.BlockSpec((TM, Wp), lambda i: (i, 0)),
        compiler_params=pltpu.CompilerParams(
            dimension_semantics=("parallel",)),
    )(x_bf16, w_bf16, b_f32)
    return out[:N]


# ---------------------------------------------------------------------------
# Kernel 2: hoisted input projection  gates_x = x @ W_ih + (b_ih + b_hh)
#           One fat batched matmul over all (T+2)*N rows; bf16 output.
# ---------------------------------------------------------------------------
def _proj_kernel(x_ref, w_ref, b_ref, o_ref):
    o_ref[...] = (jnp.dot(x_ref[...], w_ref[...],
                          preferred_element_type=jnp.float32)
                  + b_ref[...]).astype(o_ref.dtype)


def input_projection(x_flat_bf16, w_ih_bf16, b_f32, *, tm=512):
    M, Wp = x_flat_bf16.shape
    G = w_ih_bf16.shape[1]
    TM = tm if M >= tm else _round_up(M, 8)
    Mp = _round_up(M, TM)
    if Mp != M:
        x_flat_bf16 = jnp.pad(x_flat_bf16, ((0, Mp - M), (0, 0)))
    out = pl.pallas_call(
        _proj_kernel,
        # bf16 gates_x: halves the HBM write+read round trip between kernels 2 and 3.
        out_shape=jax.ShapeDtypeStruct((Mp, G), jnp.bfloat16),
        grid=(Mp // TM,),
        in_specs=[
            pl.BlockSpec((TM, Wp), lambda i: (i, 0)),
            pl.BlockSpec((Wp, G), lambda i: (0, 0)),
            pl.BlockSpec((1, G), lambda i: (0, 0)),
        ],
        out_specs=pl.BlockSpec((TM, G), lambda i: (i, 0)),
        compiler_params=pltpu.CompilerParams(
            dimension_semantics=("parallel",),
            vmem_limit_bytes=64 * 1024 * 1024),
    )(x_flat_bf16, w_ih_bf16, b_f32)
    return out[:M]


# ---------------------------------------------------------------------------
# Kernel 3: LSTM recurrence (PyTorch gate order i,f,g,o).  Only h @ W_hh runs
#           inside the serial loop; CHUNK time steps per grid iteration with
#           an unrolled fori_loop; h carry bf16, c carry f32 in VMEM scratch.
# ---------------------------------------------------------------------------
def _sigmoid_eup1(x):
    # sigmoid(x) == 0.5*tanh(0.5*x) + 0.5 : one EUP push instead of exp + reciprocal.
    return 0.5 * jnp.tanh(0.5 * x) + 0.5


def _lstm_recurrence_kernel(gx_ref, whh_ref, h_out_ref, h_sc, c_sc, *, hp, chunk):
    tc = pl.program_id(1)

    @pl.when(tc == 0)
    def _():
        h_sc[...] = jnp.zeros_like(h_sc)
        c_sc[...] = jnp.zeros_like(c_sc)

    def step(s, carry):
        h, c = carry                                  # h: bf16, c: f32
        gates = (jnp.dot(h, whh_ref[...], preferred_element_type=jnp.float32)
                 + gx_ref[s].astype(jnp.float32))
        i = _sigmoid_eup1(gates[:, 0 * hp:1 * hp])
        f = _sigmoid_eup1(gates[:, 1 * hp:2 * hp])
        g = jnp.tanh(gates[:, 2 * hp:3 * hp])
        o = _sigmoid_eup1(gates[:, 3 * hp:4 * hp])
        c = f * c + i * g
        h = (o * jnp.tanh(c)).astype(jnp.bfloat16)    # bf16 once; consumed as bf16 only
        h_out_ref[s] = h
        return (h, c)

    h_f, c_f = jax.lax.fori_loop(0, chunk, step, (h_sc[...], c_sc[...]),
                                 unroll=True)
    h_sc[...] = h_f
    c_sc[...] = c_f


def lstm_recurrence(gates_x, w_hh_bf16, hp, *, chunk, batch_blocks=1):
    Tpad, N, G = gates_x.shape
    assert Tpad % chunk == 0
    assert N % batch_blocks == 0
    NB = N // batch_blocks
    n_chunks = Tpad // chunk

    # Explicit VMEM budget (bf16 gates halve the dominant gx block vs f32).
    est = (2 * chunk * NB * G * 2        # gx double-buffered (bf16)
           + 2 * hp * G * 2              # w_hh (bf16)
           + 2 * chunk * NB * hp * 2     # h_out double-buffered (bf16)
           + NB * hp * (2 + 4))          # h (bf16) + c (f32) carries
    vmem_limit = min(max(2 * est, 32 * 1024 * 1024), 64 * 1024 * 1024)

    kern = functools.partial(_lstm_recurrence_kernel, hp=hp, chunk=chunk)
    return pl.pallas_call(
        kern,
        out_shape=jax.ShapeDtypeStruct((Tpad, N, hp), jnp.bfloat16),
        grid_spec=pltpu.PrefetchScalarGridSpec(
            num_scalar_prefetch=0,
            # (batch blocks: parallel -> megacore shards across v7x's 2 TCs,
            #  time chunks: serial/arbitrary)
            grid=(batch_blocks, n_chunks),
            in_specs=[
                pl.BlockSpec((chunk, NB, G), lambda nb, tc: (tc, nb, 0)),
                pl.BlockSpec((hp, G), lambda nb, tc: (0, 0)),
            ],
            out_specs=pl.BlockSpec((chunk, NB, hp), lambda nb, tc: (tc, nb, 0)),
            scratch_shapes=[
                pltpu.VMEM((NB, hp), jnp.bfloat16),   # h carry
                pltpu.VMEM((NB, hp), jnp.float32),    # c carry
            ],
        ),
        compiler_params=pltpu.CompilerParams(
            dimension_semantics=("parallel", "arbitrary"),
            vmem_limit_bytes=vmem_limit),
    )(gates_x, w_hh_bf16)


# ---------------------------------------------------------------------------
# Kernel 4: hoisted output head  Dropout(0.5) -> Linear(H -> V+3)
#           Row-block axis is the INNER grid axis so each (Hp, TV) w_out tile is
#           fetched once; larger tiles amortize per-grid-step overhead.
# ---------------------------------------------------------------------------
def _head_kernel(h_ref, w_ref, b_ref, o_ref):
    # TODO(synk): nn.Dropout(0.5) is active in PyTorch train mode; its RNG cannot
    # be reproduced here, so it is applied as identity (eval semantics).
    o_ref[...] = (jnp.dot(h_ref[...], w_ref[...],
                          preferred_element_type=jnp.float32)
                  + b_ref[...])


def output_head(h_flat_bf16, w_out_bf16, b_out_f32, *, tm=512, tv=1024):
    M, Hp = h_flat_bf16.shape
    V0 = w_out_bf16.shape[1]                 # already a multiple of 128
    TM = tm if M >= tm else _round_up(M, 8)
    Mp = _round_up(M, TM)
    TV = min(tv, V0)
    Vp = _round_up(V0, TV)
    if Mp != M:
        h_flat_bf16 = jnp.pad(h_flat_bf16, ((0, Mp - M), (0, 0)))
    if Vp != V0:
        w_out_bf16 = jnp.pad(w_out_bf16, ((0, 0), (0, Vp - V0)))
        b_out_f32 = jnp.pad(b_out_f32, ((0, 0), (0, Vp - V0)))
    out = pl.pallas_call(
        _head_kernel,
        out_shape=jax.ShapeDtypeStruct((Mp, Vp), jnp.float32),
        # Vocab-tile axis outer, row-block axis inner: each (Hp, TV) w_out tile is
        # DMA'd once and stays VMEM-resident across all row blocks.
        grid=(Vp // TV, Mp // TM),
        in_specs=[
            pl.BlockSpec((TM, Hp), lambda j, i: (i, 0)),
            pl.BlockSpec((Hp, TV), lambda j, i: (0, j)),
            pl.BlockSpec((1, TV), lambda j, i: (0, j)),
        ],
        out_specs=pl.BlockSpec((TM, TV), lambda j, i: (i, j)),
        compiler_params=pltpu.CompilerParams(
            dimension_semantics=("parallel", "parallel"),
            vmem_limit_bytes=64 * 1024 * 1024),
    )(h_flat_bf16, w_out_bf16, b_out_f32)
    return out[:M, :V0]


# ---------------------------------------------------------------------------
# Parameters: natural (PyTorch-equivalent, transposed to right-multiply) layout,
# then padded/cast once for the kernels.
# ---------------------------------------------------------------------------
def init_params(key, vocab_size, input_encoding_size, image_vector_dim, rnn_size):
    V, W, D, H = vocab_size, input_encoding_size, image_vector_dim, rnn_size
    ks = jax.random.split(key, 8)
    s = 0.1
    return {
        "enc_w": s * jax.random.normal(ks[0], (D, W), jnp.float32),
        "enc_b": s * jax.random.normal(ks[1], (W,), jnp.float32),
        "emb":   s * jax.random.normal(ks[2], (V + 3, W), jnp.float32),
        # PyTorch stores weight_ih as (4H, W); we keep transposed (W, 4H) so the
        # kernel matmul is x @ W_ih directly.  Gate order is [i|f|g|o].
        "w_ih":  s * jax.random.normal(ks[3], (W, 4 * H), jnp.float32),
        "w_hh":  s * jax.random.normal(ks[4], (H, 4 * H), jnp.float32),
        "b":     s * jax.random.normal(ks[5], (4 * H,), jnp.float32),   # b_ih + b_hh
        "out_w": s * jax.random.normal(ks[6], (H, V + 3), jnp.float32),
        "out_b": s * jax.random.normal(ks[7], (V + 3,), jnp.float32),
    }


def prepare_params(params):
    """Pad H, W, V+3 to multiples of 128 (per-gate for the LSTM) and cast MXU
    operands to bf16 (f32 biases).  Zero padding is mathematically inert."""
    D, W = params["enc_w"].shape
    H = params["w_hh"].shape[0]
    Vp3 = params["out_w"].shape[1]
    Wp = _round_up(W, 128)
    Hp = _round_up(H, 128)
    Vpad = _round_up(Vp3, 128)

    def pad_gate_cols(w):  # (..., 4H) -> (..., 4*Hp), zero pad each gate slab
        parts = jnp.split(w, 4, axis=-1)
        parts = [_pad_to(p, p.shape[:-1] + (Hp,)) for p in parts]
        return jnp.concatenate(parts, axis=-1)

    w_ih = _pad_to(pad_gate_cols(params["w_ih"]), (Wp, 4 * Hp))
    w_hh = _pad_to(pad_gate_cols(params["w_hh"]), (Hp, 4 * Hp))
    b = pad_gate_cols(params["b"][None, :])

    return {
        "enc_w": _pad_to(params["enc_w"], (D, Wp)).astype(jnp.bfloat16),
        "enc_b": _pad_to(params["enc_b"][None, :], (1, Wp)),
        "emb":   _pad_to(params["emb"], (Vp3, Wp)).astype(jnp.bfloat16),
        "w_ih":  w_ih.astype(jnp.bfloat16),
        "w_hh":  w_hh.astype(jnp.bfloat16),
        "b":     b,                                                # f32 (1, 4*Hp)
        "out_w": _pad_to(params["out_w"], (Hp, Vpad)).astype(jnp.bfloat16),
        "out_b": _pad_to(params["out_b"][None, :], (1, Vpad)),     # f32 (1, Vpad)
    }


# ---------------------------------------------------------------------------
# LanguageModel training-branch forward (gt_sequence provided)
# ---------------------------------------------------------------------------
@functools.partial(jax.jit, static_argnames=("vocab_size",))
def language_model_forward(prep, image_vectors, gt_sequence, *, vocab_size):
    N, T = gt_sequence.shape
    START_TOKEN = vocab_size + 1
    Vp3 = vocab_size + 3

    Wp = prep["emb"].shape[1]
    Hp = prep["w_hh"].shape[0]
    G = prep["w_hh"].shape[1]          # 4*Hp

    T2 = T + 2
    chunk = _pick_chunk(T2)
    Tpad = _round_up(T2, chunk)

    # v7x has 2 TensorCores/chip: give the 'parallel' batch axis 2 blocks so megacore
    # shards the serial recurrence; single-TC v5e/v6e keep one block (no overhead).
    batch_blocks = 2 if (_is_v7x() and N % 2 == 0 and (N // 2) % 8 == 0) else 1

    # 1) image encoder (Pallas): (N, Wp) bf16; input cast to bf16 in the wrapper.
    wv_img = image_encoder(image_vectors.astype(jnp.bfloat16),
                           prep["enc_w"], prep["enc_b"])

    # 2) embedding lookup built directly time-major (no wrapper transpose of x).
    gt_with_start = jnp.concatenate(
        [jnp.full((N, 1), START_TOKEN, dtype=jnp.int32),
         gt_sequence.astype(jnp.int32)], axis=1)             # (N, T+1)
    idx_tm = gt_with_start.T                                  # (T+1, N)
    wv_gt = jnp.take(prep["emb"], idx_tm, axis=0)             # (T+1, N, Wp) bf16
    # TODO(synk): the embedding gather could be fused into the projection kernel via
    # scalar-prefetched token ids; kept as XLA glue here.

    x_tm = jnp.concatenate([wv_img[None, :, :], wv_gt], axis=0)   # (T+2, N, Wp)
    if Tpad != T2:
        x_tm = jnp.pad(x_tm, ((0, Tpad - T2), (0, 0), (0, 0)))

    # 3) hoisted input projection: one batched matmul over all rows -> bf16 gates_x.
    gates_x = input_projection(x_tm.reshape(Tpad * N, Wp), prep["w_ih"], prep["b"])
    gates_x = gates_x.reshape(Tpad, N, G)

    # 4) serial LSTM recurrence (only h @ W_hh inside the loop) (Pallas).
    h_all = lstm_recurrence(gates_x, prep["w_hh"], Hp, chunk=chunk,
                            batch_blocks=batch_blocks)            # (Tpad, N, Hp) bf16

    # 5) hoisted output head on the real T2 steps only; lane-dense vocab axis;
    #    batch-first logits written directly (only the small h tensor is transposed).
    h_bf = jnp.transpose(h_all[:T2], (1, 0, 2)).reshape(N * T2, Hp)
    logits = output_head(h_bf, prep["out_w"], prep["out_b"])          # (N*T2, Vpad)
    return logits.reshape(N, T2, -1)[:, :, :Vp3]                      # (N, T+2, V+3) f32


if __name__ == "__main__":
    # Small, module-consistent sizes.
    vocab_size = 13            # V  -> output dim V+3 = 16
    input_encoding_size = 32   # W
    image_vector_dim = 32      # D
    rnn_size = 32              # H
    N, T = 2, 6                # batch, gt sequence length

    key = jax.random.PRNGKey(0)
    kp, kx, ks = jax.random.split(key, 3)

    params = init_params(kp, vocab_size, input_encoding_size,
                         image_vector_dim, rnn_size)
    prep = prepare_params(params)

    image_vectors = jax.random.normal(kx, (N, image_vector_dim), jnp.float32)
    gt_sequence = jax.random.randint(ks, (N, T), 1, vocab_size + 1, dtype=jnp.int32)

    out = language_model_forward(prep, image_vectors, gt_sequence,
                                 vocab_size=vocab_size)
    out = jax.block_until_ready(out)
    assert out.shape == (N, T + 2, vocab_size + 3), out.shape
    print("KERNEL_OK")
</pallas_src>

<mosaic_0001>
module attributes {stable_mosaic.version = 11 : i64} {
  func.func @_img_encoder_kernel(%arg0: i32, %arg1: memref<8x32xbf16, #tpu.memory_space<vmem>>, %arg2: memref<32x128xbf16, #tpu.memory_space<vmem>>, %arg3: memref<1x128xf32, #tpu.memory_space<vmem>>, %arg4: memref<8x128xbf16, #tpu.memory_space<vmem>>) attributes {dimension_semantics = [#tpu.dimension_semantics<parallel>], iteration_bounds = array<i64: 1>, scalar_prefetch = 0 : i64, scratch_operands = 0 : i64, tpu.core_type = #tpu.core_type<tc>, window_params = [{transform_indices = @transform_0, window_bounds = array<i64: 8, 32>}, {pipeline_mode = #tpu.pipeline_mode<synchronous>, transform_indices = @transform_1, window_bounds = array<i64: 32, 128>}, {pipeline_mode = #tpu.pipeline_mode<synchronous>, transform_indices = @transform_2, window_bounds = array<i64: 1, 128>}, {transform_indices = @transform_3, window_bounds = array<i64: 8, 128>}]} {
    %c0 = arith.constant 0 : index
    %c0_0 = arith.constant 0 : index
    %0 = vector.load %arg1[%c0, %c0_0] : memref<8x32xbf16, #tpu.memory_space<vmem>>, vector<8x32xbf16>
    %c0_1 = arith.constant 0 : index
    %c0_2 = arith.constant 0 : index
    %1 = vector.load %arg2[%c0_1, %c0_2] : memref<32x128xbf16, #tpu.memory_space<vmem>>, vector<32x128xbf16>
    %cst = arith.constant dense<0.000000e+00> : vector<8x128xf32>
    %2 = tpu.matmul %0, %1, %cst {dimension_numbers = #tpu.dot_dimension_numbers<[1], [0], [0], [1], [0, 0, 1, 1], [], []>} : vector<8x32xbf16>, vector<32x128xbf16>, vector<8x128xf32> -> vector<8x128xf32>
    %c0_3 = arith.constant 0 : index
    %c0_4 = arith.constant 0 : index
    %3 = vector.load %arg3[%c0_3, %c0_4] : memref<1x128xf32, #tpu.memory_space<vmem>>, vector<1x128xf32>
    %4 = vector.broadcast %3 : vector<1x128xf32> to vector<8x128xf32>
    %5 = arith.addf %2, %4 : vector<8x128xf32>
    %cst_5 = arith.constant 0.000000e+00 : f32
    %6 = vector.broadcast %cst_5 : f32 to vector<8x128xf32>
    %7 = arith.maximumf %5, %6 : vector<8x128xf32>
    %8 = arith.truncf %7 : vector<8x128xf32> to vector<8x128xbf16>
    %c0_6 = arith.constant 0 : index
    %c0_7 = arith.constant 0 : index
    %9 = vector.load %arg4[%c0_6, %c0_7] : memref<8x128xbf16, #tpu.memory_space<vmem>>, vector<8x128xbf16>
    tpu.vector_store %arg4[%c0_6, %c0_7], %8 {strides = array<i32>} : memref<8x128xbf16, #tpu.memory_space<vmem>>, vector<8x128xbf16>,
    return
  }
  func.func @transform_0(%arg0: i32) -> (i32, i32) {
    %c0_i32 = arith.constant 0 : i32
    %c0_i32_0 = arith.constant 0 : i32
    return %arg0, %c0_i32 : i32, i32
  }
  func.func @transform_1(%arg0: i32) -> (i32, i32) {
    %c0_i32 = arith.constant 0 : i32
    %c0_i32_0 = arith.constant 0 : i32
    %c0_i32_1 = arith.constant 0 : i32
    return %c0_i32, %c0_i32_0 : i32, i32
  }
  func.func @transform_2(%arg0: i32) -> (i32, i32) {
    %c0_i32 = arith.constant 0 : i32
    %c0_i32_0 = arith.constant 0 : i32
    %c0_i32_1 = arith.constant 0 : i32
    return %c0_i32, %c0_i32_0 : i32, i32
  }
  func.func @transform_3(%arg0: i32) -> (i32, i32) {
    %c0_i32 = arith.constant 0 : i32
    %c0_i32_0 = arith.constant 0 : i32
    return %arg0, %c0_i32 : i32, i32
  }
}

module attributes {stable_mosaic.version = 11 : i64} {
  func.func @_proj_kernel(%arg0: i32, %arg1: memref<16x128xbf16, #tpu.memory_space<vmem>>, %arg2: memref<128x512xbf16, #tpu.memory_space<vmem>>, %arg3: memref<1x512xf32, #tpu.memory_space<vmem>>, %arg4: memref<16x512xbf16, #tpu.memory_space<vmem>>) attributes {dimension_semantics = [#tpu.dimension_semantics<parallel>], iteration_bounds = array<i64: 1>, scalar_prefetch = 0 : i64, scratch_operands = 0 : i64, tpu.core_type = #tpu.core_type<tc>, window_params = [{transform_indices = @transform_0, window_bounds = array<i64: 16, 128>}, {pipeline_mode = #tpu.pipeline_mode<synchronous>, transform_indices = @transform_1, window_bounds = array<i64: 128, 512>}, {pipeline_mode = #tpu.pipeline_mode<synchronous>, transform_indices = @transform_2, window_bounds = array<i64: 1, 512>}, {transform_indices = @transform_3, window_bounds = array<i64: 16, 512>}]} {
    %c0 = arith.constant 0 : index
    %c0_0 = arith.constant 0 : index
    %0 = vector.load %arg1[%c0, %c0_0] : memref<16x128xbf16, #tpu.memory_space<vmem>>, vector<16x128xbf16>
    %c0_1 = arith.constant 0 : index
    %c0_2 = arith.constant 0 : index
    %1 = vector.load %arg2[%c0_1, %c0_2] : memref<128x512xbf16, #tpu.memory_space<vmem>>, vector<128x512xbf16>
    %cst = arith.constant dense<0.000000e+00> : vector<16x512xf32>
    %2 = tpu.matmul %0, %1, %cst {dimension_numbers = #tpu.dot_dimension_numbers<[1], [0], [0], [1], [0, 0, 1, 1], [], []>} : vector<16x128xbf16>, vector<128x512xbf16>, vector<16x512xf32> -> vector<16x512xf32>
    %c0_3 = arith.constant 0 : index
    %c0_4 = arith.constant 0 : index
    %3 = vector.load %arg3[%c0_3, %c0_4] : memref<1x512xf32, #tpu.memory_space<vmem>>, vector<1x512xf32>
    %4 = vector.broadcast %3 : vector<1x512xf32> to vector<16x512xf32>
    %5 = arith.addf %2, %4 : vector<16x512xf32>
    %6 = arith.truncf %5 : vector<16x512xf32> to vector<16x512xbf16>
    %c0_5 = arith.constant 0 : index
    %c0_6 = arith.constant 0 : index
    %7 = vector.load %arg4[%c0_5, %c0_6] : memref<16x512xbf16, #tpu.memory_space<vmem>>, vector<16x512xbf16>
    tpu.vector_store %arg4[%c0_5, %c0_6], %6 {strides = array<i32>} : memref<16x512xbf16, #tpu.memory_space<vmem>>, vector<16x512xbf16>,
    return
  }
  func.func @transform_0(%arg0: i32) -> (i32, i32) {
    %c0_i32 = arith.constant 0 : i32
    %c0_i32_0 = arith.constant 0 : i32
    return %arg0, %c0_i32 : i32, i32
  }
  func.func @transform_1(%arg0: i32) -> (i32, i32) {
    %c0_i32 = arith.constant 0 : i32
    %c0_i32_0 = arith.constant 0 : i32
    %c0_i32_1 = arith.constant 0 : i32
    return %c0_i32, %c0_i32_0 : i32, i32
  }
  func.func @transform_2(%arg0: i32) -> (i32, i32) {
    %c0_i32 = arith.constant 0 : i32
    %c0_i32_0 = arith.constant 0 : i32
    %c0_i32_1 = arith.constant 0 : i32
    return %c0_i32, %c0_i32_0 : i32, i32
  }
  func.func @transform_3(%arg0: i32) -> (i32, i32) {
    %c0_i32 = arith.constant 0 : i32
    %c0_i32_0 = arith.constant 0 : i32
    return %arg0, %c0_i32 : i32, i32
  }
}

module attributes {stable_mosaic.version = 11 : i64} {
  func.func @_head_kernel(%arg0: i32, %arg1: i32, %arg2: memref<16x128xbf16, #tpu.memory_space<vmem>>, %arg3: memref<128x128xbf16, #tpu.memory_space<vmem>>, %arg4: memref<1x128xf32, #tpu.memory_space<vmem>>, %arg5: memref<16x128xf32, #tpu.memory_space<vmem>>) attributes {dimension_semantics = [#tpu.dimension_semantics<parallel>, #tpu.dimension_semantics<parallel>], iteration_bounds = array<i64: 1, 1>, scalar_prefetch = 0 : i64, scratch_operands = 0 : i64, tpu.core_type = #tpu.core_type<tc>, window_params = [{transform_indices = @transform_0, window_bounds = array<i64: 16, 128>}, {transform_indices = @transform_1, window_bounds = array<i64: 128, 128>}, {transform_indices = @transform_2, window_bounds = array<i64: 1, 128>}, {transform_indices = @transform_3, window_bounds = array<i64: 16, 128>}]} {
    %c0 = arith.constant 0 : index
    %c0_0 = arith.constant 0 : index
    %0 = vector.load %arg2[%c0, %c0_0] : memref<16x128xbf16, #tpu.memory_space<vmem>>, vector<16x128xbf16>
    %c0_1 = arith.constant 0 : index
    %c0_2 = arith.constant 0 : index
    %1 = vector.load %arg3[%c0_1, %c0_2] : memref<128x128xbf16, #tpu.memory_space<vmem>>, vector<128x128xbf16>
    %cst = arith.constant dense<0.000000e+00> : vector<16x128xf32>
    %2 = tpu.matmul %0, %1, %cst {dimension_numbers = #tpu.dot_dimension_numbers<[1], [0], [0], [1], [0, 0, 1, 1], [], []>} : vector<16x128xbf16>, vector<128x128xbf16>, vector<16x128xf32> -> vector<16x128xf32>
    %c0_3 = arith.constant 0 : index
    %c0_4 = arith.constant 0 : index
    %3 = vector.load %arg4[%c0_3, %c0_4] : memref<1x128xf32, #tpu.memory_space<vmem>>, vector<1x128xf32>
    %4 = vector.broadcast %3 : vector<1x128xf32> to vector<16x128xf32>
    %5 = arith.addf %2, %4 : vector<16x128xf32>
    %c0_5 = arith.constant 0 : index
    %c0_6 = arith.constant 0 : index
    %6 = vector.load %arg5[%c0_5, %c0_6] : memref<16x128xf32, #tpu.memory_space<vmem>>, vector<16x128xf32>
    tpu.vector_store %arg5[%c0_5, %c0_6], %5 {strides = array<i32>} : memref<16x128xf32, #tpu.memory_space<vmem>>, vector<16x128xf32>,
    return
  }
  func.func @transform_0(%arg0: i32, %arg1: i32) -> (i32, i32) {
    %c0_i32 = arith.constant 0 : i32
    %c0_i32_0 = arith.constant 0 : i32
    return %arg1, %c0_i32 : i32, i32
  }
  func.func @transform_1(%arg0: i32, %arg1: i32) -> (i32, i32) {
    %c0_i32 = arith.constant 0 : i32
    %c0_i32_0 = arith.constant 0 : i32
    return %c0_i32, %arg0 : i32, i32
  }
  func.func @transform_2(%arg0: i32, %arg1: i32) -> (i32, i32) {
    %c0_i32 = arith.constant 0 : i32
    %c0_i32_0 = arith.constant 0 : i32
    return %c0_i32, %arg0 : i32, i32
  }
  func.func @transform_3(%arg0: i32, %arg1: i32) -> (i32, i32) {
    %c0_i32 = arith.constant 0 : i32
    return %arg1, %arg0 : i32, i32
  }
}

module attributes {stable_mosaic.version = 11 : i64} {
  func.func @_lstm_recurrence_kernel(%arg0: i32, %arg1: i32, %arg2: memref<8x2x512xbf16, #tpu.memory_space<vmem>>, %arg3: memref<128x512xbf16, #tpu.memory_space<vmem>>, %arg4: memref<8x2x128xbf16, #tpu.memory_space<vmem>>, %arg5: memref<2x128xbf16, #tpu.memory_space<vmem>>, %arg6: memref<2x128xf32, #tpu.memory_space<vmem>>) attributes {dimension_semantics = [#tpu.dimension_semantics<parallel>, #tpu.dimension_semantics<arbitrary>], iteration_bounds = array<i64: 1, 1>, scalar_prefetch = 0 : i64, scratch_operands = 2 : i64, tpu.core_type = #tpu.core_type<tc>, window_params = [{transform_indices = @transform_0, window_bounds = array<i64: 8, 2, 512>}, {pipeline_mode = #tpu.pipeline_mode<synchronous>, transform_indices = @transform_1, window_bounds = array<i64: 128, 512>}, {transform_indices = @transform_2, window_bounds = array<i64: 8, 2, 128>}]} {
    %c0_i32 = arith.constant 0 : i32
    %0 = arith.cmpi eq, %arg1, %c0_i32 : i32
    %1 = arith.extui %0 : i1 to i32
    %c0_i32_0 = arith.constant 0 : i32
    %2 = arith.cmpi ne, %1, %c0_i32_0 : i32
    scf.if %2 {
      %cst_136 = arith.constant 0.000000e+00 : bf16
      %351 = vector.broadcast %cst_136 : bf16 to vector<2x128xbf16>
      %c0_137 = arith.constant 0 : index
      %c0_138 = arith.constant 0 : index
      %352 = vector.load %arg5[%c0_137, %c0_138] : memref<2x128xbf16, #tpu.memory_space<vmem>>, vector<2x128xbf16>
      tpu.vector_store %arg5[%c0_137, %c0_138], %351 {strides = array<i32>} : memref<2x128xbf16, #tpu.memory_space<vmem>>, vector<2x128xbf16>,
      %cst_139 = arith.constant 0.000000e+00 : f32
      %353 = vector.broadcast %cst_139 : f32 to vector<2x128xf32>
      %c0_140 = arith.constant 0 : index
      %c0_141 = arith.constant 0 : index
      %354 = vector.load %arg6[%c0_140, %c0_141] : memref<2x128xf32, #tpu.memory_space<vmem>>, vector<2x128xf32>
      tpu.vector_store %arg6[%c0_140, %c0_141], %353 {strides = array<i32>} : memref<2x128xf32, #tpu.memory_space<vmem>>, vector<2x128xf32>,
    } else {
    }
    %c0 = arith.constant 0 : index
    %c0_1 = arith.constant 0 : index
    %3 = vector.load %arg5[%c0, %c0_1] : memref<2x128xbf16, #tpu.memory_space<vmem>>, vector<2x128xbf16>
    %c0_2 = arith.constant 0 : index
    %c0_3 = arith.constant 0 : index
    %4 = vector.load %arg6[%c0_2, %c0_3] : memref<2x128xf32, #tpu.memory_space<vmem>>, vector<2x128xf32>
    %c0_i32_4 = arith.constant 0 : i32
    %c0_5 = arith.constant 0 : index
    %c0_6 = arith.constant 0 : index
    %5 = vector.load %arg3[%c0_5, %c0_6] : memref<128x512xbf16, #tpu.memory_space<vmem>>, vector<128x512xbf16>
    %cst = arith.constant dense<0.000000e+00> : vector<2x512xf32>
    %6 = tpu.matmul %3, %5, %cst {dimension_numbers = #tpu.dot_dimension_numbers<[1], [0], [0], [1], [0, 0, 1, 1], [], []>} : vector<2x128xbf16>, vector<128x512xbf16>, vector<2x512xf32> -> vector<2x512xf32>
    %7 = arith.index_cast %c0_i32_4 : i32 to index
    %c0_7 = arith.constant 0 : index
    %c0_8 = arith.constant 0 : index
    %8 = vector.load %arg2[%7, %c0_7, %c0_8] : memref<8x2x512xbf16, #tpu.memory_space<vmem>>, vector<1x2x512xbf16>
    %9 = vector.shape_cast %8 : vector<1x2x512xbf16> to vector<2x512xbf16>
    %10 = arith.extf %9 : vector<2x512xbf16> to vector<2x512xf32>
    %11 = arith.addf %6, %10 : vector<2x512xf32>
    %12 = vector.extract_strided_slice %11 {offsets = [0, 0], sizes = [2, 128], strides = [1, 1]} : vector<2x512xf32> to vector<2x128xf32>
    %cst_9 = arith.constant 5.000000e-01 : f32
    %13 = vector.broadcast %cst_9 : f32 to vector<2x128xf32>
    %14 = arith.mulf %13, %12 : vector<2x128xf32>
    %15 = math.tanh %14 : vector<2x128xf32>
    %cst_10 = arith.constant 5.000000e-01 : f32
    %16 = vector.broadcast %cst_10 : f32 to vector<2x128xf32>
    %17 = arith.mulf %16, %15 : vector<2x128xf32>
    %cst_11 = arith.constant 5.000000e-01 : f32
    %18 = vector.broadcast %cst_11 : f32 to vector<2x128xf32>
    %19 = arith.addf %17, %18 : vector<2x128xf32>
    %20 = vector.extract_strided_slice %11 {offsets = [0, 128], sizes = [2, 128], strides = [1, 1]} : vector<2x512xf32> to vector<2x128xf32>
    %cst_12 = arith.constant 5.000000e-01 : f32
    %21 = vector.broadcast %cst_12 : f32 to vector<2x128xf32>
    %22 = arith.mulf %21, %20 : vector<2x128xf32>
    %23 = math.tanh %22 : vector<2x128xf32>
    %cst_13 = arith.constant 5.000000e-01 : f32
    %24 = vector.broadcast %cst_13 : f32 to vector<2x128xf32>
    %25 = arith.mulf %24, %23 : vector<2x128xf32>
    %cst_14 = arith.constant 5.000000e-01 : f32
    %26 = vector.broadcast %cst_14 : f32 to vector<2x128xf32>
    %27 = arith.addf %25, %26 : vector<2x128xf32>
    %28 = vector.extract_strided_slice %11 {offsets = [0, 256], sizes = [2, 128], strides = [1, 1]} : vector<2x512xf32> to vector<2x128xf32>
    %29 = math.tanh %28 : vector<2x128xf32>
    %30 = vector.extract_strided_slice %11 {offsets = [0, 384], sizes = [2, 128], strides = [1, 1]} : vector<2x512xf32> to vector<2x128xf32>
    %cst_15 = arith.constant 5.000000e-01 : f32
    %31 = vector.broadcast %cst_15 : f32 to vector<2x128xf32>
    %32 = arith.mulf %31, %30 : vector<2x128xf32>
    %33 = math.tanh %32 : vector<2x128xf32>
    %cst_16 = arith.constant 5.000000e-01 : f32
    %34 = vector.broadcast %cst_16 : f32 to vector<2x128xf32>
    %35 = arith.mulf %34, %33 : vector<2x128xf32>
    %cst_17 = arith.constant 5.000000e-01 : f32
    %36 = vector.broadcast %cst_17 : f32 to vector<2x128xf32>
    %37 = arith.addf %35, %36 : vector<2x128xf32>
    %38 = arith.mulf %27, %4 : vector<2x128xf32>
    %39 = arith.mulf %19, %29 : vector<2x128xf32>
    %40 = arith.addf %38, %39 : vector<2x128xf32>
    %41 = math.tanh %40 : vector<2x128xf32>
    %42 = arith.mulf %37, %41 : vector<2x128xf32>
    %43 = arith.truncf %42 : vector<2x128xf32> to vector<2x128xbf16>
    %44 = arith.index_cast %c0_i32_4 : i32 to index
    %c0_18 = arith.constant 0 : index
    %c0_19 = arith.constant 0 : index
    %45 = vector.load %arg4[%44, %c0_18, %c0_19] : memref<8x2x128xbf16, #tpu.memory_space<vmem>>, vector<1x2x128xbf16>
    %46 = vector.shape_cast %45 : vector<1x2x128xbf16> to vector<2x128xbf16>
    %47 = vector.shape_cast %43 : vector<2x128xbf16> to vector<1x2x128xbf16>
    tpu.vector_store %arg4[%44, %c0_18, %c0_19], %47 {strides = array<i32>} : memref<8x2x128xbf16, #tpu.memory_space<vmem>>, vector<1x2x128xbf16>,
    %c1_i32 = arith.constant 1 : i32
    %c0_20 = arith.constant 0 : index
    %c0_21 = arith.constant 0 : index
    %48 = vector.load %arg3[%c0_20, %c0_21] : memref<128x512xbf16, #tpu.memory_space<vmem>>, vector<128x512xbf16>
    %cst_22 = arith.constant dense<0.000000e+00> : vector<2x512xf32>
    %49 = tpu.matmul %43, %48, %cst_22 {dimension_numbers = #tpu.dot_dimension_numbers<[1], [0], [0], [1], [0, 0, 1, 1], [], []>} : vector<2x128xbf16>, vector<128x512xbf16>, vector<2x512xf32> -> vector<2x512xf32>
    %50 = arith.index_cast %c1_i32 : i32 to index
    %c0_23 = arith.constant 0 : index
    %c0_24 = arith.constant 0 : index
    %51 = vector.load %arg2[%50, %c0_23, %c0_24] : memref<8x2x512xbf16, #tpu.memory_space<vmem>>, vector<1x2x512xbf16>
    %52 = vector.shape_cast %51 : vector<1x2x512xbf16> to vector<2x512xbf16>
    %53 = arith.extf %52 : vector<2x512xbf16> to vector<2x512xf32>
    %54 = arith.addf %49, %53 : vector<2x512xf32>
    %55 = vector.extract_strided_slice %54 {offsets = [0, 0], sizes = [2, 128], strides = [1, 1]} : vector<2x512xf32> to vector<2x128xf32>
    %cst_25 = arith.constant 5.000000e-01 : f32
    %56 = vector.broadcast %cst_25 : f32 to vector<2x128xf32>
    %57 = arith.mulf %56, %55 : vector<2x128xf32>
    %58 = math.tanh %57 : vector<2x128xf32>
    %cst_26 = arith.constant 5.000000e-01 : f32
    %59 = vector.broadcast %cst_26 : f32 to vector<2x128xf32>
    %60 = arith.mulf %59, %58 : vector<2x128xf32>
    %cst_27 = arith.constant 5.000000e-01 : f32
    %61 = vector.broadcast %cst_27 : f32 to vector<2x128xf32>
    %62 = arith.addf %60, %61 : vector<2x128xf32>
    %63 = vector.extract_strided_slice %54 {offsets = [0, 128], sizes = [2, 128], strides = [1, 1]} : vector<2x512xf32> to vector<2x128xf32>
    %cst_28 = arith.constant 5.000000e-01 : f32
    %64 = vector.broadcast %cst_28 : f32 to vector<2x128xf32>
    %65 = arith.mulf %64, %63 : vector<2x128xf32>
    %66 = math.tanh %65 : vector<2x128xf32>
    %cst_29 = arith.constant 5.000000e-01 : f32
    %67 = vector.broadcast %cst_29 : f32 to vector<2x128xf32>
    %68 = arith.mulf %67, %66 : vector<2x128xf32>
    %cst_30 = arith.constant 5.000000e-01 : f32
    %69 = vector.broadcast %cst_30 : f32 to vector<2x128xf32>
    %70 = arith.addf %68, %69 : vector<2x128xf32>
    %71 = vector.extract_strided_slice %54 {offsets = [0, 256], sizes = [2, 128], strides = [1, 1]} : vector<2x512xf32> to vector<2x128xf32>
    %72 = math.tanh %71 : vector<2x128xf32>
    %73 = vector.extract_strided_slice %54 {offsets = [0, 384], sizes = [2, 128], strides = [1, 1]} : vector<2x512xf32> to vector<2x128xf32>
    %cst_31 = arith.constant 5.000000e-01 : f32
    %74 = vector.broadcast %cst_31 : f32 to vector<2x128xf32>
    %75 = arith.mulf %74, %73 : vector<2x128xf32>
    %76 = math.tanh %75 : vector<2x128xf32>
    %cst_32 = arith.constant 5.000000e-01 : f32
    %77 = vector.broadcast %cst_32 : f32 to vector<2x128xf32>
    %78 = arith.mulf %77, %76 : vector<2x128xf32>
    %cst_33 = arith.constant 5.000000e-01 : f32
    %79 = vector.broadcast %cst_33 : f32 to vector<2x128xf32>
    %80 = arith.addf %78, %79 : vector<2x128xf32>
    %81 = arith.mulf %70, %40 : vector<2x128xf32>
    %82 = arith.mulf %62, %72 : vector<2x128xf32>
    %83 = arith.addf %81, %82 : vector<2x128xf32>
    %84 = math.tanh %83 : vector<2x128xf32>
    %85 = arith.mulf %80, %84 : vector<2x128xf32>
    %86 = arith.truncf %85 : vector<2x128xf32> to vector<2x128xbf16>
    %87 = arith.index_cast %c1_i32 : i32 to index
    %c0_34 = arith.constant 0 : index
    %c0_35 = arith.constant 0 : index
    %88 = vector.load %arg4[%87, %c0_34, %c0_35] : memref<8x2x128xbf16, #tpu.memory_space<vmem>>, vector<1x2x128xbf16>
    %89 = vector.shape_cast %88 : vector<1x2x128xbf16> to vector<2x128xbf16>
    %90 = vector.shape_cast %86 : vector<2x128xbf16> to vector<1x2x128xbf16>
    tpu.vector_store %arg4[%87, %c0_34, %c0_35], %90 {strides = array<i32>} : memref<8x2x128xbf16, #tpu.memory_space<vmem>>, vector<1x2x128xbf16>,
    %c2_i32 = arith.constant 2 : i32
    %c0_36 = arith.constant 0 : index
    %c0_37 = arith.constant 0 : index
    %91 = vector.load %arg3[%c0_36, %c0_37] : memref<128x512xbf16, #tpu.memory_space<vmem>>, vector<128x512xbf16>
    %cst_38 = arith.constant dense<0.000000e+00> : vector<2x512xf32>
    %92 = tpu.matmul %86, %91, %cst_38 {dimension_numbers = #tpu.dot_dimension_numbers<[1], [0], [0], [1], [0, 0, 1, 1], [], []>} : vector<2x128xbf16>, vector<128x512xbf16>, vector<2x512xf32> -> vector<2x512xf32>
    %93 = arith.index_cast %c2_i32 : i32 to index
    %c0_39 = arith.constant 0 : index
    %c0_40 = arith.constant 0 : index
    %94 = vector.load %arg2[%93, %c0_39, %c0_40] : memref<8x2x512xbf16, #tpu.memory_space<vmem>>, vector<1x2x512xbf16>
    %95 = vector.shape_cast %94 : vector<1x2x512xbf16> to vector<2x512xbf16>
    %96 = arith.extf %95 : vector<2x512xbf16> to vector<2x512xf32>
    %97 = arith.addf %92, %96 : vector<2x512xf32>
    %98 = vector.extract_strided_slice %97 {offsets = [0, 0], sizes = [2, 128], strides = [1, 1]} : vector<2x512xf32> to vector<2x128xf32>
    %cst_41 = arith.constant 5.000000e-01 : f32
    %99 = vector.broadcast %cst_41 : f32 to vector<2x128xf32>
    %100 = arith.mulf %99, %98 : vector<2x128xf32>
    %101 = math.tanh %100 : vector<2x128xf32>
    %cst_42 = arith.constant 5.000000e-01 : f32
    %102 = vector.broadcast %cst_42 : f32 to vector<2x128xf32>
    %103 = arith.mulf %102, %101 : vector<2x128xf32>
    %cst_43 = arith.constant 5.000000e-01 : f32
    %104 = vector.broadcast %cst_43 : f32 to vector<2x128xf32>
    %105 = arith.addf %103, %104 : vector<2x128xf32>
    %106 = vector.extract_strided_slice %97 {offsets = [0, 128], sizes = [2, 128], strides = [1, 1]} : vector<2x512xf32> to vector<2x128xf32>
    %cst_44 = arith.constant 5.000000e-01 : f32
    %107 = vector.broadcast %cst_44 : f32 to vector<2x128xf32>
    %108 = arith.mulf %107, %106 : vector<2x128xf32>
    %109 = math.tanh %108 : vector<2x128xf32>
    %cst_45 = arith.constant 5.000000e-01 : f32
    %110 = vector.broadcast %cst_45 : f32 to vector<2x128xf32>
    %111 = arith.mulf %110, %109 : vector<2x128xf32>
    %cst_46 = arith.constant 5.000000e-01 : f32
    %112 = vector.broadcast %cst_46 : f32 to vector<2x128xf32>
    %113 = arith.addf %111, %112 : vector<2x128xf32>
    %114 = vector.extract_strided_slice %97 {offsets = [0, 256], sizes = [2, 128], strides = [1, 1]} : vector<2x512xf32> to vector<2x128xf32>
    %115 = math.tanh %114 : vector<2x128xf32>
    %116 = vector.extract_strided_slice %97 {offsets = [0, 384], sizes = [2, 128], strides = [1, 1]} : vector<2x512xf32> to vector<2x128xf32>
    %cst_47 = arith.constant 5.000000e-01 : f32
    %117 = vector.broadcast %cst_47 : f32 to vector<2x128xf32>
    %118 = arith.mulf %117, %116 : vector<2x128xf32>
    %119 = math.tanh %118 : vector<2x128xf32>
    %cst_48 = arith.constant 5.000000e-01 : f32
    %120 = vector.broadcast %cst_48 : f32 to vector<2x128xf32>
    %121 = arith.mulf %120, %119 : vector<2x128xf32>
    %cst_49 = arith.constant 5.000000e-01 : f32
    %122 = vector.broadcast %cst_49 : f32 to vector<2x128xf32>
    %123 = arith.addf %121, %122 : vector<2x128xf32>
    %124 = arith.mulf %113, %83 : vector<2x128xf32>
    %125 = arith.mulf %105, %115 : vector<2x128xf32>
    %126 = arith.addf %124, %125 : vector<2x128xf32>
    %127 = math.tanh %126 : vector<2x128xf32>
    %128 = arith.mulf %123, %127 : vector<2x128xf32>
    %129 = arith.truncf %128 : vector<2x128xf32> to vector<2x128xbf16>
    %130 = arith.index_cast %c2_i32 : i32 to index
    %c0_50 = arith.constant 0 : index
    %c0_51 = arith.constant 0 : index
    %131 = vector.load %arg4[%130, %c0_50, %c0_51] : memref<8x2x128xbf16, #tpu.memory_space<vmem>>, vector<1x2x128xbf16>
    %132 = vector.shape_cast %131 : vector<1x2x128xbf16> to vector<2x128xbf16>
    %133 = vector.shape_cast %129 : vector<2x128xbf16> to vector<1x2x128xbf16>
    tpu.vector_store %arg4[%130, %c0_50, %c0_51], %133 {strides = array<i32>} : memref<8x2x128xbf16, #tpu.memory_space<vmem>>, vector<1x2x128xbf16>,
    %c3_i32 = arith.constant 3 : i32
    %c0_52 = arith.constant 0 : index
    %c0_53 = arith.constant 0 : index
    %134 = vector.load %arg3[%c0_52, %c0_53] : memref<128x512xbf16, #tpu.memory_space<vmem>>, vector<128x512xbf16>
    %cst_54 = arith.constant dense<0.000000e+00> : vector<2x512xf32>
    %135 = tpu.matmul %129, %134, %cst_54 {dimension_numbers = #tpu.dot_dimension_numbers<[1], [0], [0], [1], [0, 0, 1, 1], [], []>} : vector<2x128xbf16>, vector<128x512xbf16>, vector<2x512xf32> -> vector<2x512xf32>
    %136 = arith.index_cast %c3_i32 : i32 to index
    %c0_55 = arith.constant 0 : index
    %c0_56 = arith.constant 0 : index
    %137 = vector.load %arg2[%136, %c0_55, %c0_56] : memref<8x2x512xbf16, #tpu.memory_space<vmem>>, vector<1x2x512xbf16>
    %138 = vector.shape_cast %137 : vector<1x2x512xbf16> to vector<2x512xbf16>
    %139 = arith.extf %138 : vector<2x512xbf16> to vector<2x512xf32>
    %140 = arith.addf %135, %139 : vector<2x512xf32>
    %141 = vector.extract_strided_slice %140 {offsets = [0, 0], sizes = [2, 128], strides = [1, 1]} : vector<2x512xf32> to vector<2x128xf32>
    %cst_57 = arith.constant 5.000000e-01 : f32
    %142 = vector.broadcast %cst_57 : f32 to vector<2x128xf32>
    %143 = arith.mulf %142, %141 : vector<2x128xf32>
    %144 = math.tanh %143 : vector<2x128xf32>
    %cst_58 = arith.constant 5.000000e-01 : f32
    %145 = vector.broadcast %cst_58 : f32 to vector<2x128xf32>
    %146 = arith.mulf %145, %144 : vector<2x128xf32>
    %cst_59 = arith.constant 5.000000e-01 : f32
    %147 = vector.broadcast %cst_59 : f32 to vector<2x128xf32>
    %148 = arith.addf %146, %147 : vector<2x128xf32>
    %149 = vector.extract_strided_slice %140 {offsets = [0, 128], sizes = [2, 128], strides = [1, 1]} : vector<2x512xf32> to vector<2x128xf32>
    %cst_60 = arith.constant 5.000000e-01 : f32
    %150 = vector.broadcast %cst_60 : f32 to vector<2x128xf32>
    %151 = arith.mulf %150, %149 : vector<2x128xf32>
    %152 = math.tanh %151 : vector<2x128xf32>
    %cst_61 = arith.constant 5.000000e-01 : f32
    %153 = vector.broadcast %cst_61 : f32 to vector<2x128xf32>
    %154 = arith.mulf %153, %152 : vector<2x128xf32>
    %cst_62 = arith.constant 5.000000e-01 : f32
    %155 = vector.broadcast %cst_62 : f32 to vector<2x128xf32>
    %156 = arith.addf %154, %155 : vector<2x128xf32>
    %157 = vector.extract_strided_slice %140 {offsets = [0, 256], sizes = [2, 128], strides = [1, 1]} : vector<2x512xf32> to vector<2x128xf32>
    %158 = math.tanh %157 : vector<2x128xf32>
    %159 = vector.extract_strided_slice %140 {offsets = [0, 384], sizes = [2, 128], strides = [1, 1]} : vector<2x512xf32> to vector<2x128xf32>
    %cst_63 = arith.constant 5.000000e-01 : f32
    %160 = vector.broadcast %cst_63 : f32 to vector<2x128xf32>
    %161 = arith.mulf %160, %159 : vector<2x128xf32>
    %162 = math.tanh %161 : vector<2x128xf32>
    %cst_64 = arith.constant 5.000000e-01 : f32
    %163 = vector.broadcast %cst_64 : f32 to vector<2x128xf32>
    %164 = arith.mulf %163, %162 : vector<2x128xf32>
    %cst_65 = arith.constant 5.000000e-01 : f32
    %165 = vector.broadcast %cst_65 : f32 to vector<2x128xf32>
    %166 = arith.addf %164, %165 : vector<2x128xf32>
    %167 = arith.mulf %156, %126 : vector<2x128xf32>
    %168 = arith.mulf %148, %158 : vector<2x128xf32>
    %169 = arith.addf %167, %168 : vector<2x128xf32>
    %170 = math.tanh %169 : vector<2x128xf32>
    %171 = arith.mulf %166, %170 : vector<2x128xf32>
    %172 = arith.truncf %171 : vector<2x128xf32> to vector<2x128xbf16>
    %173 = arith.index_cast %c3_i32 : i32 to index
    %c0_66 = arith.constant 0 : index
    %c0_67 = arith.constant 0 : index
    %174 = vector.load %arg4[%173, %c0_66, %c0_67] : memref<8x2x128xbf16, #tpu.memory_space<vmem>>, vector<1x2x128xbf16>
    %175 = vector.shape_cast %174 : vector<1x2x128xbf16> to vector<2x128xbf16>
    %176 = vector.shape_cast %172 : vector<2x128xbf16> to vector<1x2x128xbf16>
    tpu.vector_store %arg4[%173, %c0_66, %c0_67], %176 {strides = array<i32>} : memref<8x2x128xbf16, #tpu.memory_space<vmem>>, vector<1x2x128xbf16>,
    %c4_i32 = arith.constant 4 : i32
    %c0_68 = arith.constant 0 : index
    %c0_69 = arith.constant 0 : index
    %177 = vector.load %arg3[%c0_68, %c0_69] : memref<128x512xbf16, #tpu.memory_space<vmem>>, vector<128x512xbf16>
    %cst_70 = arith.constant dense<0.000000e+00> : vector<2x512xf32>
    %178 = tpu.matmul %172, %177, %cst_70 {dimension_numbers = #tpu.dot_dimension_numbers<[1], [0], [0], [1], [0, 0, 1, 1], [], []>} : vector<2x128xbf16>, vector<128x512xbf16>, vector<2x512xf32> -> vector<2x512xf32>
    %179 = arith.index_cast %c4_i32 : i32 to index
    %c0_71 = arith.constant 0 : index
    %c0_72 = arith.constant 0 : index
    %180 = vector.load %arg2[%179, %c0_71, %c0_72] : memref<8x2x512xbf16, #tpu.memory_space<vmem>>, vector<1x2x512xbf16>
    %181 = vector.shape_cast %180 : vector<1x2x512xbf16> to vector<2x512xbf16>
    %182 = arith.extf %181 : vector<2x512xbf16> to vector<2x512xf32>
    %183 = arith.addf %178, %182 : vector<2x512xf32>
    %184 = vector.extract_strided_slice %183 {offsets = [0, 0], sizes = [2, 128], strides = [1, 1]} : vector<2x512xf32> to vector<2x128xf32>
    %cst_73 = arith.constant 5.000000e-01 : f32
    %185 = vector.broadcast %cst_73 : f32 to vector<2x128xf32>
    %186 = arith.mulf %185, %184 : vector<2x128xf32>
    %187 = math.tanh %186 : vector<2x128xf32>
    %cst_74 = arith.constant 5.000000e-01 : f32
    %188 = vector.broadcast %cst_74 : f32 to vector<2x128xf32>
    %189 = arith.mulf %188, %187 : vector<2x128xf32>
    %cst_75 = arith.constant 5.000000e-01 : f32
    %190 = vector.broadcast %cst_75 : f32 to vector<2x128xf32>
    %191 = arith.addf %189, %190 : vector<2x128xf32>
    %192 = vector.extract_strided_slice %183 {offsets = [0, 128], sizes = [2, 128], strides = [1, 1]} : vector<2x512xf32> to vector<2x128xf32>
    %cst_76 = arith.constant 5.000000e-01 : f32
    %193 = vector.broadcast %cst_76 : f32 to vector<2x128xf32>
    %194 = arith.mulf %193, %192 : vector<2x128xf32>
    %195 = math.tanh %194 : vector<2x128xf32>
    %cst_77 = arith.constant 5.000000e-01 : f32
    %196 = vector.broadcast %cst_77 : f32 to vector<2x128xf32>
    %197 = arith.mulf %196, %195 : vector<2x128xf32>
    %cst_78 = arith.constant 5.000000e-01 : f32
    %198 = vector.broadcast %cst_78 : f32 to vector<2x128xf32>
    %199 = arith.addf %197, %198 : vector<2x128xf32>
    %200 = vector.extract_strided_slice %183 {offsets = [0, 256], sizes = [2, 128], strides = [1, 1]} : vector<2x512xf32> to vector<2x128xf32>
    %201 = math.tanh %200 : vector<2x128xf32>
    %202 = vector.extract_strided_slice %183 {offsets = [0, 384], sizes = [2, 128], strides = [1, 1]} : vector<2x512xf32> to vector<2x128xf32>
    %cst_79 = arith.constant 5.000000e-01 : f32
    %203 = vector.broadcast %cst_79 : f32 to vector<2x128xf32>
    %204 = arith.mulf %203, %202 : vector<2x128xf32>
    %205 = math.tanh %204 : vector<2x128xf32>
    %cst_80 = arith.constant 5.000000e-01 : f32
    %206 = vector.broadcast %cst_80 : f32 to vector<2x128xf32>
    %207 = arith.mulf %206, %205 : vector<2x128xf32>
    %cst_81 = arith.constant 5.000000e-01 : f32
    %208 = vector.broadcast %cst_81 : f32 to vector<2x128xf32>
    %209 = arith.addf %207, %208 : vector<2x128xf32>
    %210 = arith.mulf %199, %169 : vector<2x128xf32>
    %211 = arith.mulf %191, %201 : vector<2x128xf32>
    %212 = arith.addf %210, %211 : vector<2x128xf32>
    %213 = math.tanh %212 : vector<2x128xf32>
    %214 = arith.mulf %209, %213 : vector<2x128xf32>
    %215 = arith.truncf %214 : vector<2x128xf32> to vector<2x128xbf16>
    %216 = arith.index_cast %c4_i32 : i32 to index
    %c0_82 = arith.constant 0 : index
    %c0_83 = arith.constant 0 : index
    %217 = vector.load %arg4[%216, %c0_82, %c0_83] : memref<8x2x128xbf16, #tpu.memory_space<vmem>>, vector<1x2x128xbf16>
    %218 = vector.shape_cast %217 : vector<1x2x128xbf16> to vector<2x128xbf16>
    %219 = vector.shape_cast %215 : vector<2x128xbf16> to vector<1x2x128xbf16>
    tpu.vector_store %arg4[%216, %c0_82, %c0_83], %219 {strides = array<i32>} : memref<8x2x128xbf16, #tpu.memory_space<vmem>>, vector<1x2x128xbf16>,
    %c5_i32 = arith.constant 5 : i32
    %c0_84 = arith.constant 0 : index
    %c0_85 = arith.constant 0 : index
    %220 = vector.load %arg3[%c0_84, %c0_85] : memref<128x512xbf16, #tpu.memory_space<vmem>>, vector<128x512xbf16>
    %cst_86 = arith.constant dense<0.000000e+00> : vector<2x512xf32>
    %221 = tpu.matmul %215, %220, %cst_86 {dimension_numbers = #tpu.dot_dimension_numbers<[1], [0], [0], [1], [0, 0, 1, 1], [], []>} : vector<2x128xbf16>, vector<128x512xbf16>, vector<2x512xf32> -> vector<2x512xf32>
    %222 = arith.index_cast %c5_i32 : i32 to index
    %c0_87 = arith.constant 0 : index
    %c0_88 = arith.constant 0 : index
    %223 = vector.load %arg2[%222, %c0_87, %c0_88] : memref<8x2x512xbf16, #tpu.memory_space<vmem>>, vector<1x2x512xbf16>
    %224 = vector.shape_cast %223 : vector<1x2x512xbf16> to vector<2x512xbf16>
    %225 = arith.extf %224 : vector<2x512xbf16> to vector<2x512xf32>
    %226 = arith.addf %221, %225 : vector<2x512xf32>
    %227 = vector.extract_strided_slice %226 {offsets = [0, 0], sizes = [2, 128], strides = [1, 1]} : vector<2x512xf32> to vector<2x128xf32>
    %cst_89 = arith.constant 5.000000e-01 : f32
    %228 = vector.broadcast %cst_89 : f32 to vector<2x128xf32>
    %229 = arith.mulf %228, %227 : vector<2x128xf32>
    %230 = math.tanh %229 : vector<2x128xf32>
    %cst_90 = arith.constant 5.000000e-01 : f32
    %231 = vector.broadcast %cst_90 : f32 to vector<2x128xf32>
    %232 = arith.mulf %231, %230 : vector<2x128xf32>
    %cst_91 = arith.constant 5.000000e-01 : f32
    %233 = vector.broadcast %cst_91 : f32 to vector<2x128xf32>
    %234 = arith.addf %232, %233 : vector<2x128xf32>
    %235 = vector.extract_strided_slice %226 {offsets = [0, 128], sizes = [2, 128], strides = [1, 1]} : vector<2x512xf32> to vector<2x128xf32>
    %cst_92 = arith.constant 5.000000e-01 : f32
    %236 = vector.broadcast %cst_92 : f32 to vector<2x128xf32>
    %237 = arith.mulf %236, %235 : vector<2x128xf32>
    %238 = math.tanh %237 : vector<2x128xf32>
    %cst_93 = arith.constant 5.000000e-01 : f32
    %239 = vector.broadcast %cst_93 : f32 to vector<2x128xf32>
    %240 = arith.mulf %239, %238 : vector<2x128xf32>
    %cst_94 = arith.constant 5.000000e-01 : f32
    %241 = vector.broadcast %cst_94 : f32 to vector<2x128xf32>
    %242 = arith.addf %240, %241 : vector<2x128xf32>
    %243 = vector.extract_strided_slice %226 {offsets = [0, 256], sizes = [2, 128], strides = [1, 1]} : vector<2x512xf32> to vector<2x128xf32>
    %244 = math.tanh %243 : vector<2x128xf32>
    %245 = vector.extract_strided_slice %226 {offsets = [0, 384], sizes = [2, 128], strides = [1, 1]} : vector<2x512xf32> to vector<2x128xf32>
    %cst_95 = arith.constant 5.000000e-01 : f32
    %246 = vector.broadcast %cst_95 : f32 to vector<2x128xf32>
    %247 = arith.mulf %246, %245 : vector<2x128xf32>
    %248 = math.tanh %247 : vector<2x128xf32>
    %cst_96 = arith.constant 5.000000e-01 : f32
    %249 = vector.broadcast %cst_96 : f32 to vector<2x128xf32>
    %250 = arith.mulf %249, %248 : vector<2x128xf32>
    %cst_97 = arith.constant 5.000000e-01 : f32
    %251 = vector.broadcast %cst_97 : f32 to vector<2x128xf32>
    %252 = arith.addf %250, %251 : vector<2x128xf32>
    %253 = arith.mulf %242, %212 : vector<2x128xf32>
    %254 = arith.mulf %234, %244 : vector<2x128xf32>
    %255 = arith.addf %253, %254 : vector<2x128xf32>
    %256 = math.tanh %255 : vector<2x128xf32>
    %257 = arith.mulf %252, %256 : vector<2x128xf32>
    %258 = arith.truncf %257 : vector<2x128xf32> to vector<2x128xbf16>
    %259 = arith.index_cast %c5_i32 : i32 to index
    %c0_98 = arith.constant 0 : index
    %c0_99 = arith.constant 0 : index
    %260 = vector.load %arg4[%259, %c0_98, %c0_99] : memref<8x2x128xbf16, #tpu.memory_space<vmem>>, vector<1x2x128xbf16>
    %261 = vector.shape_cast %260 : vector<1x2x128xbf16> to vector<2x128xbf16>
    %262 = vector.shape_cast %258 : vector<2x128xbf16> to vector<1x2x128xbf16>
    tpu.vector_store %arg4[%259, %c0_98, %c0_99], %262 {strides = array<i32>} : memref<8x2x128xbf16, #tpu.memory_space<vmem>>, vector<1x2x128xbf16>,
    %c6_i32 = arith.constant 6 : i32
    %c0_100 = arith.constant 0 : index
    %c0_101 = arith.constant 0 : index
    %263 = vector.load %arg3[%c0_100, %c0_101] : memref<128x512xbf16, #tpu.memory_space<vmem>>, vector<128x512xbf16>
    %cst_102 = arith.constant dense<0.000000e+00> : vector<2x512xf32>
    %264 = tpu.matmul %258, %263, %cst_102 {dimension_numbers = #tpu.dot_dimension_numbers<[1], [0], [0], [1], [0, 0, 1, 1], [], []>} : vector<2x128xbf16>, vector<128x512xbf16>, vector<2x512xf32> -> vector<2x512xf32>
    %265 = arith.index_cast %c6_i32 : i32 to index
    %c0_103 = arith.constant 0 : index
    %c0_104 = arith.constant 0 : index
    %266 = vector.load %arg2[%265, %c0_103, %c0_104] : memref<8x2x512xbf16, #tpu.memory_space<vmem>>, vector<1x2x512xbf16>
    %267 = vector.shape_cast %266 : vector<1x2x512xbf16> to vector<2x512xbf16>
    %268 = arith.extf %267 : vector<2x512xbf16> to vector<2x512xf32>
    %269 = arith.addf %264, %268 : vector<2x512xf32>
    %270 = vector.extract_strided_slice %269 {offsets = [0, 0], sizes = [2, 128], strides = [1, 1]} : vector<2x512xf32> to vector<2x128xf32>
    %cst_105 = arith.constant 5.000000e-01 : f32
    %271 = vector.broadcast %cst_105 : f32 to vector<2x128xf32>
    %272 = arith.mulf %271, %270 : vector<2x128xf32>
    %273 = math.tanh %272 : vector<2x128xf32>
    %cst_106 = arith.constant 5.000000e-01 : f32
    %274 = vector.broadcast %cst_106 : f32 to vector<2x128xf32>
    %275 = arith.mulf %274, %273 : vector<2x128xf32>
    %cst_107 = arith.constant 5.000000e-01 : f32
    %276 = vector.broadcast %cst_107 : f32 to vector<2x128xf32>
    %277 = arith.addf %275, %276 : vector<2x128xf32>
    %278 = vector.extract_strided_slice %269 {offsets = [0, 128], sizes = [2, 128], strides = [1, 1]} : vector<2x512xf32> to vector<2x128xf32>
    %cst_108 = arith.constant 5.000000e-01 : f32
    %279 = vector.broadcast %cst_108 : f32 to vector<2x128xf32>
    %280 = arith.mulf %279, %278 : vector<2x128xf32>
    %281 = math.tanh %280 : vector<2x128xf32>
    %cst_109 = arith.constant 5.000000e-01 : f32
    %282 = vector.broadcast %cst_109 : f32 to vector<2x128xf32>
    %283 = arith.mulf %282, %281 : vector<2x128xf32>
    %cst_110 = arith.constant 5.000000e-01 : f32
    %284 = vector.broadcast %cst_110 : f32 to vector<2x128xf32>
    %285 = arith.addf %283, %284 : vector<2x128xf32>
    %286 = vector.extract_strided_slice %269 {offsets = [0, 256], sizes = [2, 128], strides = [1, 1]} : vector<2x512xf32> to vector<2x128xf32>
    %287 = math.tanh %286 : vector<2x128xf32>
    %288 = vector.extract_strided_slice %269 {offsets = [0, 384], sizes = [2, 128], strides = [1, 1]} : vector<2x512xf32> to vector<2x128xf32>
    %cst_111 = arith.constant 5.000000e-01 : f32
    %289 = vector.broadcast %cst_111 : f32 to vector<2x128xf32>
    %290 = arith.mulf %289, %288 : vector<2x128xf32>
    %291 = math.tanh %290 : vector<2x128xf32>
    %cst_112 = arith.constant 5.000000e-01 : f32
    %292 = vector.broadcast %cst_112 : f32 to vector<2x128xf32>
    %293 = arith.mulf %292, %291 : vector<2x128xf32>
    %cst_113 = arith.constant 5.000000e-01 : f32
    %294 = vector.broadcast %cst_113 : f32 to vector<2x128xf32>
    %295 = arith.addf %293, %294 : vector<2x128xf32>
    %296 = arith.mulf %285, %255 : vector<2x128xf32>
    %297 = arith.mulf %277, %287 : vector<2x128xf32>
    %298 = arith.addf %296, %297 : vector<2x128xf32>
    %299 = math.tanh %298 : vector<2x128xf32>
    %300 = arith.mulf %295, %299 : vector<2x128xf32>
    %301 = arith.truncf %300 : vector<2x128xf32> to vector<2x128xbf16>
    %302 = arith.index_cast %c6_i32 : i32 to index
    %c0_114 = arith.constant 0 : index
    %c0_115 = arith.constant 0 : index
    %303 = vector.load %arg4[%302, %c0_114, %c0_115] : memref<8x2x128xbf16, #tpu.memory_space<vmem>>, vector<1x2x128xbf16>
    %304 = vector.shape_cast %303 : vector<1x2x128xbf16> to vector<2x128xbf16>
    %305 = vector.shape_cast %301 : vector<2x128xbf16> to vector<1x2x128xbf16>
    tpu.vector_store %arg4[%302, %c0_114, %c0_115], %305 {strides = array<i32>} : memref<8x2x128xbf16, #tpu.memory_space<vmem>>, vector<1x2x128xbf16>,
    %c7_i32 = arith.constant 7 : i32
    %c0_116 = arith.constant 0 : index
    %c0_117 = arith.constant 0 : index
    %306 = vector.load %arg3[%c0_116, %c0_117] : memref<128x512xbf16, #tpu.memory_space<vmem>>, vector<128x512xbf16>
    %cst_118 = arith.constant dense<0.000000e+00> : vector<2x512xf32>
    %307 = tpu.matmul %301, %306, %cst_118 {dimension_numbers = #tpu.dot_dimension_numbers<[1], [0], [0], [1], [0, 0, 1, 1], [], []>} : vector<2x128xbf16>, vector<128x512xbf16>, vector<2x512xf32> -> vector<2x512xf32>
    %308 = arith.index_cast %c7_i32 : i32 to index
    %c0_119 = arith.constant 0 : index
    %c0_120 = arith.constant 0 : index
    %309 = vector.load %arg2[%308, %c0_119, %c0_120] : memref<8x2x512xbf16, #tpu.memory_space<vmem>>, vector<1x2x512xbf16>
    %310 = vector.shape_cast %309 : vector<1x2x512xbf16> to vector<2x512xbf16>
    %311 = arith.extf %310 : vector<2x512xbf16> to vector<2x512xf32>
    %312 = arith.addf %307, %311 : vector<2x512xf32>
    %313 = vector.extract_strided_slice %312 {offsets = [0, 0], sizes = [2, 128], strides = [1, 1]} : vector<2x512xf32> to vector<2x128xf32>
    %cst_121 = arith.constant 5.000000e-01 : f32
    %314 = vector.broadcast %cst_121 : f32 to vector<2x128xf32>
    %315 = arith.mulf %314, %313 : vector<2x128xf32>
    %316 = math.tanh %315 : vector<2x128xf32>
    %cst_122 = arith.constant 5.000000e-01 : f32
    %317 = vector.broadcast %cst_122 : f32 to vector<2x128xf32>
    %318 = arith.mulf %317, %316 : vector<2x128xf32>
    %cst_123 = arith.constant 5.000000e-01 : f32
    %319 = vector.broadcast %cst_123 : f32 to vector<2x128xf32>
    %320 = arith.addf %318, %319 : vector<2x128xf32>
    %321 = vector.extract_strided_slice %312 {offsets = [0, 128], sizes = [2, 128], strides = [1, 1]} : vector<2x512xf32> to vector<2x128xf32>
    %cst_124 = arith.constant 5.000000e-01 : f32
    %322 = vector.broadcast %cst_124 : f32 to vector<2x128xf32>
    %323 = arith.mulf %322, %321 : vector<2x128xf32>
    %324 = math.tanh %323 : vector<2x128xf32>
    %cst_125 = arith.constant 5.000000e-01 : f32
    %325 = vector.broadcast %cst_125 : f32 to vector<2x128xf32>
    %326 = arith.mulf %325, %324 : vector<2x128xf32>
    %cst_126 = arith.constant 5.000000e-01 : f32
    %327 = vector.broadcast %cst_126 : f32 to vector<2x128xf32>
    %328 = arith.addf %326, %327 : vector<2x128xf32>
    %329 = vector.extract_strided_slice %312 {offsets = [0, 256], sizes = [2, 128], strides = [1, 1]} : vector<2x512xf32> to vector<2x128xf32>
    %330 = math.tanh %329 : vector<2x128xf32>
    %331 = vector.extract_strided_slice %312 {offsets = [0, 384], sizes = [2, 128], strides = [1, 1]} : vector<2x512xf32> to vector<2x128xf32>
    %cst_127 = arith.constant 5.000000e-01 : f32
    %332 = vector.broadcast %cst_127 : f32 to vector<2x128xf32>
    %333 = arith.mulf %332, %331 : vector<2x128xf32>
    %334 = math.tanh %333 : vector<2x128xf32>
    %cst_128 = arith.constant 5.000000e-01 : f32
    %335 = vector.broadcast %cst_128 : f32 to vector<2x128xf32>
    %336 = arith.mulf %335, %334 : vector<2x128xf32>
    %cst_129 = arith.constant 5.000000e-01 : f32
    %337 = vector.broadcast %cst_129 : f32 to vector<2x128xf32>
    %338 = arith.addf %336, %337 : vector<2x128xf32>
    %339 = arith.mulf %328, %298 : vector<2x128xf32>
    %340 = arith.mulf %320, %330 : vector<2x128xf32>
    %341 = arith.addf %339, %340 : vector<2x128xf32>
    %342 = math.tanh %341 : vector<2x128xf32>
    %343 = arith.mulf %338, %342 : vector<2x128xf32>
    %344 = arith.truncf %343 : vector<2x128xf32> to vector<2x128xbf16>
    %345 = arith.index_cast %c7_i32 : i32 to index
    %c0_130 = arith.constant 0 : index
    %c0_131 = arith.constant 0 : index
    %346 = vector.load %arg4[%345, %c0_130, %c0_131] : memref<8x2x128xbf16, #tpu.memory_space<vmem>>, vector<1x2x128xbf16>
    %347 = vector.shape_cast %346 : vector<1x2x128xbf16> to vector<2x128xbf16>
    %348 = vector.shape_cast %344 : vector<2x128xbf16> to vector<1x2x128xbf16>
    tpu.vector_store %arg4[%345, %c0_130, %c0_131], %348 {strides = array<i32>} : memref<8x2x128xbf16, #tpu.memory_space<vmem>>, vector<1x2x128xbf16>,
    %c8_i32 = arith.constant 8 : i32
    %c0_132 = arith.constant 0 : index
    %c0_133 = arith.constant 0 : index
    %349 = vector.load %arg5[%c0_132, %c0_133] : memref<2x128xbf16, #tpu.memory_space<vmem>>, vector<2x128xbf16>
    tpu.vector_store %arg5[%c0_132, %c0_133], %344 {strides = array<i32>} : memref<2x128xbf16, #tpu.memory_space<vmem>>, vector<2x128xbf16>,
    %c0_134 = arith.constant 0 : index
    %c0_135 = arith.constant 0 : index
    %350 = vector.load %arg6[%c0_134, %c0_135] : memref<2x128xf32, #tpu.memory_space<vmem>>, vector<2x128xf32>
    tpu.vector_store %arg6[%c0_134, %c0_135], %341 {strides = array<i32>} : memref<2x128xf32, #tpu.memory_space<vmem>>, vector<2x128xf32>,
    return
  }
  func.func @transform_0(%arg0: i32, %arg1: i32) -> (i32, i32, i32) {
    %c0_i32 = arith.constant 0 : i32
    %c0_i32_0 = arith.constant 0 : i32
    return %arg1, %arg0, %c0_i32 : i32, i32, i32
  }
  func.func @transform_1(%arg0: i32, %arg1: i32) -> (i32, i32) {
    %c0_i32 = arith.constant 0 : i32
    %c0_i32_0 = arith.constant 0 : i32
    %c0_i32_1 = arith.constant 0 : i32
    return %c0_i32, %c0_i32_0 : i32, i32
  }
  func.func @transform_2(%arg0: i32, %arg1: i32) -> (i32, i32, i32) {
    %c0_i32 = arith.constant 0 : i32
    %c0_i32_0 = arith.constant 0 : i32
    return %arg1, %arg0, %c0_i32 : i32, i32, i32
  }
}

</mosaic_0001>

<llo_original>
// kernel: language_model_forward.4
$region0: #{language_model_forward.4}
  #allocation0 [shape = 'u32[]', space=smem, size = 0x4, offset = 0x4, fixed_abs, tag = 'smem constant byte address 0x4 - core index']
  #allocation1 [shape = 'u32[144,128]{1,0:T(1,128)}', space=vmem, size = 0x12000, scoped, tag = 'internal scratch']
  %s0 = inlined_call_operand.vmem [shape: bf16[8,32], index: 0, kind: input, shape index: {}]
  %s1 = inlined_call_operand.vmem [shape: bf16[32,128], index: 1, kind: input, shape index: {}]
  %s2 = inlined_call_operand.vmem [shape: f32[1,128], index: 2, kind: input, shape index: {}]
  %s3 = inlined_call_operand.vmem [shape: bf16[8,128], index: 3, kind: output, shape index: {}]
  %s4 = sld [smem:[#allocation0]]
  $region22: #{language_model_forward.4} parent=0
    _
  %s6 = ssub.s32 1, %s4
  %s7 = scalar_select 0, %s6, %s4
  // Predicated region
  $region2: #{language_model_forward.4} parent=0 // pred_check
    _
  $region3: #{language_model_forward.4} parent=0 // pred_check_branch
    %9 = sbr.rel (0) target = $region5
  $region4: #{language_model_forward.4} parent=0 // pred_region
    _
  $region5: #{language_model_forward.4} parent=0 // pred_fallthru
    _
  // Predicated region
  $region6: #{language_model_forward.4} parent=0 // pred_check
    _
  $region7: #{language_model_forward.4} parent=0 // pred_check_branch
    %11 = sbr.rel (0) target = $region9
  $region8: #{language_model_forward.4} parent=0 // pred_region
    _
  $region9: #{language_model_forward.4} parent=0 // pred_fallthru
    _
  // Predicated region
  $region10: #{language_model_forward.4} parent=0 // pred_check
    _
  $region11: #{language_model_forward.4} parent=0 // pred_check_branch
    %13 = sbr.rel (0) target = $region13
  $region12: #{language_model_forward.4} parent=0 // pred_region
    _
  $region13: #{language_model_forward.4} parent=0 // pred_fallthru
    _
  %v15 = vld [vmem:[%s0] sm:$0xf]
  %v16 = vld [vmem:[%s1] sm:$0xf]
  %v17 = vld [vmem:[%s1 + $0x4] sm:$0xf]
  %v18 = vld [vmem:[%s1 + $0x8] sm:$0xf]
  %v19 = vld [vmem:[%s1 + $0xc] sm:$0xf]
  %v20 = vld [vmem:[%s2] sm:$0x1]
  %v22 = vlaneseq
  %v23 = vshrl.u32 %v22, 7
  %v24 = vsub.s32 0, %v23
  %v25 = vrot.slane %v20, %v24
  %v31 = vunpack.c.l.b16 %v16
  %v32 = vunpack.c.l.b16 %v17
  %v33 = vunpack.c.l.b16 %v18
  %v34 = vunpack.c.l.b16 %v19
  %v35 = vpack.c.b16 %v32, %v31
  %v36 = vpack.c.b16 %v34, %v33
  %vm39 = vcmask 261120
  %v41 = vsel %vm39, %v15, 0
  %43 = vmatprep.subr.bf16.mxu0 0
  %44 = vmatpush1.bf16.msra.mxu0 %v35
  %45 = vmatprep.subr.bf16.mxu0 0
  %46 = vmatpush1.bf16.msra.mxu0 %v36
  %47 = vmatprep.subr.bf16.mxu0 0
  %48 = vmatpush1.bf16.msra.mxu0 0
  %49 = vmatprep.subr.bf16.mxu0 0
  %50 = vmatpush1.bf16.msra.mxu0 0
  %51 = vmatprep.subr.bf16.mxu0 0
  %52 = vmatpush1.bf16.msra.mxu0 0
  %53 = vmatprep.subr.bf16.mxu0 0
  %54 = vmatpush1.bf16.msra.mxu0 0
  %55 = vmatprep.subr.bf16.mxu0 0
  %56 = vmatpush1.bf16.msra.mxu0 0
  %57 = vmatprep.subr.bf16.mxu0 0
  %58 = vmatpush1.bf16.msra.mxu0 0
  %59 = vmatprep.subr.bf16.mxu0 0
  %60 = vmatpush1.bf16.msra.mxu0 0
  %61 = vmatprep.subr.bf16.mxu0 0
  %62 = vmatpush1.bf16.msra.mxu0 0
  %63 = vmatprep.subr.bf16.mxu0 0
  %64 = vmatpush1.bf16.msra.mxu0 0
  %65 = vmatprep.subr.bf16.mxu0 0
  %66 = vmatpush1.bf16.msra.mxu0 0
  %67 = vmatprep.subr.bf16.mxu0 0
  %68 = vmatpush1.bf16.msra.mxu0 0
  %69 = vmatprep.subr.bf16.mxu0 0
  %70 = vmatpush1.bf16.msra.mxu0 0
  %71 = vmatprep.subr.bf16.mxu0 0
  %72 = vmatpush1.bf16.msra.mxu0 0
  %73 = vmatprep.subr.bf16.mxu0 0
  %74 = vmatpush1.bf16.msra.mxu0 0
  %75 = vmatprep.mubr.bf16.mxu0 0
  %76 = vmatmul.mubr.bf16.gmra.mrb[0].mxu0 %v41
  %v77 = vpop.f32.mrb[0].mxu0
  %v78 = vadd.f32 %v25, %v77
  %v79 = vpop.f32.mrb[0].mxu0
  %v80 = vpop.f32.mrb[0].mxu0
  %v81 = vpop.f32.mrb[0].mxu0
  %82 = vdwg.mxu0
  %v83 = vmax.f32 %v78, 0.0
  %v84 = vpack.c.bf16 %v83, %v83
  %85 = vst [vmem:[%s3] sm:$0xf] %v84
  // Predicated region
  $region14: #{language_model_forward.4} parent=0 // pred_check
    _
  $region15: #{language_model_forward.4} parent=0 // pred_check_branch
    %87 = sbr.rel (0) target = $region17
  $region16: #{language_model_forward.4} parent=0 // pred_region
    _
  $region17: #{language_model_forward.4} parent=0 // pred_fallthru
    _
  // Predicated region
  $region18: #{language_model_forward.4} parent=0 // pred_check
    _
  $region19: #{language_model_forward.4} parent=0 // pred_check_branch
    %89 = sbr.rel (0) target = $region21
  $region20: #{language_model_forward.4} parent=0 // pred_region
    _
  $region21: #{language_model_forward.4} parent=0 // pred_fallthru
    _

// kernel: language_model_forward.7
$region0: #{language_model_forward.7}
  #allocation0 [shape = 'u32[]', space=smem, size = 0x4, offset = 0x4, fixed_abs, tag = 'smem constant byte address 0x4 - core index']
  #allocation1 [shape = 'u32[144,128]{1,0:T(1,128)}', space=vmem, size = 0x12000, scoped, tag = 'internal scratch']
  %s0 = inlined_call_operand.hbm [shape: bf16[16,128], index: 0, kind: input, shape index: {}]
  %s1 = inlined_call_operand.hbm [shape: bf16[128,128], index: 1, kind: input, shape index: {}]
  %s2 = inlined_call_operand.hbm [shape: f32[1,128], index: 2, kind: input, shape index: {}]
  %s3 = inlined_call_operand.hbm [shape: f32[16,128], index: 3, kind: output, shape index: {}]
  %s4 = sld [smem:[#allocation0]]
  $region34: #{language_model_forward.7} parent=0
    _
  %s6 = ssub.s32 1, %s4
  %s7 = scalar_select 0, %s6, %s4
  $region1: #{language_model_forward.7} parent=0
    #allocation2 [shape = 'u8[4096]{0}', space=vmem, size = 0x1000, scoped, tag = 'input window, operand 0, single buffered']
    #allocation3 [shape = 's32[1]{0}', space=sflag, size = 0x4, scoped, tag = 'scoped memory for language_model_forward.7']
    #allocation4 [shape = 's32[1]{0}', space=sflag, size = 0x4, scoped, tag = 'scoped memory for language_model_forward.7']
    #allocation5 [shape = 'u8[32768]{0}', space=vmem, size = 0x8000, scoped, tag = 'input window, operand 1, single buffered']
    #allocation6 [shape = 's32[1]{0}', space=sflag, size = 0x4, scoped, tag = 'scoped memory for language_model_forward.7']
    #allocation7 [shape = 'u8[512]{0}', space=vmem, size = 0x400, scoped, tag = 'input window, operand 2, single buffered']
    #allocation8 [shape = 'u8[8192]{0}', space=vmem, size = 0x2000, scoped, tag = 'output window, operand 0, single buffered']
    %8 = vsyncpa [#allocation3], 0
    %9 = vsyncpa [#allocation6], 0
    %10 = vsyncpa [#allocation4], 0
    // Predicated region
    $region2: #{language_model_forward.7} parent=1 // pred_check
      _
    $region3: #{language_model_forward.7} parent=1 // pred_check_branch
      %12 = sbr.rel (0) target = $region5
    $region4: #{language_model_forward.7} parent=1 // pred_region
      %s14 = ssub.s32 128, 128
      %15 = vsyncadd [#allocation3], %s14
      %s16 = sshll.u32 [#allocation2], 4
      %s17 = int_to_ptr.vmem [resolvable:$true] %s16
      %22 = dma.hbm_to_vmem [thread:$0]  %s0, 128, %s17, [#allocation3], 64, 64, 4
    $region5: #{language_model_forward.7} parent=1 // pred_fallthru
      _
    // Predicated region
    $region6: #{language_model_forward.7} parent=1 // pred_check
      _
    $region7: #{language_model_forward.7} parent=1 // pred_check_branch
      %24 = sbr.rel (0) target = $region9
    $region8: #{language_model_forward.7} parent=1 // pred_region
      %s26 = ssub.s32 1024, 1024
      %27 = vsyncadd [#allocation6], %s26
      %s28 = sshll.u32 [#allocation5], 4
      %s29 = int_to_ptr.vmem [resolvable:$true] %s28
      %34 = dma.hbm_to_vmem [thread:$0]  %s1, 1024, %s29, [#allocation6], 64, 64, 4
    $region9: #{language_model_forward.7} parent=1 // pred_fallthru
      _
    // Predicated region
    $region10: #{language_model_forward.7} parent=1 // pred_check
      _
    $region11: #{language_model_forward.7} parent=1 // pred_check_branch
      %36 = sbr.rel (0) target = $region13
    $region12: #{language_model_forward.7} parent=1 // pred_region
      %s38 = ssub.s32 16, 16
      %39 = vsyncadd [#allocation6], %s38
      %s41 = sshll.u32 [#allocation7], 4
      %s42 = int_to_ptr.vmem [resolvable:$true] %s41
      %44 = dma.hbm_to_vmem [thread:$0]  %s2, 16, %s42, [#allocation6]
    $region13: #{language_model_forward.7} parent=1 // pred_fallthru
      _
    // Predicated region
    $region14: #{language_model_forward.7} parent=1 // pred_check
      _
    $region15: #{language_model_forward.7} parent=1 // pred_check_branch
      %46 = sbr.rel (0) target = $region17
    $region16: #{language_model_forward.7} parent=1 // pred_region
      %47 = dma.done [#allocation3], 128
    $region17: #{language_model_forward.7} parent=1 // pred_fallthru
      _
    // Predicated region
    $region18: #{language_model_forward.7} parent=1 // pred_check
      _
    $region19: #{language_model_forward.7} parent=1 // pred_check_branch
      %49 = sbr.rel (0) target = $region21
    $region20: #{language_model_forward.7} parent=1 // pred_region
      %50 = dma.done [#allocation6], 1024
    $region21: #{language_model_forward.7} parent=1 // pred_fallthru
      _
    // Predicated region
    $region22: #{language_model_forward.7} parent=1 // pred_check
      _
    $region23: #{language_model_forward.7} parent=1 // pred_check_branch
      %52 = sbr.rel (0) target = $region25
    $region24: #{language_model_forward.7} parent=1 // pred_region
      %53 = dma.done [#allocation6], 16
    $region25: #{language_model_forward.7} parent=1 // pred_fallthru
      _
    %v55 = vld [vmem:[#allocation2] sm:$0xf]
    %v56 = vld [vmem:[#allocation2 + $0x4] sm:$0xf]
    %v57 = vld [vmem:[#allocation5] sm:$0xf]
    %v58 = vld [vmem:[#allocation5 + $0x4] sm:$0xf]
    %v59 = vld [vmem:[#allocation5 + $0x8] sm:$0xf]
    %v60 = vld [vmem:[#allocation5 + $0xc] sm:$0xf]
    %v61 = vld [vmem:[#allocation5 + $0x10] sm:$0xf]
    %v62 = vld [vmem:[#allocation5 + $0x14] sm:$0xf]
    %v63 = vld [vmem:[#allocation5 + $0x18] sm:$0xf]
    %v64 = vld [vmem:[#allocation5 + $0x1c] sm:$0xf]
    %v65 = vld [vmem:[#allocation5 + $0x20] sm:$0xf]
    %v66 = vld [vmem:[#allocation5 + $0x24] sm:$0xf]
    %v67 = vld [vmem:[#allocation5 + $0x28] sm:$0xf]
    %v68 = vld [vmem:[#allocation5 + $0x2c] sm:$0xf]
    %v69 = vld [vmem:[#allocation5 + $0x30] sm:$0xf]
    %v70 = vld [vmem:[#allocation5 + $0x34] sm:$0xf]
    %v71 = vld [vmem:[#allocation5 + $0x38] sm:$0xf]
    %v72 = vld [vmem:[#allocation5 + $0x3c] sm:$0xf]
    %v73 = vld [vmem:[#allocation7] sm:$0x1]
    %v75 = vlaneseq
    %v76 = vshrl.u32 %v75, 7
    %v77 = vsub.s32 0, %v76
    %v78 = vrot.slane %v73, %v77
    %v82 = vunpack.c.l.b16 %v55
    %v83 = vunpack.c.l.b16 %v56
    %v84 = vpack.c.b16 %v83, %v82
    %v102 = vunpack.c.l.b16 %v57
    %v103 = vunpack.c.l.b16 %v58
    %v104 = vunpack.c.l.b16 %v59
    %v105 = vunpack.c.l.b16 %v60
    %v106 = vunpack.c.l.b16 %v61
    %v107 = vunpack.c.l.b16 %v62
    %v108 = vunpack.c.l.b16 %v63
    %v109 = vunpack.c.l.b16 %v64
    %v110 = vunpack.c.l.b16 %v65
    %v111 = vunpack.c.l.b16 %v66
    %v112 = vunpack.c.l.b16 %v67
    %v113 = vunpack.c.l.b16 %v68
    %v114 = vunpack.c.l.b16 %v69
    %v115 = vunpack.c.l.b16 %v70
    %v116 = vunpack.c.l.b16 %v71
    %v117 = vunpack.c.l.b16 %v72
    %v118 = vpack.c.b16 %v103, %v102
    %v119 = vpack.c.b16 %v105, %v104
    %v120 = vpack.c.b16 %v107, %v106
    %v121 = vpack.c.b16 %v109, %v108
    %v122 = vpack.c.b16 %v111, %v110
    %v123 = vpack.c.b16 %v113, %v112
    %v124 = vpack.c.b16 %v115, %v114
    %v125 = vpack.c.b16 %v117, %v116
    %134 = vmatprep.subr.bf16.mxu0 0
    %135 = vmatpush1.bf16.msra.mxu0 %v118
    %136 = vmatprep.subr.bf16.mxu0 0
    %137 = vmatpush1.bf16.msra.mxu0 %v119
    %138 = vmatprep.subr.bf16.mxu0 0
    %139 = vmatpush1.bf16.msra.mxu0 %v120
    %140 = vmatprep.subr.bf16.mxu0 0
    %141 = vmatpush1.bf16.msra.mxu0 %v121
    %142 = vmatprep.subr.bf16.mxu0 0
    %143 = vmatpush1.bf16.msra.mxu0 %v122
    %144 = vmatprep.subr.bf16.mxu0 0
    %145 = vmatpush1.bf16.msra.mxu0 %v123
    %146 = vmatprep.subr.bf16.mxu0 0
    %147 = vmatpush1.bf16.msra.mxu0 %v124
    %148 = vmatprep.subr.bf16.mxu0 0
    %149 = vmatpush1.bf16.msra.mxu0 %v125
    %150 = vmatprep.subr.bf16.mxu0 0
    %151 = vmatpush1.bf16.msra.mxu0 0
    %152 = vmatprep.subr.bf16.mxu0 0
    %153 = vmatpush1.bf16.msra.mxu0 0
    %154 = vmatprep.subr.bf16.mxu0 0
    %155 = vmatpush1.bf16.msra.mxu0 0
    %156 = vmatprep.subr.bf16.mxu0 0
    %157 = vmatpush1.bf16.msra.mxu0 0
    %158 = vmatprep.subr.bf16.mxu0 0
    %159 = vmatpush1.bf16.msra.mxu0 0
    %160 = vmatprep.subr.bf16.mxu0 0
    %161 = vmatpush1.bf16.msra.mxu0 0
    %162 = vmatprep.subr.bf16.mxu0 0
    %163 = vmatpush1.bf16.msra.mxu0 0
    %164 = vmatprep.subr.bf16.mxu0 0
    %165 = vmatpush1.bf16.msra.mxu0 0
    %166 = vmatprep.mubr.bf16.mxu0 0
    %167 = vmatmul.mubr.bf16.gmra.mrb[0].mxu0 %v84
    %v168 = vpop.f32.mrb[0].mxu0
    %v169 = vadd.f32 %v78, %v168
    %v170 = vpop.f32.mrb[0].mxu0
    %v171 = vpop.f32.mrb[0].mxu0
    %v172 = vadd.f32 %v78, %v171
    %v173 = vpop.f32.mrb[0].mxu0
    %174 = vdwg.mxu0
    %175 = vst [vmem:[#allocation8] sm:$0xff] %v169
    %176 = vst [vmem:[#allocation8 + $0x8] sm:$0xff] %v172
    // Predicated region
    $region26: #{language_model_forward.7} parent=1 // pred_check
      _
    $region27: #{language_model_forward.7} parent=1 // pred_check_branch
      %178 = sbr.rel (0) target = $region29
    $region28: #{language_model_forward.7} parent=1 // pred_region
      %s180 = ssub.s32 256, 256
      %181 = vsyncadd [#allocation4], %s180
      %s182 = sshll.u32 [#allocation8], 4
      %s183 = int_to_ptr.vmem [resolvable:$true] %s182
      %188 = dma.vmem_to_hbm [thread:$0]  %s183, 256, %s3, [#allocation4], 128, 128, 8
    $region29: #{language_model_forward.7} parent=1 // pred_fallthru
      _
    // Predicated region
    $region30: #{language_model_forward.7} parent=1 // pred_check
      _
    $region31: #{language_model_forward.7} parent=1 // pred_check_branch
      %190 = sbr.rel (0) target = $region33
    $region32: #{language_model_forward.7} parent=1 // pred_region
      %191 = dma.done [#allocation4], 256
    $region33: #{language_model_forward.7} parent=1 // pred_fallthru
      _
    %192 = vsyncpa [#allocation3], 1
    %193 = vsyncpa [#allocation6], 1
    %194 = vsyncpa [#allocation4], 1

// kernel: language_model_forward.5
$region0: #{language_model_forward.5}
  #allocation0 [shape = 'u32[]', space=smem, size = 0x4, offset = 0x4, fixed_abs, tag = 'smem constant byte address 0x4 - core index']
  #allocation1 [shape = 'u32[144,128]{1,0:T(1,128)}', space=vmem, size = 0x12000, scoped, tag = 'internal scratch']
  %s0 = inlined_call_operand.hbm [shape: bf16[16,128], index: 0, kind: input, shape index: {}]
  %s1 = inlined_call_operand.hbm [shape: bf16[128,512], index: 1, kind: input, shape index: {}]
  %s2 = inlined_call_operand.hbm [shape: f32[1,512], index: 2, kind: input, shape index: {}]
  %s3 = inlined_call_operand.hbm [shape: bf16[16,512], index: 3, kind: output, shape index: {}]
  %s4 = sld [smem:[#allocation0]]
  $region34: #{language_model_forward.5} parent=0
    _
  %s6 = ssub.s32 1, %s4
  %s7 = scalar_select 0, %s6, %s4
  $region1: #{language_model_forward.5} parent=0
    #allocation2 [shape = 'u8[4096]{0}', space=vmem, size = 0x1000, scoped, tag = 'input window, operand 0, single buffered']
    #allocation3 [shape = 's32[1]{0}', space=sflag, size = 0x4, scoped, tag = 'scoped memory for language_model_forward.5']
    #allocation4 [shape = 's32[1]{0}', space=sflag, size = 0x4, scoped, tag = 'scoped memory for language_model_forward.5']
    #allocation5 [shape = 'u8[131072]{0}', space=vmem, size = 0x20000, scoped, tag = 'input window, operand 1, single buffered']
    #allocation6 [shape = 's32[1]{0}', space=sflag, size = 0x4, scoped, tag = 'scoped memory for language_model_forward.5']
    #allocation7 [shape = 'u8[2048]{0}', space=vmem, size = 0x800, scoped, tag = 'input window, operand 2, single buffered']
    #allocation8 [shape = 'u8[16384]{0}', space=vmem, size = 0x4000, scoped, tag = 'output window, operand 0, single buffered']
    %8 = vsyncpa [#allocation3], 0
    %9 = vsyncpa [#allocation6], 0
    %10 = vsyncpa [#allocation4], 0
    // Predicated region
    $region2: #{language_model_forward.5} parent=1 // pred_check
      _
    $region3: #{language_model_forward.5} parent=1 // pred_check_branch
      %12 = sbr.rel (0) target = $region5
    $region4: #{language_model_forward.5} parent=1 // pred_region
      %s14 = ssub.s32 128, 128
      %15 = vsyncadd [#allocation3], %s14
      %s16 = sshll.u32 [#allocation2], 4
      %s17 = int_to_ptr.vmem [resolvable:$true] %s16
      %22 = dma.hbm_to_vmem [thread:$0]  %s0, 128, %s17, [#allocation3], 64, 64, 4
    $region5: #{language_model_forward.5} parent=1 // pred_fallthru
      _
    // Predicated region
    $region6: #{language_model_forward.5} parent=1 // pred_check
      _
    $region7: #{language_model_forward.5} parent=1 // pred_check_branch
      %24 = sbr.rel (0) target = $region9
    $region8: #{language_model_forward.5} parent=1 // pred_region
      %s26 = ssub.s32 4096, 4096
      %27 = vsyncadd [#allocation6], %s26
      %s28 = sshll.u32 [#allocation5], 4
      %s29 = int_to_ptr.vmem [resolvable:$true] %s28
      %34 = dma.hbm_to_vmem [thread:$0]  %s1, 4096, %s29, [#allocation6], 256, 256, 16
    $region9: #{language_model_forward.5} parent=1 // pred_fallthru
      _
    // Predicated region
    $region10: #{language_model_forward.5} parent=1 // pred_check
      _
    $region11: #{language_model_forward.5} parent=1 // pred_check_branch
      %36 = sbr.rel (0) target = $region13
    $region12: #{language_model_forward.5} parent=1 // pred_region
      %s38 = ssub.s32 64, 64
      %39 = vsyncadd [#allocation6], %s38
      %s41 = sshll.u32 [#allocation7], 4
      %s42 = int_to_ptr.vmem [resolvable:$true] %s41
      %44 = dma.hbm_to_vmem [thread:$0]  %s2, 64, %s42, [#allocation6]
    $region13: #{language_model_forward.5} parent=1 // pred_fallthru
      _
    // Predicated region
    $region14: #{language_model_forward.5} parent=1 // pred_check
      _
    $region15: #{language_model_forward.5} parent=1 // pred_check_branch
      %46 = sbr.rel (0) target = $region17
    $region16: #{language_model_forward.5} parent=1 // pred_region
      %47 = dma.done [#allocation3], 128
    $region17: #{language_model_forward.5} parent=1 // pred_fallthru
      _
    // Predicated region
    $region18: #{language_model_forward.5} parent=1 // pred_check
      _
    $region19: #{language_model_forward.5} parent=1 // pred_check_branch
      %49 = sbr.rel (0) target = $region21
    $region20: #{language_model_forward.5} parent=1 // pred_region
      %50 = dma.done [#allocation6], 4096
    $region21: #{language_model_forward.5} parent=1 // pred_fallthru
      _
    // Predicated region
    $region22: #{language_model_forward.5} parent=1 // pred_check
      _
    $region23: #{language_model_forward.5} parent=1 // pred_check_branch
      %52 = sbr.rel (0) target = $region25
    $region24: #{language_model_forward.5} parent=1 // pred_region
      %53 = dma.done [#allocation6], 64
    $region25: #{language_model_forward.5} parent=1 // pred_fallthru
      _
    %v55 = vld [vmem:[#allocation2] sm:$0xf]
    %v56 = vld [vmem:[#allocation2 + $0x4] sm:$0xf]
    %v57 = vld [vmem:[#allocation5] sm:$0xff]
    %v58 = vld [vmem:[#allocation5 + $0x8] sm:$0xff]
    %v59 = vld [vmem:[#allocation5 + $0x10] sm:$0xff]
    %v60 = vld [vmem:[#allocation5 + $0x18] sm:$0xff]
    %v61 = vld [vmem:[#allocation5 + $0x20] sm:$0xff]
    %v62 = vld [vmem:[#allocation5 + $0x28] sm:$0xff]
    %v63 = vld [vmem:[#allocation5 + $0x30] sm:$0xff]
    %v64 = vld [vmem:[#allocation5 + $0x38] sm:$0xff]
    %v65 = vld [vmem:[#allocation5 + $0x40] sm:$0xff]
    %v66 = vld [vmem:[#allocation5 + $0x48] sm:$0xff]
    %v67 = vld [vmem:[#allocation5 + $0x50] sm:$0xff]
    %v68 = vld [vmem:[#allocation5 + $0x58] sm:$0xff]
    %v69 = vld [vmem:[#allocation5 + $0x60] sm:$0xff]
    %v70 = vld [vmem:[#allocation5 + $0x68] sm:$0xff]
    %v71 = vld [vmem:[#allocation5 + $0x70] sm:$0xff]
    %v72 = vld [vmem:[#allocation5 + $0x78] sm:$0xff]
    %v73 = vld [vmem:[#allocation5 + $0x80] sm:$0xff]
    %v74 = vld [vmem:[#allocation5 + $0x88] sm:$0xff]
    %v75 = vld [vmem:[#allocation5 + $0x90] sm:$0xff]
    %v76 = vld [vmem:[#allocation5 + $0x98] sm:$0xff]
    %v77 = vld [vmem:[#allocation5 + $0xa0] sm:$0xff]
    %v78 = vld [vmem:[#allocation5 + $0xa8] sm:$0xff]
    %v79 = vld [vmem:[#allocation5 + $0xb0] sm:$0xff]
    %v80 = vld [vmem:[#allocation5 + $0xb8] sm:$0xff]
    %v81 = vld [vmem:[#allocation5 + $0xc0] sm:$0xff]
    %v82 = vld [vmem:[#allocation5 + $0xc8] sm:$0xff]
    %v83 = vld [vmem:[#allocation5 + $0xd0] sm:$0xff]
    %v84 = vld [vmem:[#allocation5 + $0xd8] sm:$0xff]
    %v85 = vld [vmem:[#allocation5 + $0xe0] sm:$0xff]
    %v86 = vld [vmem:[#allocation5 + $0xe8] sm:$0xff]
    %v87 = vld [vmem:[#allocation5 + $0xf0] sm:$0xff]
    %v88 = vld [vmem:[#allocation5 + $0xf8] sm:$0xff]
    %v89 = vld [vmem:[#allocation7] sm:$0xf]
    %v91 = vlaneseq
    %v92 = vshrl.u32 %v91, 7
    %v93 = vsub.s32 0, %v92
    %v94 = vrot.slane %v89, %v93
    %v95 = vlaneseq
    %v96 = vshrl.u32 %v95, 7
    %v97 = vsub.s32 1, %v96
    %v98 = vrot.slane %v89, %v97
    %v99 = vlaneseq
    %v100 = vshrl.u32 %v99, 7
    %v101 = vsub.s32 2, %v100
    %v102 = vrot.slane %v89, %v101
    %v103 = vlaneseq
    %v104 = vshrl.u32 %v103, 7
    %v105 = vsub.s32 3, %v104
    %v106 = vrot.slane %v89, %v105
    %v113 = vunpack.c.l.b16 %v55
    %v114 = vunpack.c.l.b16 %v56
    %v115 = vpack.c.b16 %v114, %v113
    %v149 = vunpack.c.l.b16 %v57
    %v150 = vunpack.c.h.b16 %v57
    %v151 = vunpack.c.l.b16 %v58
    %v152 = vunpack.c.h.b16 %v58
    %v153 = vunpack.c.l.b16 %v59
    %v154 = vunpack.c.h.b16 %v59
    %v155 = vunpack.c.l.b16 %v60
    %v156 = vunpack.c.h.b16 %v60
    %v157 = vunpack.c.l.b16 %v61
    %v158 = vunpack.c.h.b16 %v61
    %v159 = vunpack.c.l.b16 %v62
    %v160 = vunpack.c.h.b16 %v62
    %v161 = vunpack.c.l.b16 %v63
    %v162 = vunpack.c.h.b16 %v63
    %v163 = vunpack.c.l.b16 %v64
    %v164 = vunpack.c.h.b16 %v64
    %v165 = vunpack.c.l.b16 %v65
    %v166 = vunpack.c.h.b16 %v65
    %v167 = vunpack.c.l.b16 %v66
    %v168 = vunpack.c.h.b16 %v66
    %v169 = vunpack.c.l.b16 %v67
    %v170 = vunpack.c.h.b16 %v67
    %v171 = vunpack.c.l.b16 %v68
    %v172 = vunpack.c.h.b16 %v68
    %v173 = vunpack.c.l.b16 %v69
    %v174 = vunpack.c.h.b16 %v69
    %v175 = vunpack.c.l.b16 %v70
    %v176 = vunpack.c.h.b16 %v70
    %v177 = vunpack.c.l.b16 %v71
    %v178 = vunpack.c.h.b16 %v71
    %v179 = vunpack.c.l.b16 %v72
    %v180 = vunpack.c.h.b16 %v72
    %v181 = vunpack.c.l.b16 %v73
    %v182 = vunpack.c.h.b16 %v73
    %v183 = vunpack.c.l.b16 %v74
    %v184 = vunpack.c.h.b16 %v74
    %v185 = vunpack.c.l.b16 %v75
    %v186 = vunpack.c.h.b16 %v75
    %v187 = vunpack.c.l.b16 %v76
    %v188 = vunpack.c.h.b16 %v76
    %v189 = vunpack.c.l.b16 %v77
    %v190 = vunpack.c.h.b16 %v77
    %v191 = vunpack.c.l.b16 %v78
    %v192 = vunpack.c.h.b16 %v78
    %v193 = vunpack.c.l.b16 %v79
    %v194 = vunpack.c.h.b16 %v79
    %v195 = vunpack.c.l.b16 %v80
    %v196 = vunpack.c.h.b16 %v80
    %v197 = vunpack.c.l.b16 %v81
    %v198 = vunpack.c.h.b16 %v81
    %v199 = vunpack.c.l.b16 %v82
    %v200 = vunpack.c.h.b16 %v82
    %v201 = vunpack.c.l.b16 %v83
    %v202 = vunpack.c.h.b16 %v83
    %v203 = vunpack.c.l.b16 %v84
    %v204 = vunpack.c.h.b16 %v84
    %v205 = vunpack.c.l.b16 %v85
    %v206 = vunpack.c.h.b16 %v85
    %v207 = vunpack.c.l.b16 %v86
    %v208 = vunpack.c.h.b16 %v86
    %v209 = vunpack.c.l.b16 %v87
    %v210 = vunpack.c.h.b16 %v87
    %v211 = vunpack.c.l.b16 %v88
    %v212 = vunpack.c.h.b16 %v88
    %v213 = vpack.c.b16 %v153, %v149
    %v214 = vpack.c.b16 %v154, %v150
    %v215 = vpack.c.b16 %v155, %v151
    %v216 = vpack.c.b16 %v156, %v152
    %v217 = vpack.c.b16 %v161, %v157
    %v218 = vpack.c.b16 %v162, %v158
    %v219 = vpack.c.b16 %v163, %v159
    %v220 = vpack.c.b16 %v164, %v160
    %v221 = vpack.c.b16 %v169, %v165
    %v222 = vpack.c.b16 %v170, %v166
    %v223 = vpack.c.b16 %v171, %v167
    %v224 = vpack.c.b16 %v172, %v168
    %v225 = vpack.c.b16 %v177, %v173
    %v226 = vpack.c.b16 %v178, %v174
    %v227 = vpack.c.b16 %v179, %v175
    %v228 = vpack.c.b16 %v180, %v176
    %v229 = vpack.c.b16 %v185, %v181
    %v230 = vpack.c.b16 %v186, %v182
    %v231 = vpack.c.b16 %v187, %v183
    %v232 = vpack.c.b16 %v188, %v184
    %v233 = vpack.c.b16 %v193, %v189
    %v234 = vpack.c.b16 %v194, %v190
    %v235 = vpack.c.b16 %v195, %v191
    %v236 = vpack.c.b16 %v196, %v192
    %v237 = vpack.c.b16 %v201, %v197
    %v238 = vpack.c.b16 %v202, %v198
    %v239 = vpack.c.b16 %v203, %v199
    %v240 = vpack.c.b16 %v204, %v200
    %v241 = vpack.c.b16 %v209, %v205
    %v242 = vpack.c.b16 %v210, %v206
    %v243 = vpack.c.b16 %v211, %v207
    %v244 = vpack.c.b16 %v212, %v208
    %277 = vmatprep.subr.bf16.mxu0 %v214
    %278 = vmatpush1.bf16.msra.mxu0 %v213
    %279 = vmatprep.subr.bf16.mxu0 %v218
    %280 = vmatpush1.bf16.msra.mxu0 %v217
    %281 = vmatprep.subr.bf16.mxu0 %v222
    %282 = vmatpush1.bf16.msra.mxu0 %v221
    %283 = vmatprep.subr.bf16.mxu0 %v226
    %284 = vmatpush1.bf16.msra.mxu0 %v225
    %285 = vmatprep.subr.bf16.mxu0 %v230
    %286 = vmatpush1.bf16.msra.mxu0 %v229
    %287 = vmatprep.subr.bf16.mxu0 %v234
    %288 = vmatpush1.bf16.msra.mxu0 %v233
    %289 = vmatprep.subr.bf16.mxu0 %v238
    %290 = vmatpush1.bf16.msra.mxu0 %v237
    %291 = vmatprep.subr.bf16.mxu0 %v242
    %292 = vmatpush1.bf16.msra.mxu0 %v241
    %293 = vmatprep.subr.bf16.mxu0 0
    %294 = vmatpush1.bf16.msra.mxu0 0
    %295 = vmatprep.subr.bf16.mxu0 0
    %296 = vmatpush1.bf16.msra.mxu0 0
    %297 = vmatprep.subr.bf16.mxu0 0
    %298 = vmatpush1.bf16.msra.mxu0 0
    %299 = vmatprep.subr.bf16.mxu0 0
    %300 = vmatpush1.bf16.msra.mxu0 0
    %301 = vmatprep.subr.bf16.mxu0 0
    %302 = vmatpush1.bf16.msra.mxu0 0
    %303 = vmatprep.subr.bf16.mxu0 0
    %304 = vmatpush1.bf16.msra.mxu0 0
    %305 = vmatprep.subr.bf16.mxu0 0
    %306 = vmatpush1.bf16.msra.mxu0 0
    %307 = vmatprep.subr.bf16.mxu0 0
    %308 = vmatpush1.bf16.msra.mxu0 0
    %309 = vmatprep.mubr.bf16.mxu0 0
    %310 = vmatmul.mubr.bf16.gmra.mrb[0].mxu0 %v115
    %v311 = vpop.f32.mrb[0].mxu0
    %v312 = vadd.f32 %v94, %v311
    %v313 = vpop.f32.mrb[0].mxu0
    %v314 = vadd.f32 %v98, %v313
    %v315 = vpop.f32.mrb[0].mxu0
    %v316 = vadd.f32 %v94, %v315
    %v317 = vpop.f32.mrb[0].mxu0
    %v318 = vadd.f32 %v98, %v317
    %319 = vdwg.mxu0
    %320 = vmatprep.subr.bf16.mxu0 %v216
    %321 = vmatpush1.bf16.msra.mxu0 %v215
    %322 = vmatprep.subr.bf16.mxu0 %v220
    %323 = vmatpush1.bf16.msra.mxu0 %v219
    %324 = vmatprep.subr.bf16.mxu0 %v224
    %325 = vmatpush1.bf16.msra.mxu0 %v223
    %326 = vmatprep.subr.bf16.mxu0 %v228
    %327 = vmatpush1.bf16.msra.mxu0 %v227
    %328 = vmatprep.subr.bf16.mxu0 %v232
    %329 = vmatpush1.bf16.msra.mxu0 %v231
    %330 = vmatprep.subr.bf16.mxu0 %v236
    %331 = vmatpush1.bf16.msra.mxu0 %v235
    %332 = vmatprep.subr.bf16.mxu0 %v240
    %333 = vmatpush1.bf16.msra.mxu0 %v239
    %334 = vmatprep.subr.bf16.mxu0 %v244
    %335 = vmatpush1.bf16.msra.mxu0 %v243
    %336 = vmatprep.subr.bf16.mxu0 0
    %337 = vmatpush1.bf16.msra.mxu0 0
    %338 = vmatprep.subr.bf16.mxu0 0
    %339 = vmatpush1.bf16.msra.mxu0 0
    %340 = vmatprep.subr.bf16.mxu0 0
    %341 = vmatpush1.bf16.msra.mxu0 0
    %342 = vmatprep.subr.bf16.mxu0 0
    %343 = vmatpush1.bf16.msra.mxu0 0
    %344 = vmatprep.subr.bf16.mxu0 0
    %345 = vmatpush1.bf16.msra.mxu0 0
    %346 = vmatprep.subr.bf16.mxu0 0
    %347 = vmatpush1.bf16.msra.mxu0 0
    %348 = vmatprep.subr.bf16.mxu0 0
    %349 = vmatpush1.bf16.msra.mxu0 0
    %350 = vmatprep.subr.bf16.mxu0 0
    %351 = vmatpush1.bf16.msra.mxu0 0
    %352 = vmatprep.mubr.bf16.mxu0 0
    %353 = vmatmul.mubr.bf16.gmra.mrb[0].mxu0 %v115
    %v354 = vpop.f32.mrb[0].mxu0
    %v355 = vadd.f32 %v102, %v354
    %v356 = vpop.f32.mrb[0].mxu0
    %v357 = vadd.f32 %v106, %v356
    %v358 = vpop.f32.mrb[0].mxu0
    %v359 = vadd.f32 %v102, %v358
    %v360 = vpop.f32.mrb[0].mxu0
    %v361 = vadd.f32 %v106, %v360
    %362 = vdwg.mxu0
    %v363 = vpack.c.bf16 %v316, %v312
    %v364 = vpack.c.bf16 %v318, %v314
    %v365 = vpack.c.bf16 %v359, %v355
    %v366 = vpack.c.bf16 %v361, %v357
    %v371 = vunpack.c.l.b16 %v363
    %v372 = vunpack.c.l.b16 %v364
    %v373 = vunpack.c.l.b16 %v365
    %v374 = vunpack.c.l.b16 %v366
    %v375 = vunpack.c.h.b16 %v363
    %v376 = vunpack.c.h.b16 %v364
    %v377 = vunpack.c.h.b16 %v365
    %v378 = vunpack.c.h.b16 %v366
    %v379 = vpack.c.b16 %v372, %v371
    %v380 = vpack.c.b16 %v374, %v373
    %v381 = vpack.c.b16 %v376, %v375
    %v382 = vpack.c.b16 %v378, %v377
    %387 = vst [vmem:[#allocation8] sm:$0xff] %v379
    %388 = vst [vmem:[#allocation8 + $0x8] sm:$0xff] %v380
    %389 = vst [vmem:[#allocation8 + $0x10] sm:$0xff] %v381
    %390 = vst [vmem:[#allocation8 + $0x18] sm:$0xff] %v382
    // Predicated region
    $region26: #{language_model_forward.5} parent=1 // pred_check
      _
    $region27: #{language_model_forward.5} parent=1 // pred_check_branch
      %392 = sbr.rel (0) target = $region29
    $region28: #{language_model_forward.5} parent=1 // pred_region
      %s394 = ssub.s32 512, 512
      %395 = vsyncadd [#allocation4], %s394
      %s396 = sshll.u32 [#allocation8], 4
      %s397 = int_to_ptr.vmem [resolvable:$true] %s396
      %402 = dma.vmem_to_hbm [thread:$0]  %s397, 512, %s3, [#allocation4], 256, 256, 16
    $region29: #{language_model_forward.5} parent=1 // pred_fallthru
      _
    // Predicated region
    $region30: #{language_model_forward.5} parent=1 // pred_check
      _
    $region31: #{language_model_forward.5} parent=1 // pred_check_branch
      %404 = sbr.rel (0) target = $region33
    $region32: #{language_model_forward.5} parent=1 // pred_region
      %405 = dma.done [#allocation4], 512
    $region33: #{language_model_forward.5} parent=1 // pred_fallthru
      _
    %406 = vsyncpa [#allocation3], 1
    %407 = vsyncpa [#allocation6], 1
    %408 = vsyncpa [#allocation4], 1

// kernel: language_model_forward.6
$region0: #{language_model_forward.6}
  #allocation0 [shape = 'u32[]', space=smem, size = 0x4, offset = 0x4, fixed_abs, tag = 'smem constant byte address 0x4 - core index']
  #allocation1 [shape = 'u32[144,128]{1,0:T(1,128)}', space=vmem, size = 0x12000, scoped, tag = 'internal scratch']
  #allocation2 [shape = 'bf16[2,128]{1,0:T(2,128)(2,1)}', space=vmem, size = 0x200, scoped, tag = 'scratch operand']
  #allocation3 [shape = 'f32[2,128]{1,0:T(2,128)}', space=vmem, size = 0x400, scoped, tag = 'scratch operand']
  %s0 = inlined_call_operand.vmem [shape: bf16[8,2,512], index: 0, kind: input, shape index: {}]
  %s1 = inlined_call_operand.hbm [shape: bf16[128,512], index: 1, kind: input, shape index: {}]
  %s2 = inlined_call_operand.vmem [shape: bf16[8,2,128], index: 2, kind: output, shape index: {}]
  %s3 = sld [smem:[#allocation0]]
  $region26: #{language_model_forward.6} parent=0
    _
  %s5 = ssub.s32 1, %s3
  %s6 = scalar_select 0, %s5, %s3
  $region1: #{language_model_forward.6} parent=0
    #allocation4 [shape = 'u8[131072]{0}', space=vmem, size = 0x20000, scoped, tag = 'input window, operand 1, single buffered']
    #allocation5 [shape = 's32[1]{0}', space=sflag, size = 0x4, scoped, tag = 'scoped memory for language_model_forward.6']
    %7 = vsyncpa [#allocation5], 0
    // Predicated region
    $region2: #{language_model_forward.6} parent=1 // pred_check
      _
    $region3: #{language_model_forward.6} parent=1 // pred_check_branch
      %9 = sbr.rel (0) target = $region5
    $region4: #{language_model_forward.6} parent=1 // pred_region
      _
    $region5: #{language_model_forward.6} parent=1 // pred_fallthru
      _
    // Predicated region
    $region6: #{language_model_forward.6} parent=1 // pred_check
      _
    $region7: #{language_model_forward.6} parent=1 // pred_check_branch
      %11 = sbr.rel (0) target = $region9
    $region8: #{language_model_forward.6} parent=1 // pred_region
      %s13 = ssub.s32 4096, 4096
      %14 = vsyncadd [#allocation5], %s13
      %s15 = sshll.u32 [#allocation4], 4
      %s16 = int_to_ptr.vmem [resolvable:$true] %s15
      %21 = dma.hbm_to_vmem [thread:$0]  %s1, 4096, %s16, [#allocation5], 256, 256, 16
    $region9: #{language_model_forward.6} parent=1 // pred_fallthru
      _
    // Predicated region
    $region10: #{language_model_forward.6} parent=1 // pred_check
      _
    $region11: #{language_model_forward.6} parent=1 // pred_check_branch
      %23 = sbr.rel (0) target = $region13
    $region12: #{language_model_forward.6} parent=1 // pred_region
      %24 = dma.done [#allocation5], 4096
    $region13: #{language_model_forward.6} parent=1 // pred_fallthru
      _
    %p26 = scmp.eq.s32.totalorder 0, 0
    // Predicated region
    $region14: #{language_model_forward.6} parent=1 // pred_check
      %p27 = pneg %p26
    $region15: #{language_model_forward.6} parent=1 // pred_check_branch
      %29 = sbr.rel (%p27) target = $region17
    $region16: #{language_model_forward.6} parent=1 // pred_region
      %30 = vst [vmem:[#allocation2] sm:$0x1] 0
      %31 = vst [vmem:[#allocation3] sm:$0x3] 0.0
    $region17: #{language_model_forward.6} parent=1 // pred_fallthru
      _
    %v32 = vld [vmem:[#allocation2] sm:$0x1]
    %v33 = vld [vmem:[#allocation3] sm:$0x3]
    %v34 = vld [vmem:[#allocation4] sm:$0xff]
    %v35 = vld [vmem:[#allocation4 + $0x8] sm:$0xff]
    %v36 = vld [vmem:[#allocation4 + $0x10] sm:$0xff]
    %v37 = vld [vmem:[#allocation4 + $0x18] sm:$0xff]
    %v38 = vld [vmem:[#allocation4 + $0x20] sm:$0xff]
    %v39 = vld [vmem:[#allocation4 + $0x28] sm:$0xff]
    %v40 = vld [vmem:[#allocation4 + $0x30] sm:$0xff]
    %v41 = vld [vmem:[#allocation4 + $0x38] sm:$0xff]
    %v42 = vld [vmem:[#allocation4 + $0x40] sm:$0xff]
    %v43 = vld [vmem:[#allocation4 + $0x48] sm:$0xff]
    %v44 = vld [vmem:[#allocation4 + $0x50] sm:$0xff]
    %v45 = vld [vmem:[#allocation4 + $0x58] sm:$0xff]
    %v46 = vld [vmem:[#allocation4 + $0x60] sm:$0xff]
    %v47 = vld [vmem:[#allocation4 + $0x68] sm:$0xff]
    %v48 = vld [vmem:[#allocation4 + $0x70] sm:$0xff]
    %v49 = vld [vmem:[#allocation4 + $0x78] sm:$0xff]
    %v50 = vld [vmem:[#allocation4 + $0x80] sm:$0xff]
    %v51 = vld [vmem:[#allocation4 + $0x88] sm:$0xff]
    %v52 = vld [vmem:[#allocation4 + $0x90] sm:$0xff]
    %v53 = vld [vmem:[#allocation4 + $0x98] sm:$0xff]
    %v54 = vld [vmem:[#allocation4 + $0xa0] sm:$0xff]
    %v55 = vld [vmem:[#allocation4 + $0xa8] sm:$0xff]
    %v56 = vld [vmem:[#allocation4 + $0xb0] sm:$0xff]
    %v57 = vld [vmem:[#allocation4 + $0xb8] sm:$0xff]
    %v58 = vld [vmem:[#allocation4 + $0xc0] sm:$0xff]
    %v59 = vld [vmem:[#allocation4 + $0xc8] sm:$0xff]
    %v60 = vld [vmem:[#allocation4 + $0xd0] sm:$0xff]
    %v61 = vld [vmem:[#allocation4 + $0xd8] sm:$0xff]
    %v62 = vld [vmem:[#allocation4 + $0xe0] sm:$0xff]
    %v63 = vld [vmem:[#allocation4 + $0xe8] sm:$0xff]
    %v64 = vld [vmem:[#allocation4 + $0xf0] sm:$0xff]
    %v65 = vld [vmem:[#allocation4 + $0xf8] sm:$0xff]
    %v66 = vld [vmem:[%s0] sm:$0xf]
    %v67 = vunpack.c.l.bf16 %v66
    %v100 = vunpack.c.l.b16 %v34
    %v101 = vunpack.c.h.b16 %v34
    %v102 = vunpack.c.l.b16 %v35
    %v103 = vunpack.c.h.b16 %v35
    %v104 = vunpack.c.l.b16 %v36
    %v105 = vunpack.c.h.b16 %v36
    %v106 = vunpack.c.l.b16 %v37
    %v107 = vunpack.c.h.b16 %v37
    %v108 = vunpack.c.l.b16 %v38
    %v109 = vunpack.c.h.b16 %v38
    %v110 = vunpack.c.l.b16 %v39
    %v111 = vunpack.c.h.b16 %v39
    %v112 = vunpack.c.l.b16 %v40
    %v113 = vunpack.c.h.b16 %v40
    %v114 = vunpack.c.l.b16 %v41
    %v115 = vunpack.c.h.b16 %v41
    %v116 = vunpack.c.l.b16 %v42
    %v117 = vunpack.c.h.b16 %v42
    %v118 = vunpack.c.l.b16 %v43
    %v119 = vunpack.c.h.b16 %v43
    %v120 = vunpack.c.l.b16 %v44
    %v121 = vunpack.c.h.b16 %v44
    %v122 = vunpack.c.l.b16 %v45
    %v123 = vunpack.c.h.b16 %v45
    %v124 = vunpack.c.l.b16 %v46
    %v125 = vunpack.c.h.b16 %v46
    %v126 = vunpack.c.l.b16 %v47
    %v127 = vunpack.c.h.b16 %v47
    %v128 = vunpack.c.l.b16 %v48
    %v129 = vunpack.c.h.b16 %v48
    %v130 = vunpack.c.l.b16 %v49
    %v131 = vunpack.c.h.b16 %v49
    %v132 = vunpack.c.l.b16 %v50
    %v133 = vunpack.c.h.b16 %v50
    %v134 = vunpack.c.l.b16 %v51
    %v135 = vunpack.c.h.b16 %v51
    %v136 = vunpack.c.l.b16 %v52
    %v137 = vunpack.c.h.b16 %v52
    %v138 = vunpack.c.l.b16 %v53
    %v139 = vunpack.c.h.b16 %v53
    %v140 = vunpack.c.l.b16 %v54
    %v141 = vunpack.c.h.b16 %v54
    %v142 = vunpack.c.l.b16 %v55
    %v143 = vunpack.c.h.b16 %v55
    %v144 = vunpack.c.l.b16 %v56
    %v145 = vunpack.c.h.b16 %v56
    %v146 = vunpack.c.l.b16 %v57
    %v147 = vunpack.c.h.b16 %v57
    %v148 = vunpack.c.l.b16 %v58
    %v149 = vunpack.c.h.b16 %v58
    %v150 = vunpack.c.l.b16 %v59
    %v151 = vunpack.c.h.b16 %v59
    %v152 = vunpack.c.l.b16 %v60
    %v153 = vunpack.c.h.b16 %v60
    %v154 = vunpack.c.l.b16 %v61
    %v155 = vunpack.c.h.b16 %v61
    %v156 = vunpack.c.l.b16 %v62
    %v157 = vunpack.c.h.b16 %v62
    %v158 = vunpack.c.l.b16 %v63
    %v159 = vunpack.c.h.b16 %v63
    %v160 = vunpack.c.l.b16 %v64
    %v161 = vunpack.c.h.b16 %v64
    %v162 = vunpack.c.l.b16 %v65
    %v163 = vunpack.c.h.b16 %v65
    %v164 = vpack.c.b16 %v104, %v100
    %v165 = vpack.c.b16 %v105, %v101
    %v166 = vpack.c.b16 %v106, %v102
    %v167 = vpack.c.b16 %v107, %v103
    %v168 = vpack.c.b16 %v112, %v108
    %v169 = vpack.c.b16 %v113, %v109
    %v170 = vpack.c.b16 %v114, %v110
    %v171 = vpack.c.b16 %v115, %v111
    %v172 = vpack.c.b16 %v120, %v116
    %v173 = vpack.c.b16 %v121, %v117
    %v174 = vpack.c.b16 %v122, %v118
    %v175 = vpack.c.b16 %v123, %v119
    %v176 = vpack.c.b16 %v128, %v124
    %v177 = vpack.c.b16 %v129, %v125
    %v178 = vpack.c.b16 %v130, %v126
    %v179 = vpack.c.b16 %v131, %v127
    %v180 = vpack.c.b16 %v136, %v132
    %v181 = vpack.c.b16 %v137, %v133
    %v182 = vpack.c.b16 %v138, %v134
    %v183 = vpack.c.b16 %v139, %v135
    %v184 = vpack.c.b16 %v144, %v140
    %v185 = vpack.c.b16 %v145, %v141
    %v186 = vpack.c.b16 %v146, %v142
    %v187 = vpack.c.b16 %v147, %v143
    %v188 = vpack.c.b16 %v152, %v148
    %v189 = vpack.c.b16 %v153, %v149
    %v190 = vpack.c.b16 %v154, %v150
    %v191 = vpack.c.b16 %v155, %v151
    %v192 = vpack.c.b16 %v160, %v156
    %v193 = vpack.c.b16 %v161, %v157
    %v194 = vpack.c.b16 %v162, %v158
    %v195 = vpack.c.b16 %v163, %v159
    %v229 = vcombine.high %v67, %v67
    %v231 = vunpack.c.l.s4 1983009808
    %v232 = vunpack.c.0.s8 %v231
    %v233 = vlaneseq
    %v234 = vshrl.u32 %v233, 7
    %v235 = vsub.s32 %v232, %v234
    %v236 = vrot.slane %v67, %v235
    %v238 = vunpack.c.l.s4 1983009808
    %v239 = vunpack.c.0.s8 %v238
    %v240 = vlaneseq
    %v241 = vshrl.u32 %v240, 7
    %v242 = vsub.s32 %v239, %v241
    %v243 = vrot.slane %v229, %v242
    %v244 = vcombine.high %v236, %v236
    %v245 = vcombine.high %v243, %v243
    %250 = vmatprep.subr.bf16.mxu0 %v165
    %251 = vmatpush1.bf16.msra.mxu0 %v164
    %252 = vmatprep.subr.bf16.mxu0 %v169
    %253 = vmatpush1.bf16.msra.mxu0 %v168
    %254 = vmatprep.subr.bf16.mxu0 %v173
    %255 = vmatpush1.bf16.msra.mxu0 %v172
    %256 = vmatprep.subr.bf16.mxu0 %v177
    %257 = vmatpush1.bf16.msra.mxu0 %v176
    %258 = vmatprep.subr.bf16.mxu0 %v181
    %259 = vmatpush1.bf16.msra.mxu0 %v180
    %260 = vmatprep.subr.bf16.mxu0 %v185
    %261 = vmatpush1.bf16.msra.mxu0 %v184
    %262 = vmatprep.subr.bf16.mxu0 %v189
    %263 = vmatpush1.bf16.msra.mxu0 %v188
    %264 = vmatprep.subr.bf16.mxu0 %v193
    %265 = vmatpush1.bf16.msra.mxu0 %v192
    %266 = vmatprep.subr.bf16.mxu0 0
    %267 = vmatpush1.bf16.msra.mxu0 0
    %268 = vmatprep.subr.bf16.mxu0 0
    %269 = vmatpush1.bf16.msra.mxu0 0
    %270 = vmatprep.subr.bf16.mxu0 0
    %271 = vmatpush1.bf16.msra.mxu0 0
    %272 = vmatprep.subr.bf16.mxu0 0
    %273 = vmatpush1.bf16.msra.mxu0 0
    %274 = vmatprep.subr.bf16.mxu0 0
    %275 = vmatpush1.bf16.msra.mxu0 0
    %276 = vmatprep.subr.bf16.mxu0 0
    %277 = vmatpush1.bf16.msra.mxu0 0
    %278 = vmatprep.subr.bf16.mxu0 0
    %279 = vmatpush1.bf16.msra.mxu0 0
    %280 = vmatprep.subr.bf16.mxu0 0
    %281 = vmatpush1.bf16.msra.mxu0 0
    %282 = vmatprep.mubr.bf16.mxu0 0
    %283 = vmatmul.mubr.bf16.gmra.mrb[0].mxu0 %v32
    %v284 = vpop.f32.mrb[0].mxu0
    %v285 = vadd.f32 %v236, %v284
    %v286 = vpop.f32.mrb[0].mxu0
    %v287 = vadd.f32 %v244, %v286
    %v288 = vpop.f32.mrb[0].mxu0
    %v289 = vpop.f32.mrb[0].mxu0
    %290 = vdwg.mxu0
    %291 = vmatprep.subr.bf16.mxu0 %v167
    %292 = vmatpush1.bf16.msra.mxu0 %v166
    %293 = vmatprep.subr.bf16.mxu0 %v171
    %294 = vmatpush1.bf16.msra.mxu0 %v170
    %295 = vmatprep.subr.bf16.mxu0 %v175
    %296 = vmatpush1.bf16.msra.mxu0 %v174
    %297 = vmatprep.subr.bf16.mxu0 %v179
    %298 = vmatpush1.bf16.msra.mxu0 %v178
    %299 = vmatprep.subr.bf16.mxu0 %v183
    %300 = vmatpush1.bf16.msra.mxu0 %v182
    %301 = vmatprep.subr.bf16.mxu0 %v187
    %302 = vmatpush1.bf16.msra.mxu0 %v186
    %303 = vmatprep.subr.bf16.mxu0 %v191
    %304 = vmatpush1.bf16.msra.mxu0 %v190
    %305 = vmatprep.subr.bf16.mxu0 %v195
    %306 = vmatpush1.bf16.msra.mxu0 %v194
    %307 = vmatprep.subr.bf16.mxu0 0
    %308 = vmatpush1.bf16.msra.mxu0 0
    %309 = vmatprep.subr.bf16.mxu0 0
    %310 = vmatpush1.bf16.msra.mxu0 0
    %311 = vmatprep.subr.bf16.mxu0 0
    %312 = vmatpush1.bf16.msra.mxu0 0
    %313 = vmatprep.subr.bf16.mxu0 0
    %314 = vmatpush1.bf16.msra.mxu0 0
    %315 = vmatprep.subr.bf16.mxu0 0
    %316 = vmatpush1.bf16.msra.mxu0 0
    %317 = vmatprep.subr.bf16.mxu0 0
    %318 = vmatpush1.bf16.msra.mxu0 0
    %319 = vmatprep.subr.bf16.mxu0 0
    %320 = vmatpush1.bf16.msra.mxu0 0
    %321 = vmatprep.subr.bf16.mxu0 0
    %322 = vmatpush1.bf16.msra.mxu0 0
    %323 = vmatprep.mubr.bf16.mxu0 0
    %324 = vmatmul.mubr.bf16.gmra.mrb[0].mxu0 %v32
    %v325 = vpop.f32.mrb[0].mxu0
    %v326 = vadd.f32 %v243, %v325
    %v327 = vpop.f32.mrb[0].mxu0
    %v328 = vadd.f32 %v245, %v327
    %v329 = vpop.f32.mrb[0].mxu0
    %v330 = vpop.f32.mrb[0].mxu0
    %331 = vdwg.mxu0
    %v332 = vmul.f32 %v285, 0.5
    %v333 = vtanh.pop %v332
    %v334 = vmul.f32 %v333, 0.5
    %v335 = vadd.f32 %v334, 0.5
    %v336 = vmul.f32 %v287, 0.5
    %v337 = vtanh.pop %v336
    %v338 = vmul.f32 %v337, 0.5
    %v339 = vadd.f32 %v338, 0.5
    %v340 = vtanh.pop %v326
    %v341 = vmul.f32 %v328, 0.5
    %v342 = vtanh.pop %v341
    %v343 = vmul.f32 %v342, 0.5
    %v344 = vadd.f32 %v343, 0.5
    %v345 = vmul.f32 %v339, %v33
    %v346 = vmul.f32 %v335, %v340
    %v347 = vadd.f32 %v345, %v346
    %v348 = vtanh.pop %v347
    %v349 = vmul.f32 %v344, %v348
    %v350 = vpack.c.bf16 %v349, %v349
    %351 = vst [vmem:[%s2] sm:$0x1] %v350
    %v352 = vld [vmem:[#allocation4] sm:$0xff]
    %v353 = vld [vmem:[#allocation4 + $0x8] sm:$0xff]
    %v354 = vld [vmem:[#allocation4 + $0x10] sm:$0xff]
    %v355 = vld [vmem:[#allocation4 + $0x18] sm:$0xff]
    %v356 = vld [vmem:[#allocation4 + $0x20] sm:$0xff]
    %v357 = vld [vmem:[#allocation4 + $0x28] sm:$0xff]
    %v358 = vld [vmem:[#allocation4 + $0x30] sm:$0xff]
    %v359 = vld [vmem:[#allocation4 + $0x38] sm:$0xff]
    %v360 = vld [vmem:[#allocation4 + $0x40] sm:$0xff]
    %v361 = vld [vmem:[#allocation4 + $0x48] sm:$0xff]
    %v362 = vld [vmem:[#allocation4 + $0x50] sm:$0xff]
    %v363 = vld [vmem:[#allocation4 + $0x58] sm:$0xff]
    %v364 = vld [vmem:[#allocation4 + $0x60] sm:$0xff]
    %v365 = vld [vmem:[#allocation4 + $0x68] sm:$0xff]
    %v366 = vld [vmem:[#allocation4 + $0x70] sm:$0xff]
    %v367 = vld [vmem:[#allocation4 + $0x78] sm:$0xff]
    %v368 = vld [vmem:[#allocation4 + $0x80] sm:$0xff]
    %v369 = vld [vmem:[#allocation4 + $0x88] sm:$0xff]
    %v370 = vld [vmem:[#allocation4 + $0x90] sm:$0xff]
    %v371 = vld [vmem:[#allocation4 + $0x98] sm:$0xff]
    %v372 = vld [vmem:[#allocation4 + $0xa0] sm:$0xff]
    %v373 = vld [vmem:[#allocation4 + $0xa8] sm:$0xff]
    %v374 = vld [vmem:[#allocation4 + $0xb0] sm:$0xff]
    %v375 = vld [vmem:[#allocation4 + $0xb8] sm:$0xff]
    %v376 = vld [vmem:[#allocation4 + $0xc0] sm:$0xff]
    %v377 = vld [vmem:[#allocation4 + $0xc8] sm:$0xff]
    %v378 = vld [vmem:[#allocation4 + $0xd0] sm:$0xff]
    %v379 = vld [vmem:[#allocation4 + $0xd8] sm:$0xff]
    %v380 = vld [vmem:[#allocation4 + $0xe0] sm:$0xff]
    %v381 = vld [vmem:[#allocation4 + $0xe8] sm:$0xff]
    %v382 = vld [vmem:[#allocation4 + $0xf0] sm:$0xff]
    %v383 = vld [vmem:[#allocation4 + $0xf8] sm:$0xff]
    %s384 = scalar_lea.vmem %s0, 4
    %v385 = vld [vmem:[%s384] sm:$0xf]
    %v386 = vunpack.c.l.bf16 %v385
    %v419 = vunpack.c.l.b16 %v352
    %v420 = vunpack.c.h.b16 %v352
    %v421 = vunpack.c.l.b16 %v353
    %v422 = vunpack.c.h.b16 %v353
    %v423 = vunpack.c.l.b16 %v354
    %v424 = vunpack.c.h.b16 %v354
    %v425 = vunpack.c.l.b16 %v355
    %v426 = vunpack.c.h.b16 %v355
    %v427 = vunpack.c.l.b16 %v356
    %v428 = vunpack.c.h.b16 %v356
    %v429 = vunpack.c.l.b16 %v357
    %v430 = vunpack.c.h.b16 %v357
    %v431 = vunpack.c.l.b16 %v358
    %v432 = vunpack.c.h.b16 %v358
    %v433 = vunpack.c.l.b16 %v359
    %v434 = vunpack.c.h.b16 %v359
    %v435 = vunpack.c.l.b16 %v360
    %v436 = vunpack.c.h.b16 %v360
    %v437 = vunpack.c.l.b16 %v361
    %v438 = vunpack.c.h.b16 %v361
    %v439 = vunpack.c.l.b16 %v362
    %v440 = vunpack.c.h.b16 %v362
    %v441 = vunpack.c.l.b16 %v363
    %v442 = vunpack.c.h.b16 %v363
    %v443 = vunpack.c.l.b16 %v364
    %v444 = vunpack.c.h.b16 %v364
    %v445 = vunpack.c.l.b16 %v365
    %v446 = vunpack.c.h.b16 %v365
    %v447 = vunpack.c.l.b16 %v366
    %v448 = vunpack.c.h.b16 %v366
    %v449 = vunpack.c.l.b16 %v367
    %v450 = vunpack.c.h.b16 %v367
    %v451 = vunpack.c.l.b16 %v368
    %v452 = vunpack.c.h.b16 %v368
    %v453 = vunpack.c.l.b16 %v369
    %v454 = vunpack.c.h.b16 %v369
    %v455 = vunpack.c.l.b16 %v370
    %v456 = vunpack.c.h.b16 %v370
    %v457 = vunpack.c.l.b16 %v371
    %v458 = vunpack.c.h.b16 %v371
    %v459 = vunpack.c.l.b16 %v372
    %v460 = vunpack.c.h.b16 %v372
    %v461 = vunpack.c.l.b16 %v373
    %v462 = vunpack.c.h.b16 %v373
    %v463 = vunpack.c.l.b16 %v374
    %v464 = vunpack.c.h.b16 %v374
    %v465 = vunpack.c.l.b16 %v375
    %v466 = vunpack.c.h.b16 %v375
    %v467 = vunpack.c.l.b16 %v376
    %v468 = vunpack.c.h.b16 %v376
    %v469 = vunpack.c.l.b16 %v377
    %v470 = vunpack.c.h.b16 %v377
    %v471 = vunpack.c.l.b16 %v378
    %v472 = vunpack.c.h.b16 %v378
    %v473 = vunpack.c.l.b16 %v379
    %v474 = vunpack.c.h.b16 %v379
    %v475 = vunpack.c.l.b16 %v380
    %v476 = vunpack.c.h.b16 %v380
    %v477 = vunpack.c.l.b16 %v381
    %v478 = vunpack.c.h.b16 %v381
    %v479 = vunpack.c.l.b16 %v382
    %v480 = vunpack.c.h.b16 %v382
    %v481 = vunpack.c.l.b16 %v383
    %v482 = vunpack.c.h.b16 %v383
    %v483 = vpack.c.b16 %v423, %v419
    %v484 = vpack.c.b16 %v424, %v420
    %v485 = vpack.c.b16 %v425, %v421
    %v486 = vpack.c.b16 %v426, %v422
    %v487 = vpack.c.b16 %v431, %v427
    %v488 = vpack.c.b16 %v432, %v428
    %v489 = vpack.c.b16 %v433, %v429
    %v490 = vpack.c.b16 %v434, %v430
    %v491 = vpack.c.b16 %v439, %v435
    %v492 = vpack.c.b16 %v440, %v436
    %v493 = vpack.c.b16 %v441, %v437
    %v494 = vpack.c.b16 %v442, %v438
    %v495 = vpack.c.b16 %v447, %v443
    %v496 = vpack.c.b16 %v448, %v444
    %v497 = vpack.c.b16 %v449, %v445
    %v498 = vpack.c.b16 %v450, %v446
    %v499 = vpack.c.b16 %v455, %v451
    %v500 = vpack.c.b16 %v456, %v452
    %v501 = vpack.c.b16 %v457, %v453
    %v502 = vpack.c.b16 %v458, %v454
    %v503 = vpack.c.b16 %v463, %v459
    %v504 = vpack.c.b16 %v464, %v460
    %v505 = vpack.c.b16 %v465, %v461
    %v506 = vpack.c.b16 %v466, %v462
    %v507 = vpack.c.b16 %v471, %v467
    %v508 = vpack.c.b16 %v472, %v468
    %v509 = vpack.c.b16 %v473, %v469
    %v510 = vpack.c.b16 %v474, %v470
    %v511 = vpack.c.b16 %v479, %v475
    %v512 = vpack.c.b16 %v480, %v476
    %v513 = vpack.c.b16 %v481, %v477
    %v514 = vpack.c.b16 %v482, %v478
    %v548 = vcombine.high %v386, %v386
    %v550 = vunpack.c.l.s4 1983009808
    %v551 = vunpack.c.0.s8 %v550
    %v552 = vlaneseq
    %v553 = vshrl.u32 %v552, 7
    %v554 = vsub.s32 %v551, %v553
    %v555 = vrot.slane %v386, %v554
    %v557 = vunpack.c.l.s4 1983009808
    %v558 = vunpack.c.0.s8 %v557
    %v559 = vlaneseq
    %v560 = vshrl.u32 %v559, 7
    %v561 = vsub.s32 %v558, %v560
    %v562 = vrot.slane %v548, %v561
    %v563 = vcombine.high %v555, %v555
    %v564 = vcombine.high %v562, %v562
    %569 = vmatprep.subr.bf16.mxu0 %v484
    %570 = vmatpush1.bf16.msra.mxu0 %v483
    %571 = vmatprep.subr.bf16.mxu0 %v488
    %572 = vmatpush1.bf16.msra.mxu0 %v487
    %573 = vmatprep.subr.bf16.mxu0 %v492
    %574 = vmatpush1.bf16.msra.mxu0 %v491
    %575 = vmatprep.subr.bf16.mxu0 %v496
    %576 = vmatpush1.bf16.msra.mxu0 %v495
    %577 = vmatprep.subr.bf16.mxu0 %v500
    %578 = vmatpush1.bf16.msra.mxu0 %v499
    %579 = vmatprep.subr.bf16.mxu0 %v504
    %580 = vmatpush1.bf16.msra.mxu0 %v503
    %581 = vmatprep.subr.bf16.mxu0 %v508
    %582 = vmatpush1.bf16.msra.mxu0 %v507
    %583 = vmatprep.subr.bf16.mxu0 %v512
    %584 = vmatpush1.bf16.msra.mxu0 %v511
    %585 = vmatprep.subr.bf16.mxu0 0
    %586 = vmatpush1.bf16.msra.mxu0 0
    %587 = vmatprep.subr.bf16.mxu0 0
    %588 = vmatpush1.bf16.msra.mxu0 0
    %589 = vmatprep.subr.bf16.mxu0 0
    %590 = vmatpush1.bf16.msra.mxu0 0
    %591 = vmatprep.subr.bf16.mxu0 0
    %592 = vmatpush1.bf16.msra.mxu0 0
    %593 = vmatprep.subr.bf16.mxu0 0
    %594 = vmatpush1.bf16.msra.mxu0 0
    %595 = vmatprep.subr.bf16.mxu0 0
    %596 = vmatpush1.bf16.msra.mxu0 0
    %597 = vmatprep.subr.bf16.mxu0 0
    %598 = vmatpush1.bf16.msra.mxu0 0
    %599 = vmatprep.subr.bf16.mxu0 0
    %600 = vmatpush1.bf16.msra.mxu0 0
    %601 = vmatprep.mubr.bf16.mxu0 0
    %602 = vmatmul.mubr.bf16.gmra.mrb[0].mxu0 %v350
    %v603 = vpop.f32.mrb[0].mxu0
    %v604 = vadd.f32 %v555, %v603
    %v605 = vpop.f32.mrb[0].mxu0
    %v606 = vadd.f32 %v563, %v605
    %v607 = vpop.f32.mrb[0].mxu0
    %v608 = vpop.f32.mrb[0].mxu0
    %609 = vdwg.mxu0
    %610 = vmatprep.subr.bf16.mxu0 %v486
    %611 = vmatpush1.bf16.msra.mxu0 %v485
    %612 = vmatprep.subr.bf16.mxu0 %v490
    %613 = vmatpush1.bf16.msra.mxu0 %v489
    %614 = vmatprep.subr.bf16.mxu0 %v494
    %615 = vmatpush1.bf16.msra.mxu0 %v493
    %616 = vmatprep.subr.bf16.mxu0 %v498
    %617 = vmatpush1.bf16.msra.mxu0 %v497
    %618 = vmatprep.subr.bf16.mxu0 %v502
    %619 = vmatpush1.bf16.msra.mxu0 %v501
    %620 = vmatprep.subr.bf16.mxu0 %v506
    %621 = vmatpush1.bf16.msra.mxu0 %v505
    %622 = vmatprep.subr.bf16.mxu0 %v510
    %623 = vmatpush1.bf16.msra.mxu0 %v509
    %624 = vmatprep.subr.bf16.mxu0 %v514
    %625 = vmatpush1.bf16.msra.mxu0 %v513
    %626 = vmatprep.subr.bf16.mxu0 0
    %627 = vmatpush1.bf16.msra.mxu0 0
    %628 = vmatprep.subr.bf16.mxu0 0
    %629 = vmatpush1.bf16.msra.mxu0 0
    %630 = vmatprep.subr.bf16.mxu0 0
    %631 = vmatpush1.bf16.msra.mxu0 0
    %632 = vmatprep.subr.bf16.mxu0 0
    %633 = vmatpush1.bf16.msra.mxu0 0
    %634 = vmatprep.subr.bf16.mxu0 0
    %635 = vmatpush1.bf16.msra.mxu0 0
    %636 = vmatprep.subr.bf16.mxu0 0
    %637 = vmatpush1.bf16.msra.mxu0 0
    %638 = vmatprep.subr.bf16.mxu0 0
    %639 = vmatpush1.bf16.msra.mxu0 0
    %640 = vmatprep.subr.bf16.mxu0 0
    %641 = vmatpush1.bf16.msra.mxu0 0
    %642 = vmatprep.mubr.bf16.mxu0 0
    %643 = vmatmul.mubr.bf16.gmra.mrb[0].mxu0 %v350
    %v644 = vpop.f32.mrb[0].mxu0
    %v645 = vadd.f32 %v562, %v644
    %v646 = vpop.f32.mrb[0].mxu0
    %v647 = vadd.f32 %v564, %v646
    %v648 = vpop.f32.mrb[0].mxu0
    %v649 = vpop.f32.mrb[0].mxu0
    %650 = vdwg.mxu0
    %v651 = vmul.f32 %v604, 0.5
    %v652 = vtanh.pop %v651
    %v653 = vmul.f32 %v652, 0.5
    %v654 = vadd.f32 %v653, 0.5
    %v655 = vmul.f32 %v606, 0.5
    %v656 = vtanh.pop %v655
    %v657 = vmul.f32 %v656, 0.5
    %v658 = vadd.f32 %v657, 0.5
    %v659 = vtanh.pop %v645
    %v660 = vmul.f32 %v647, 0.5
    %v661 = vtanh.pop %v660
    %v662 = vmul.f32 %v661, 0.5
    %v663 = vadd.f32 %v662, 0.5
    %v664 = vmul.f32 %v658, %v347
    %v665 = vmul.f32 %v654, %v659
    %v666 = vadd.f32 %v664, %v665
    %v667 = vtanh.pop %v666
    %v668 = vmul.f32 %v663, %v667
    %v669 = vpack.c.bf16 %v668, %v668
    %s670 = scalar_lea.vmem %s2, 1
    %671 = vst [vmem:[%s670] sm:$0x1] %v669
    %v672 = vld [vmem:[#allocation4] sm:$0xff]
    %v673 = vld [vmem:[#allocation4 + $0x8] sm:$0xff]
    %v674 = vld [vmem:[#allocation4 + $0x10] sm:$0xff]
    %v675 = vld [vmem:[#allocation4 + $0x18] sm:$0xff]
    %v676 = vld [vmem:[#allocation4 + $0x20] sm:$0xff]
    %v677 = vld [vmem:[#allocation4 + $0x28] sm:$0xff]
    %v678 = vld [vmem:[#allocation4 + $0x30] sm:$0xff]
    %v679 = vld [vmem:[#allocation4 + $0x38] sm:$0xff]
    %v680 = vld [vmem:[#allocation4 + $0x40] sm:$0xff]
    %v681 = vld [vmem:[#allocation4 + $0x48] sm:$0xff]
    %v682 = vld [vmem:[#allocation4 + $0x50] sm:$0xff]
    %v683 = vld [vmem:[#allocation4 + $0x58] sm:$0xff]
    %v684 = vld [vmem:[#allocation4 + $0x60] sm:$0xff]
    %v685 = vld [vmem:[#allocation4 + $0x68] sm:$0xff]
    %v686 = vld [vmem:[#allocation4 + $0x70] sm:$0xff]
    %v687 = vld [vmem:[#allocation4 + $0x78] sm:$0xff]
    %v688 = vld [vmem:[#allocation4 + $0x80] sm:$0xff]
    %v689 = vld [vmem:[#allocation4 + $0x88] sm:$0xff]
    %v690 = vld [vmem:[#allocation4 + $0x90] sm:$0xff]
    %v691 = vld [vmem:[#allocation4 + $0x98] sm:$0xff]
    %v692 = vld [vmem:[#allocation4 + $0xa0] sm:$0xff]
    %v693 = vld [vmem:[#allocation4 + $0xa8] sm:$0xff]
    %v694 = vld [vmem:[#allocation4 + $0xb0] sm:$0xff]
    %v695 = vld [vmem:[#allocation4 + $0xb8] sm:$0xff]
    %v696 = vld [vmem:[#allocation4 + $0xc0] sm:$0xff]
    %v697 = vld [vmem:[#allocation4 + $0xc8] sm:$0xff]
    %v698 = vld [vmem:[#allocation4 + $0xd0] sm:$0xff]
    %v699 = vld [vmem:[#allocation4 + $0xd8] sm:$0xff]
    %v700 = vld [vmem:[#allocation4 + $0xe0] sm:$0xff]
    %v701 = vld [vmem:[#allocation4 + $0xe8] sm:$0xff]
    %v702 = vld [vmem:[#allocation4 + $0xf0] sm:$0xff]
    %v703 = vld [vmem:[#allocation4 + $0xf8] sm:$0xff]
    %s704 = scalar_lea.vmem %s0, 8
    %v705 = vld [vmem:[%s704] sm:$0xf]
    %v706 = vunpack.c.l.bf16 %v705
    %v739 = vunpack.c.l.b16 %v672
    %v740 = vunpack.c.h.b16 %v672
    %v741 = vunpack.c.l.b16 %v673
    %v742 = vunpack.c.h.b16 %v673
    %v743 = vunpack.c.l.b16 %v674
    %v744 = vunpack.c.h.b16 %v674
    %v745 = vunpack.c.l.b16 %v675
    %v746 = vunpack.c.h.b16 %v675
    %v747 = vunpack.c.l.b16 %v676
    %v748 = vunpack.c.h.b16 %v676
    %v749 = vunpack.c.l.b16 %v677
    %v750 = vunpack.c.h.b16 %v677
    %v751 = vunpack.c.l.b16 %v678
    %v752 = vunpack.c.h.b16 %v678
    %v753 = vunpack.c.l.b16 %v679
    %v754 = vunpack.c.h.b16 %v679
    %v755 = vunpack.c.l.b16 %v680
    %v756 = vunpack.c.h.b16 %v680
    %v757 = vunpack.c.l.b16 %v681
    %v758 = vunpack.c.h.b16 %v681
    %v759 = vunpack.c.l.b16 %v682
    %v760 = vunpack.c.h.b16 %v682
    %v761 = vunpack.c.l.b16 %v683
    %v762 = vunpack.c.h.b16 %v683
    %v763 = vunpack.c.l.b16 %v684
    %v764 = vunpack.c.h.b16 %v684
    %v765 = vunpack.c.l.b16 %v685
    %v766 = vunpack.c.h.b16 %v685
    %v767 = vunpack.c.l.b16 %v686
    %v768 = vunpack.c.h.b16 %v686
    %v769 = vunpack.c.l.b16 %v687
    %v770 = vunpack.c.h.b16 %v687
    %v771 = vunpack.c.l.b16 %v688
    %v772 = vunpack.c.h.b16 %v688
    %v773 = vunpack.c.l.b16 %v689
    %v774 = vunpack.c.h.b16 %v689
    %v775 = vunpack.c.l.b16 %v690
    %v776 = vunpack.c.h.b16 %v690
    %v777 = vunpack.c.l.b16 %v691
    %v778 = vunpack.c.h.b16 %v691
    %v779 = vunpack.c.l.b16 %v692
    %v780 = vunpack.c.h.b16 %v692
    %v781 = vunpack.c.l.b16 %v693
    %v782 = vunpack.c.h.b16 %v693
    %v783 = vunpack.c.l.b16 %v694
    %v784 = vunpack.c.h.b16 %v694
    %v785 = vunpack.c.l.b16 %v695
    %v786 = vunpack.c.h.b16 %v695
    %v787 = vunpack.c.l.b16 %v696
    %v788 = vunpack.c.h.b16 %v696
    %v789 = vunpack.c.l.b16 %v697
    %v790 = vunpack.c.h.b16 %v697
    %v791 = vunpack.c.l.b16 %v698
    %v792 = vunpack.c.h.b16 %v698
    %v793 = vunpack.c.l.b16 %v699
    %v794 = vunpack.c.h.b16 %v699
    %v795 = vunpack.c.l.b16 %v700
    %v796 = vunpack.c.h.b16 %v700
    %v797 = vunpack.c.l.b16 %v701
    %v798 = vunpack.c.h.b16 %v701
    %v799 = vunpack.c.l.b16 %v702
    %v800 = vunpack.c.h.b16 %v702
    %v801 = vunpack.c.l.b16 %v703
    %v802 = vunpack.c.h.b16 %v703
    %v803 = vpack.c.b16 %v743, %v739
    %v804 = vpack.c.b16 %v744, %v740
    %v805 = vpack.c.b16 %v745, %v741
    %v806 = vpack.c.b16 %v746, %v742
    %v807 = vpack.c.b16 %v751, %v747
    %v808 = vpack.c.b16 %v752, %v748
    %v809 = vpack.c.b16 %v753, %v749
    %v810 = vpack.c.b16 %v754, %v750
    %v811 = vpack.c.b16 %v759, %v755
    %v812 = vpack.c.b16 %v760, %v756
    %v813 = vpack.c.b16 %v761, %v757
    %v814 = vpack.c.b16 %v762, %v758
    %v815 = vpack.c.b16 %v767, %v763
    %v816 = vpack.c.b16 %v768, %v764
    %v817 = vpack.c.b16 %v769, %v765
    %v818 = vpack.c.b16 %v770, %v766
    %v819 = vpack.c.b16 %v775, %v771
    %v820 = vpack.c.b16 %v776, %v772
    %v821 = vpack.c.b16 %v777, %v773
    %v822 = vpack.c.b16 %v778, %v774
    %v823 = vpack.c.b16 %v783, %v779
    %v824 = vpack.c.b16 %v784, %v780
    %v825 = vpack.c.b16 %v785, %v781
    %v826 = vpack.c.b16 %v786, %v782
    %v827 = vpack.c.b16 %v791, %v787
    %v828 = vpack.c.b16 %v792, %v788
    %v829 = vpack.c.b16 %v793, %v789
    %v830 = vpack.c.b16 %v794, %v790
    %v831 = vpack.c.b16 %v799, %v795
    %v832 = vpack.c.b16 %v800, %v796
    %v833 = vpack.c.b16 %v801, %v797
    %v834 = vpack.c.b16 %v802, %v798
    %v868 = vcombine.high %v706, %v706
    %v870 = vunpack.c.l.s4 1983009808
    %v871 = vunpack.c.0.s8 %v870
    %v872 = vlaneseq
    %v873 = vshrl.u32 %v872, 7
    %v874 = vsub.s32 %v871, %v873
    %v875 = vrot.slane %v706, %v874
    %v877 = vunpack.c.l.s4 1983009808
    %v878 = vunpack.c.0.s8 %v877
    %v879 = vlaneseq
    %v880 = vshrl.u32 %v879, 7
    %v881 = vsub.s32 %v878, %v880
    %v882 = vrot.slane %v868, %v881
    %v883 = vcombine.high %v875, %v875
    %v884 = vcombine.high %v882, %v882
    %889 = vmatprep.subr.bf16.mxu0 %v804
    %890 = vmatpush1.bf16.msra.mxu0 %v803
    %891 = vmatprep.subr.bf16.mxu0 %v808
    %892 = vmatpush1.bf16.msra.mxu0 %v807
    %893 = vmatprep.subr.bf16.mxu0 %v812
    %894 = vmatpush1.bf16.msra.mxu0 %v811
    %895 = vmatprep.subr.bf16.mxu0 %v816
    %896 = vmatpush1.bf16.msra.mxu0 %v815
    %897 = vmatprep.subr.bf16.mxu0 %v820
    %898 = vmatpush1.bf16.msra.mxu0 %v819
    %899 = vmatprep.subr.bf16.mxu0 %v824
    %900 = vmatpush1.bf16.msra.mxu0 %v823
    %901 = vmatprep.subr.bf16.mxu0 %v828
    %902 = vmatpush1.bf16.msra.mxu0 %v827
    %903 = vmatprep.subr.bf16.mxu0 %v832
    %904 = vmatpush1.bf16.msra.mxu0 %v831
    %905 = vmatprep.subr.bf16.mxu0 0
    %906 = vmatpush1.bf16.msra.mxu0 0
    %907 = vmatprep.subr.bf16.mxu0 0
    %908 = vmatpush1.bf16.msra.mxu0 0
    %909 = vmatprep.subr.bf16.mxu0 0
    %910 = vmatpush1.bf16.msra.mxu0 0
    %911 = vmatprep.subr.bf16.mxu0 0
    %912 = vmatpush1.bf16.msra.mxu0 0
    %913 = vmatprep.subr.bf16.mxu0 0
    %914 = vmatpush1.bf16.msra.mxu0 0
    %915 = vmatprep.subr.bf16.mxu0 0
    %916 = vmatpush1.bf16.msra.mxu0 0
    %917 = vmatprep.subr.bf16.mxu0 0
    %918 = vmatpush1.bf16.msra.mxu0 0
    %919 = vmatprep.subr.bf16.mxu0 0
    %920 = vmatpush1.bf16.msra.mxu0 0
    %921 = vmatprep.mubr.bf16.mxu0 0
    %922 = vmatmul.mubr.bf16.gmra.mrb[0].mxu0 %v669
    %v923 = vpop.f32.mrb[0].mxu0
    %v924 = vadd.f32 %v875, %v923
    %v925 = vpop.f32.mrb[0].mxu0
    %v926 = vadd.f32 %v883, %v925
    %v927 = vpop.f32.mrb[0].mxu0
    %v928 = vpop.f32.mrb[0].mxu0
    %929 = vdwg.mxu0
    %930 = vmatprep.subr.bf16.mxu0 %v806
    %931 = vmatpush1.bf16.msra.mxu0 %v805
    %932 = vmatprep.subr.bf16.mxu0 %v810
    %933 = vmatpush1.bf16.msra.mxu0 %v809
    %934 = vmatprep.subr.bf16.mxu0 %v814
    %935 = vmatpush1.bf16.msra.mxu0 %v813
    %936 = vmatprep.subr.bf16.mxu0 %v818
    %937 = vmatpush1.bf16.msra.mxu0 %v817
    %938 = vmatprep.subr.bf16.mxu0 %v822
    %939 = vmatpush1.bf16.msra.mxu0 %v821
    %940 = vmatprep.subr.bf16.mxu0 %v826
    %941 = vmatpush1.bf16.msra.mxu0 %v825
    %942 = vmatprep.subr.bf16.mxu0 %v830
    %943 = vmatpush1.bf16.msra.mxu0 %v829
    %944 = vmatprep.subr.bf16.mxu0 %v834
    %945 = vmatpush1.bf16.msra.mxu0 %v833
    %946 = vmatprep.subr.bf16.mxu0 0
    %947 = vmatpush1.bf16.msra.mxu0 0
    %948 = vmatprep.subr.bf16.mxu0 0
    %949 = vmatpush1.bf16.msra.mxu0 0
    %950 = vmatprep.subr.bf16.mxu0 0
    %951 = vmatpush1.bf16.msra.mxu0 0
    %952 = vmatprep.subr.bf16.mxu0 0
    %953 = vmatpush1.bf16.msra.mxu0 0
    %954 = vmatprep.subr.bf16.mxu0 0
    %955 = vmatpush1.bf16.msra.mxu0 0
    %956 = vmatprep.subr.bf16.mxu0 0
    %957 = vmatpush1.bf16.msra.mxu0 0
    %958 = vmatprep.subr.bf16.mxu0 0
    %959 = vmatpush1.bf16.msra.mxu0 0
    %960 = vmatprep.subr.bf16.mxu0 0
    %961 = vmatpush1.bf16.msra.mxu0 0
    %962 = vmatprep.mubr.bf16.mxu0 0
    %963 = vmatmul.mubr.bf16.gmra.mrb[0].mxu0 %v669
    %v964 = vpop.f32.mrb[0].mxu0
    %v965 = vadd.f32 %v882, %v964
    %v966 = vpop.f32.mrb[0].mxu0
    %v967 = vadd.f32 %v884, %v966
    %v968 = vpop.f32.mrb[0].mxu0
    %v969 = vpop.f32.mrb[0].mxu0
    %970 = vdwg.mxu0
    %v971 = vmul.f32 %v924, 0.5
    %v972 = vtanh.pop %v971
    %v973 = vmul.f32 %v972, 0.5
    %v974 = vadd.f32 %v973, 0.5
    %v975 = vmul.f32 %v926, 0.5
    %v976 = vtanh.pop %v975
    %v977 = vmul.f32 %v976, 0.5
    %v978 = vadd.f32 %v977, 0.5
    %v979 = vtanh.pop %v965
    %v980 = vmul.f32 %v967, 0.5
    %v981 = vtanh.pop %v980
    %v982 = vmul.f32 %v981, 0.5
    %v983 = vadd.f32 %v982, 0.5
    %v984 = vmul.f32 %v978, %v666
    %v985 = vmul.f32 %v974, %v979
    %v986 = vadd.f32 %v984, %v985
    %v987 = vtanh.pop %v986
    %v988 = vmul.f32 %v983, %v987
    %v989 = vpack.c.bf16 %v988, %v988
    %s990 = scalar_lea.vmem %s2, 2
    %991 = vst [vmem:[%s990] sm:$0x1] %v989
    %v992 = vld [vmem:[#allocation4] sm:$0xff]
    %v993 = vld [vmem:[#allocation4 + $0x8] sm:$0xff]
    %v994 = vld [vmem:[#allocation4 + $0x10] sm:$0xff]
    %v995 = vld [vmem:[#allocation4 + $0x18] sm:$0xff]
    %v996 = vld [vmem:[#allocation4 + $0x20] sm:$0xff]
    %v997 = vld [vmem:[#allocation4 + $0x28] sm:$0xff]
    %v998 = vld [vmem:[#allocation4 + $0x30] sm:$0xff]
    %v999 = vld [vmem:[#allocation4 + $0x38] sm:$0xff]
    %v1000 = vld [vmem:[#allocation4 + $0x40] sm:$0xff]
    %v1001 = vld [vmem:[#allocation4 + $0x48] sm:$0xff]
    %v1002 = vld [vmem:[#allocation4 + $0x50] sm:$0xff]
    %v1003 = vld [vmem:[#allocation4 + $0x58] sm:$0xff]
    %v1004 = vld [vmem:[#allocation4 + $0x60] sm:$0xff]
    %v1005 = vld [vmem:[#allocation4 + $0x68] sm:$0xff]
    %v1006 = vld [vmem:[#allocation4 + $0x70] sm:$0xff]
    %v1007 = vld [vmem:[#allocation4 + $0x78] sm:$0xff]
    %v1008 = vld [vmem:[#allocation4 + $0x80] sm:$0xff]
    %v1009 = vld [vmem:[#allocation4 + $0x88] sm:$0xff]
    %v1010 = vld [vmem:[#allocation4 + $0x90] sm:$0xff]
    %v1011 = vld [vmem:[#allocation4 + $0x98] sm:$0xff]
    %v1012 = vld [vmem:[#allocation4 + $0xa0] sm:$0xff]
    %v1013 = vld [vmem:[#allocation4 + $0xa8] sm:$0xff]
    %v1014 = vld [vmem:[#allocation4 + $0xb0] sm:$0xff]
    %v1015 = vld [vmem:[#allocation4 + $0xb8] sm:$0xff]
    %v1016 = vld [vmem:[#allocation4 + $0xc0] sm:$0xff]
    %v1017 = vld [vmem:[#allocation4 + $0xc8] sm:$0xff]
    %v1018 = vld [vmem:[#allocation4 + $0xd0] sm:$0xff]
    %v1019 = vld [vmem:[#allocation4 + $0xd8] sm:$0xff]
    %v1020 = vld [vmem:[#allocation4 + $0xe0] sm:$0xff]
    %v1021 = vld [vmem:[#allocation4 + $0xe8] sm:$0xff]
    %v1022 = vld [vmem:[#allocation4 + $0xf0] sm:$0xff]
    %v1023 = vld [vmem:[#allocation4 + $0xf8] sm:$0xff]
    %s1024 = scalar_lea.vmem %s0, 12
    %v1025 = vld [vmem:[%s1024] sm:$0xf]
    %v1026 = vunpack.c.l.bf16 %v1025
    %v1059 = vunpack.c.l.b16 %v992
    %v1060 = vunpack.c.h.b16 %v992
    %v1061 = vunpack.c.l.b16 %v993
    %v1062 = vunpack.c.h.b16 %v993
    %v1063 = vunpack.c.l.b16 %v994
    %v1064 = vunpack.c.h.b16 %v994
    %v1065 = vunpack.c.l.b16 %v995
    %v1066 = vunpack.c.h.b16 %v995
    %v1067 = vunpack.c.l.b16 %v996
    %v1068 = vunpack.c.h.b16 %v996
    %v1069 = vunpack.c.l.b16 %v997
    %v1070 = vunpack.c.h.b16 %v997
    %v1071 = vunpack.c.l.b16 %v998
    %v1072 = vunpack.c.h.b16 %v998
    %v1073 = vunpack.c.l.b16 %v999
    %v1074 = vunpack.c.h.b16 %v999
    %v1075 = vunpack.c.l.b16 %v1000
    %v1076 = vunpack.c.h.b16 %v1000
    %v1077 = vunpack.c.l.b16 %v1001
    %v1078 = vunpack.c.h.b16 %v1001
    %v1079 = vunpack.c.l.b16 %v1002
    %v1080 = vunpack.c.h.b16 %v1002
    %v1081 = vunpack.c.l.b16 %v1003
    %v1082 = vunpack.c.h.b16 %v1003
    %v1083 = vunpack.c.l.b16 %v1004
    %v1084 = vunpack.c.h.b16 %v1004
    %v1085 = vunpack.c.l.b16 %v1005
    %v1086 = vunpack.c.h.b16 %v1005
    %v1087 = vunpack.c.l.b16 %v1006
    %v1088 = vunpack.c.h.b16 %v1006
    %v1089 = vunpack.c.l.b16 %v1007
    %v1090 = vunpack.c.h.b16 %v1007
    %v1091 = vunpack.c.l.b16 %v1008
    %v1092 = vunpack.c.h.b16 %v1008
    %v1093 = vunpack.c.l.b16 %v1009
    %v1094 = vunpack.c.h.b16 %v1009
    %v1095 = vunpack.c.l.b16 %v1010
    %v1096 = vunpack.c.h.b16 %v1010
    %v1097 = vunpack.c.l.b16 %v1011
    %v1098 = vunpack.c.h.b16 %v1011
    %v1099 = vunpack.c.l.b16 %v1012
    %v1100 = vunpack.c.h.b16 %v1012
    %v1101 = vunpack.c.l.b16 %v1013
    %v1102 = vunpack.c.h.b16 %v1013
    %v1103 = vunpack.c.l.b16 %v1014
    %v1104 = vunpack.c.h.b16 %v1014
    %v1105 = vunpack.c.l.b16 %v1015
    %v1106 = vunpack.c.h.b16 %v1015
    %v1107 = vunpack.c.l.b16 %v1016
    %v1108 = vunpack.c.h.b16 %v1016
    %v1109 = vunpack.c.l.b16 %v1017
    %v1110 = vunpack.c.h.b16 %v1017
    %v1111 = vunpack.c.l.b16 %v1018
    %v1112 = vunpack.c.h.b16 %v1018
    %v1113 = vunpack.c.l.b16 %v1019
    %v1114 = vunpack.c.h.b16 %v1019
    %v1115 = vunpack.c.l.b16 %v1020
    %v1116 = vunpack.c.h.b16 %v1020
    %v1117 = vunpack.c.l.b16 %v1021
    %v1118 = vunpack.c.h.b16 %v1021
    %v1119 = vunpack.c.l.b16 %v1022
    %v1120 = vunpack.c.h.b16 %v1022
    %v1121 = vunpack.c.l.b16 %v1023
    %v1122 = vunpack.c.h.b16 %v1023
    %v1123 = vpack.c.b16 %v1063, %v1059
    %v1124 = vpack.c.b16 %v1064, %v1060
    %v1125 = vpack.c.b16 %v1065, %v1061
    %v1126 = vpack.c.b16 %v1066, %v1062
    %v1127 = vpack.c.b16 %v1071, %v1067
    %v1128 = vpack.c.b16 %v1072, %v1068
    %v1129 = vpack.c.b16 %v1073, %v1069
    %v1130 = vpack.c.b16 %v1074, %v1070
    %v1131 = vpack.c.b16 %v1079, %v1075
    %v1132 = vpack.c.b16 %v1080, %v1076
    %v1133 = vpack.c.b16 %v1081, %v1077
    %v1134 = vpack.c.b16 %v1082, %v1078
    %v1135 = vpack.c.b16 %v1087, %v1083
    %v1136 = vpack.c.b16 %v1088, %v1084
    %v1137 = vpack.c.b16 %v1089, %v1085
    %v1138 = vpack.c.b16 %v1090, %v1086
    %v1139 = vpack.c.b16 %v1095, %v1091
    %v1140 = vpack.c.b16 %v1096, %v1092
    %v1141 = vpack.c.b16 %v1097, %v1093
    %v1142 = vpack.c.b16 %v1098, %v1094
    %v1143 = vpack.c.b16 %v1103, %v1099
    %v1144 = vpack.c.b16 %v1104, %v1100
    %v1145 = vpack.c.b16 %v1105, %v1101
    %v1146 = vpack.c.b16 %v1106, %v1102
    %v1147 = vpack.c.b16 %v1111, %v1107
    %v1148 = vpack.c.b16 %v1112, %v1108
    %v1149 = vpack.c.b16 %v1113, %v1109
    %v1150 = vpack.c.b16 %v1114, %v1110
    %v1151 = vpack.c.b16 %v1119, %v1115
    %v1152 = vpack.c.b16 %v1120, %v1116
    %v1153 = vpack.c.b16 %v1121, %v1117
    %v1154 = vpack.c.b16 %v1122, %v1118
    %v1188 = vcombine.high %v1026, %v1026
    %v1190 = vunpack.c.l.s4 1983009808
    %v1191 = vunpack.c.0.s8 %v1190
    %v1192 = vlaneseq
    %v1193 = vshrl.u32 %v1192, 7
    %v1194 = vsub.s32 %v1191, %v1193
    %v1195 = vrot.slane %v1026, %v1194
    %v1197 = vunpack.c.l.s4 1983009808
    %v1198 = vunpack.c.0.s8 %v1197
    %v1199 = vlaneseq
    %v1200 = vshrl.u32 %v1199, 7
    %v1201 = vsub.s32 %v1198, %v1200
    %v1202 = vrot.slane %v1188, %v1201
    %v1203 = vcombine.high %v1195, %v1195
    %v1204 = vcombine.high %v1202, %v1202
    %1209 = vmatprep.subr.bf16.mxu0 %v1124
    %1210 = vmatpush1.bf16.msra.mxu0 %v1123
    %1211 = vmatprep.subr.bf16.mxu0 %v1128
    %1212 = vmatpush1.bf16.msra.mxu0 %v1127
    %1213 = vmatprep.subr.bf16.mxu0 %v1132
    %1214 = vmatpush1.bf16.msra.mxu0 %v1131
    %1215 = vmatprep.subr.bf16.mxu0 %v1136
    %1216 = vmatpush1.bf16.msra.mxu0 %v1135
    %1217 = vmatprep.subr.bf16.mxu0 %v1140
    %1218 = vmatpush1.bf16.msra.mxu0 %v1139
    %1219 = vmatprep.subr.bf16.mxu0 %v1144
    %1220 = vmatpush1.bf16.msra.mxu0 %v1143
    %1221 = vmatprep.subr.bf16.mxu0 %v1148
    %1222 = vmatpush1.bf16.msra.mxu0 %v1147
    %1223 = vmatprep.subr.bf16.mxu0 %v1152
    %1224 = vmatpush1.bf16.msra.mxu0 %v1151
    %1225 = vmatprep.subr.bf16.mxu0 0
    %1226 = vmatpush1.bf16.msra.mxu0 0
    %1227 = vmatprep.subr.bf16.mxu0 0
    %1228 = vmatpush1.bf16.msra.mxu0 0
    %1229 = vmatprep.subr.bf16.mxu0 0
    %1230 = vmatpush1.bf16.msra.mxu0 0
    %1231 = vmatprep.subr.bf16.mxu0 0
    %1232 = vmatpush1.bf16.msra.mxu0 0
    %1233 = vmatprep.subr.bf16.mxu0 0
    %1234 = vmatpush1.bf16.msra.mxu0 0
    %1235 = vmatprep.subr.bf16.mxu0 0
    %1236 = vmatpush1.bf16.msra.mxu0 0
    %1237 = vmatprep.subr.bf16.mxu0 0
    %1238 = vmatpush1.bf16.msra.mxu0 0
    %1239 = vmatprep.subr.bf16.mxu0 0
    %1240 = vmatpush1.bf16.msra.mxu0 0
    %1241 = vmatprep.mubr.bf16.mxu0 0
    %1242 = vmatmul.mubr.bf16.gmra.mrb[0].mxu0 %v989
    %v1243 = vpop.f32.mrb[0].mxu0
    %v1244 = vadd.f32 %v1195, %v1243
    %v1245 = vpop.f32.mrb[0].mxu0
    %v1246 = vadd.f32 %v1203, %v1245
    %v1247 = vpop.f32.mrb[0].mxu0
    %v1248 = vpop.f32.mrb[0].mxu0
    %1249 = vdwg.mxu0
    %1250 = vmatprep.subr.bf16.mxu0 %v1126
    %1251 = vmatpush1.bf16.msra.mxu0 %v1125
    %1252 = vmatprep.subr.bf16.mxu0 %v1130
    %1253 = vmatpush1.bf16.msra.mxu0 %v1129
    %1254 = vmatprep.subr.bf16.mxu0 %v1134
    %1255 = vmatpush1.bf16.msra.mxu0 %v1133
    %1256 = vmatprep.subr.bf16.mxu0 %v1138
    %1257 = vmatpush1.bf16.msra.mxu0 %v1137
    %1258 = vmatprep.subr.bf16.mxu0 %v1142
    %1259 = vmatpush1.bf16.msra.mxu0 %v1141
    %1260 = vmatprep.subr.bf16.mxu0 %v1146
    %1261 = vmatpush1.bf16.msra.mxu0 %v1145
    %1262 = vmatprep.subr.bf16.mxu0 %v1150
    %1263 = vmatpush1.bf16.msra.mxu0 %v1149
    %1264 = vmatprep.subr.bf16.mxu0 %v1154
    %1265 = vmatpush1.bf16.msra.mxu0 %v1153
    %1266 = vmatprep.subr.bf16.mxu0 0
    %1267 = vmatpush1.bf16.msra.mxu0 0
    %1268 = vmatprep.subr.bf16.mxu0 0
    %1269 = vmatpush1.bf16.msra.mxu0 0
    %1270 = vmatprep.subr.bf16.mxu0 0
    %1271 = vmatpush1.bf16.msra.mxu0 0
    %1272 = vmatprep.subr.bf16.mxu0 0
    %1273 = vmatpush1.bf16.msra.mxu0 0
    %1274 = vmatprep.subr.bf16.mxu0 0
    %1275 = vmatpush1.bf16.msra.mxu0 0
    %1276 = vmatprep.subr.bf16.mxu0 0
    %1277 = vmatpush1.bf16.msra.mxu0 0
    %1278 = vmatprep.subr.bf16.mxu0 0
    %1279 = vmatpush1.bf16.msra.mxu0 0
    %1280 = vmatprep.subr.bf16.mxu0 0
    %1281 = vmatpush1.bf16.msra.mxu0 0
    %1282 = vmatprep.mubr.bf16.mxu0 0
    %1283 = vmatmul.mubr.bf16.gmra.mrb[0].mxu0 %v989
    %v1284 = vpop.f32.mrb[0].mxu0
    %v1285 = vadd.f32 %v1202, %v1284
    %v1286 = vpop.f32.mrb[0].mxu0
    %v1287 = vadd.f32 %v1204, %v1286
    %v1288 = vpop.f32.mrb[0].mxu0
    %v1289 = vpop.f32.mrb[0].mxu0
    %1290 = vdwg.mxu0
    %v1291 = vmul.f32 %v1244, 0.5
    %v1292 = vtanh.pop %v1291
    %v1293 = vmul.f32 %v1292, 0.5
    %v1294 = vadd.f32 %v1293, 0.5
    %v1295 = vmul.f32 %v1246, 0.5
    %v1296 = vtanh.pop %v1295
    %v1297 = vmul.f32 %v1296, 0.5
    %v1298 = vadd.f32 %v1297, 0.5
    %v1299 = vtanh.pop %v1285
    %v1300 = vmul.f32 %v1287, 0.5
    %v1301 = vtanh.pop %v1300
    %v1302 = vmul.f32 %v1301, 0.5
    %v1303 = vadd.f32 %v1302, 0.5
    %v1304 = vmul.f32 %v1298, %v986
    %v1305 = vmul.f32 %v1294, %v1299
    %v1306 = vadd.f32 %v1304, %v1305
    %v1307 = vtanh.pop %v1306
    %v1308 = vmul.f32 %v1303, %v1307
    %v1309 = vpack.c.bf16 %v1308, %v1308
    %s1310 = scalar_lea.vmem %s2, 3
    %1311 = vst [vmem:[%s1310] sm:$0x1] %v1309
    %v1312 = vld [vmem:[#allocation4] sm:$0xff]
    %v1313 = vld [vmem:[#allocation4 + $0x8] sm:$0xff]
    %v1314 = vld [vmem:[#allocation4 + $0x10] sm:$0xff]
    %v1315 = vld [vmem:[#allocation4 + $0x18] sm:$0xff]
    %v1316 = vld [vmem:[#allocation4 + $0x20] sm:$0xff]
    %v1317 = vld [vmem:[#allocation4 + $0x28] sm:$0xff]
    %v1318 = vld [vmem:[#allocation4 + $0x30] sm:$0xff]
    %v1319 = vld [vmem:[#allocation4 + $0x38] sm:$0xff]
    %v1320 = vld [vmem:[#allocation4 + $0x40] sm:$0xff]
    %v1321 = vld [vmem:[#allocation4 + $0x48] sm:$0xff]
    %v1322 = vld [vmem:[#allocation4 + $0x50] sm:$0xff]
    %v1323 = vld [vmem:[#allocation4 + $0x58] sm:$0xff]
    %v1324 = vld [vmem:[#allocation4 + $0x60] sm:$0xff]
    %v1325 = vld [vmem:[#allocation4 + $0x68] sm:$0xff]
    %v1326 = vld [vmem:[#allocation4 + $0x70] sm:$0xff]
    %v1327 = vld [vmem:[#allocation4 + $0x78] sm:$0xff]
    %v1328 = vld [vmem:[#allocation4 + $0x80] sm:$0xff]
    %v1329 = vld [vmem:[#allocation4 + $0x88] sm:$0xff]
    %v1330 = vld [vmem:[#allocation4 + $0x90] sm:$0xff]
    %v1331 = vld [vmem:[#allocation4 + $0x98] sm:$0xff]
    %v1332 = vld [vmem:[#allocation4 + $0xa0] sm:$0xff]
    %v1333 = vld [vmem:[#allocation4 + $0xa8] sm:$0xff]
    %v1334 = vld [vmem:[#allocation4 + $0xb0] sm:$0xff]
    %v1335 = vld [vmem:[#allocation4 + $0xb8] sm:$0xff]
    %v1336 = vld [vmem:[#allocation4 + $0xc0] sm:$0xff]
    %v1337 = vld [vmem:[#allocation4 + $0xc8] sm:$0xff]
    %v1338 = vld [vmem:[#allocation4 + $0xd0] sm:$0xff]
    %v1339 = vld [vmem:[#allocation4 + $0xd8] sm:$0xff]
    %v1340 = vld [vmem:[#allocation4 + $0xe0] sm:$0xff]
    %v1341 = vld [vmem:[#allocation4 + $0xe8] sm:$0xff]
    %v1342 = vld [vmem:[#allocation4 + $0xf0] sm:$0xff]
    %v1343 = vld [vmem:[#allocation4 + $0xf8] sm:$0xff]
    %s1344 = scalar_lea.vmem %s0, 16
    %v1345 = vld [vmem:[%s1344] sm:$0xf]
    %v1346 = vunpack.c.l.bf16 %v1345
    %v1379 = vunpack.c.l.b16 %v1312
    %v1380 = vunpack.c.h.b16 %v1312
    %v1381 = vunpack.c.l.b16 %v1313
    %v1382 = vunpack.c.h.b16 %v1313
    %v1383 = vunpack.c.l.b16 %v1314
    %v1384 = vunpack.c.h.b16 %v1314
    %v1385 = vunpack.c.l.b16 %v1315
    %v1386 = vunpack.c.h.b16 %v1315
    %v1387 = vunpack.c.l.b16 %v1316
    %v1388 = vunpack.c.h.b16 %v1316
    %v1389 = vunpack.c.l.b16 %v1317
    %v1390 = vunpack.c.h.b16 %v1317
    %v1391 = vunpack.c.l.b16 %v1318
    %v1392 = vunpack.c.h.b16 %v1318
    %v1393 = vunpack.c.l.b16 %v1319
    %v1394 = vunpack.c.h.b16 %v1319
    %v1395 = vunpack.c.l.b16 %v1320
    %v1396 = vunpack.c.h.b16 %v1320
    %v1397 = vunpack.c.l.b16 %v1321
    %v1398 = vunpack.c.h.b16 %v1321
    %v1399 = vunpack.c.l.b16 %v1322
    %v1400 = vunpack.c.h.b16 %v1322
    %v1401 = vunpack.c.l.b16 %v1323
    %v1402 = vunpack.c.h.b16 %v1323
    %v1403 = vunpack.c.l.b16 %v1324
    %v1404 = vunpack.c.h.b16 %v1324
    %v1405 = vunpack.c.l.b16 %v1325
    %v1406 = vunpack.c.h.b16 %v1325
    %v1407 = vunpack.c.l.b16 %v1326
    %v1408 = vunpack.c.h.b16 %v1326
    %v1409 = vunpack.c.l.b16 %v1327
    %v1410 = vunpack.c.h.b16 %v1327
    %v1411 = vunpack.c.l.b16 %v1328
    %v1412 = vunpack.c.h.b16 %v1328
    %v1413 = vunpack.c.l.b16 %v1329
    %v1414 = vunpack.c.h.b16 %v1329
    %v1415 = vunpack.c.l.b16 %v1330
    %v1416 = vunpack.c.h.b16 %v1330
    %v1417 = vunpack.c.l.b16 %v1331
    %v1418 = vunpack.c.h.b16 %v1331
    %v1419 = vunpack.c.l.b16 %v1332
    %v1420 = vunpack.c.h.b16 %v1332
    %v1421 = vunpack.c.l.b16 %v1333
    %v1422 = vunpack.c.h.b16 %v1333
    %v1423 = vunpack.c.l.b16 %v1334
    %v1424 = vunpack.c.h.b16 %v1334
    %v1425 = vunpack.c.l.b16 %v1335
    %v1426 = vunpack.c.h.b16 %v1335
    %v1427 = vunpack.c.l.b16 %v1336
    %v1428 = vunpack.c.h.b16 %v1336
    %v1429 = vunpack.c.l.b16 %v1337
    %v1430 = vunpack.c.h.b16 %v1337
    %v1431 = vunpack.c.l.b16 %v1338
    %v1432 = vunpack.c.h.b16 %v1338
    %v1433 = vunpack.c.l.b16 %v1339
    %v1434 = vunpack.c.h.b16 %v1339
    %v1435 = vunpack.c.l.b16 %v1340
    %v1436 = vunpack.c.h.b16 %v1340
    %v1437 = vunpack.c.l.b16 %v1341
    %v1438 = vunpack.c.h.b16 %v1341
    %v1439 = vunpack.c.l.b16 %v1342
    %v1440 = vunpack.c.h.b16 %v1342
    %v1441 = vunpack.c.l.b16 %v1343
    %v1442 = vunpack.c.h.b16 %v1343
    %v1443 = vpack.c.b16 %v1383, %v1379
    %v1444 = vpack.c.b16 %v1384, %v1380
    %v1445 = vpack.c.b16 %v1385, %v1381
    %v1446 = vpack.c.b16 %v1386, %v1382
    %v1447 = vpack.c.b16 %v1391, %v1387
    %v1448 = vpack.c.b16 %v1392, %v1388
    %v1449 = vpack.c.b16 %v1393, %v1389
    %v1450 = vpack.c.b16 %v1394, %v1390
    %v1451 = vpack.c.b16 %v1399, %v1395
    %v1452 = vpack.c.b16 %v1400, %v1396
    %v1453 = vpack.c.b16 %v1401, %v1397
    %v1454 = vpack.c.b16 %v1402, %v1398
    %v1455 = vpack.c.b16 %v1407, %v1403
    %v1456 = vpack.c.b16 %v1408, %v1404
    %v1457 = vpack.c.b16 %v1409, %v1405
    %v1458 = vpack.c.b16 %v1410, %v1406
    %v1459 = vpack.c.b16 %v1415, %v1411
    %v1460 = vpack.c.b16 %v1416, %v1412
    %v1461 = vpack.c.b16 %v1417, %v1413
    %v1462 = vpack.c.b16 %v1418, %v1414
    %v1463 = vpack.c.b16 %v1423, %v1419
    %v1464 = vpack.c.b16 %v1424, %v1420
    %v1465 = vpack.c.b16 %v1425, %v1421
    %v1466 = vpack.c.b16 %v1426, %v1422
    %v1467 = vpack.c.b16 %v1431, %v1427
    %v1468 = vpack.c.b16 %v1432, %v1428
    %v1469 = vpack.c.b16 %v1433, %v1429
    %v1470 = vpack.c.b16 %v1434, %v1430
    %v1471 = vpack.c.b16 %v1439, %v1435
    %v1472 = vpack.c.b16 %v1440, %v1436
    %v1473 = vpack.c.b16 %v1441, %v1437
    %v1474 = vpack.c.b16 %v1442, %v1438
    %v1508 = vcombine.high %v1346, %v1346
    %v1510 = vunpack.c.l.s4 1983009808
    %v1511 = vunpack.c.0.s8 %v1510
    %v1512 = vlaneseq
    %v1513 = vshrl.u32 %v1512, 7
    %v1514 = vsub.s32 %v1511, %v1513
    %v1515 = vrot.slane %v1346, %v1514
    %v1517 = vunpack.c.l.s4 1983009808
    %v1518 = vunpack.c.0.s8 %v1517
    %v1519 = vlaneseq
    %v1520 = vshrl.u32 %v1519, 7
    %v1521 = vsub.s32 %v1518, %v1520
    %v1522 = vrot.slane %v1508, %v1521
    %v1523 = vcombine.high %v1515, %v1515
    %v1524 = vcombine.high %v1522, %v1522
    %1529 = vmatprep.subr.bf16.mxu0 %v1444
    %1530 = vmatpush1.bf16.msra.mxu0 %v1443
    %1531 = vmatprep.subr.bf16.mxu0 %v1448
    %1532 = vmatpush1.bf16.msra.mxu0 %v1447
    %1533 = vmatprep.subr.bf16.mxu0 %v1452
    %1534 = vmatpush1.bf16.msra.mxu0 %v1451
    %1535 = vmatprep.subr.bf16.mxu0 %v1456
    %1536 = vmatpush1.bf16.msra.mxu0 %v1455
    %1537 = vmatprep.subr.bf16.mxu0 %v1460
    %1538 = vmatpush1.bf16.msra.mxu0 %v1459
    %1539 = vmatprep.subr.bf16.mxu0 %v1464
    %1540 = vmatpush1.bf16.msra.mxu0 %v1463
    %1541 = vmatprep.subr.bf16.mxu0 %v1468
    %1542 = vmatpush1.bf16.msra.mxu0 %v1467
    %1543 = vmatprep.subr.bf16.mxu0 %v1472
    %1544 = vmatpush1.bf16.msra.mxu0 %v1471
    %1545 = vmatprep.subr.bf16.mxu0 0
    %1546 = vmatpush1.bf16.msra.mxu0 0
    %1547 = vmatprep.subr.bf16.mxu0 0
    %1548 = vmatpush1.bf16.msra.mxu0 0
    %1549 = vmatprep.subr.bf16.mxu0 0
    %1550 = vmatpush1.bf16.msra.mxu0 0
    %1551 = vmatprep.subr.bf16.mxu0 0
    %1552 = vmatpush1.bf16.msra.mxu0 0
    %1553 = vmatprep.subr.bf16.mxu0 0
    %1554 = vmatpush1.bf16.msra.mxu0 0
    %1555 = vmatprep.subr.bf16.mxu0 0
    %1556 = vmatpush1.bf16.msra.mxu0 0
    %1557 = vmatprep.subr.bf16.mxu0 0
    %1558 = vmatpush1.bf16.msra.mxu0 0
    %1559 = vmatprep.subr.bf16.mxu0 0
    %1560 = vmatpush1.bf16.msra.mxu0 0
    %1561 = vmatprep.mubr.bf16.mxu0 0
    %1562 = vmatmul.mubr.bf16.gmra.mrb[0].mxu0 %v1309
    %v1563 = vpop.f32.mrb[0].mxu0
    %v1564 = vadd.f32 %v1515, %v1563
    %v1565 = vpop.f32.mrb[0].mxu0
    %v1566 = vadd.f32 %v1523, %v1565
    %v1567 = vpop.f32.mrb[0].mxu0
    %v1568 = vpop.f32.mrb[0].mxu0
    %1569 = vdwg.mxu0
    %1570 = vmatprep.subr.bf16.mxu0 %v1446
    %1571 = vmatpush1.bf16.msra.mxu0 %v1445
    %1572 = vmatprep.subr.bf16.mxu0 %v1450
    %1573 = vmatpush1.bf16.msra.mxu0 %v1449
    %1574 = vmatprep.subr.bf16.mxu0 %v1454
    %1575 = vmatpush1.bf16.msra.mxu0 %v1453
    %1576 = vmatprep.subr.bf16.mxu0 %v1458
    %1577 = vmatpush1.bf16.msra.mxu0 %v1457
    %1578 = vmatprep.subr.bf16.mxu0 %v1462
    %1579 = vmatpush1.bf16.msra.mxu0 %v1461
    %1580 = vmatprep.subr.bf16.mxu0 %v1466
    %1581 = vmatpush1.bf16.msra.mxu0 %v1465
    %1582 = vmatprep.subr.bf16.mxu0 %v1470
    %1583 = vmatpush1.bf16.msra.mxu0 %v1469
    %1584 = vmatprep.subr.bf16.mxu0 %v1474
    %1585 = vmatpush1.bf16.msra.mxu0 %v1473
    %1586 = vmatprep.subr.bf16.mxu0 0
    %1587 = vmatpush1.bf16.msra.mxu0 0
    %1588 = vmatprep.subr.bf16.mxu0 0
    %1589 = vmatpush1.bf16.msra.mxu0 0
    %1590 = vmatprep.subr.bf16.mxu0 0
    %1591 = vmatpush1.bf16.msra.mxu0 0
    %1592 = vmatprep.subr.bf16.mxu0 0
    %1593 = vmatpush1.bf16.msra.mxu0 0
    %1594 = vmatprep.subr.bf16.mxu0 0
    %1595 = vmatpush1.bf16.msra.mxu0 0
    %1596 = vmatprep.subr.bf16.mxu0 0
    %1597 = vmatpush1.bf16.msra.mxu0 0
    %1598 = vmatprep.subr.bf16.mxu0 0
    %1599 = vmatpush1.bf16.msra.mxu0 0
    %1600 = vmatprep.subr.bf16.mxu0 0
    %1601 = vmatpush1.bf16.msra.mxu0 0
    %1602 = vmatprep.mubr.bf16.mxu0 0
    %1603 = vmatmul.mubr.bf16.gmra.mrb[0].mxu0 %v1309
    %v1604 = vpop.f32.mrb[0].mxu0
    %v1605 = vadd.f32 %v1522, %v1604
    %v1606 = vpop.f32.mrb[0].mxu0
    %v1607 = vadd.f32 %v1524, %v1606
    %v1608 = vpop.f32.mrb[0].mxu0
    %v1609 = vpop.f32.mrb[0].mxu0
    %1610 = vdwg.mxu0
    %v1611 = vmul.f32 %v1564, 0.5
    %v1612 = vtanh.pop %v1611
    %v1613 = vmul.f32 %v1612, 0.5
    %v1614 = vadd.f32 %v1613, 0.5
    %v1615 = vmul.f32 %v1566, 0.5
    %v1616 = vtanh.pop %v1615
    %v1617 = vmul.f32 %v1616, 0.5
    %v1618 = vadd.f32 %v1617, 0.5
    %v1619 = vtanh.pop %v1605
    %v1620 = vmul.f32 %v1607, 0.5
    %v1621 = vtanh.pop %v1620
    %v1622 = vmul.f32 %v1621, 0.5
    %v1623 = vadd.f32 %v1622, 0.5
    %v1624 = vmul.f32 %v1618, %v1306
    %v1625 = vmul.f32 %v1614, %v1619
    %v1626 = vadd.f32 %v1624, %v1625
    %v1627 = vtanh.pop %v1626
    %v1628 = vmul.f32 %v1623, %v1627
    %v1629 = vpack.c.bf16 %v1628, %v1628
    %s1630 = scalar_lea.vmem %s2, 4
    %1631 = vst [vmem:[%s1630] sm:$0x1] %v1629
    %v1632 = vld [vmem:[#allocation4] sm:$0xff]
    %v1633 = vld [vmem:[#allocation4 + $0x8] sm:$0xff]
    %v1634 = vld [vmem:[#allocation4 + $0x10] sm:$0xff]
    %v1635 = vld [vmem:[#allocation4 + $0x18] sm:$0xff]
    %v1636 = vld [vmem:[#allocation4 + $0x20] sm:$0xff]
    %v1637 = vld [vmem:[#allocation4 + $0x28] sm:$0xff]
    %v1638 = vld [vmem:[#allocation4 + $0x30] sm:$0xff]
    %v1639 = vld [vmem:[#allocation4 + $0x38] sm:$0xff]
    %v1640 = vld [vmem:[#allocation4 + $0x40] sm:$0xff]
    %v1641 = vld [vmem:[#allocation4 + $0x48] sm:$0xff]
    %v1642 = vld [vmem:[#allocation4 + $0x50] sm:$0xff]
    %v1643 = vld [vmem:[#allocation4 + $0x58] sm:$0xff]
    %v1644 = vld [vmem:[#allocation4 + $0x60] sm:$0xff]
    %v1645 = vld [vmem:[#allocation4 + $0x68] sm:$0xff]
    %v1646 = vld [vmem:[#allocation4 + $0x70] sm:$0xff]
    %v1647 = vld [vmem:[#allocation4 + $0x78] sm:$0xff]
    %v1648 = vld [vmem:[#allocation4 + $0x80] sm:$0xff]
    %v1649 = vld [vmem:[#allocation4 + $0x88] sm:$0xff]
    %v1650 = vld [vmem:[#allocation4 + $0x90] sm:$0xff]
    %v1651 = vld [vmem:[#allocation4 + $0x98] sm:$0xff]
    %v1652 = vld [vmem:[#allocation4 + $0xa0] sm:$0xff]
    %v1653 = vld [vmem:[#allocation4 + $0xa8] sm:$0xff]
    %v1654 = vld [vmem:[#allocation4 + $0xb0] sm:$0xff]
    %v1655 = vld [vmem:[#allocation4 + $0xb8] sm:$0xff]
    %v1656 = vld [vmem:[#allocation4 + $0xc0] sm:$0xff]
    %v1657 = vld [vmem:[#allocation4 + $0xc8] sm:$0xff]
    %v1658 = vld [vmem:[#allocation4 + $0xd0] sm:$0xff]
    %v1659 = vld [vmem:[#allocation4 + $0xd8] sm:$0xff]
    %v1660 = vld [vmem:[#allocation4 + $0xe0] sm:$0xff]
    %v1661 = vld [vmem:[#allocation4 + $0xe8] sm:$0xff]
    %v1662 = vld [vmem:[#allocation4 + $0xf0] sm:$0xff]
    %v1663 = vld [vmem:[#allocation4 + $0xf8] sm:$0xff]
    %s1664 = scalar_lea.vmem %s0, 20
    %v1665 = vld [vmem:[%s1664] sm:$0xf]
    %v1666 = vunpack.c.l.bf16 %v1665
    %v1699 = vunpack.c.l.b16 %v1632
    %v1700 = vunpack.c.h.b16 %v1632
    %v1701 = vunpack.c.l.b16 %v1633
    %v1702 = vunpack.c.h.b16 %v1633
    %v1703 = vunpack.c.l.b16 %v1634
    %v1704 = vunpack.c.h.b16 %v1634
    %v1705 = vunpack.c.l.b16 %v1635
    %v1706 = vunpack.c.h.b16 %v1635
    %v1707 = vunpack.c.l.b16 %v1636
    %v1708 = vunpack.c.h.b16 %v1636
    %v1709 = vunpack.c.l.b16 %v1637
    %v1710 = vunpack.c.h.b16 %v1637
    %v1711 = vunpack.c.l.b16 %v1638
    %v1712 = vunpack.c.h.b16 %v1638
    %v1713 = vunpack.c.l.b16 %v1639
    %v1714 = vunpack.c.h.b16 %v1639
    %v1715 = vunpack.c.l.b16 %v1640
    %v1716 = vunpack.c.h.b16 %v1640
    %v1717 = vunpack.c.l.b16 %v1641
    %v1718 = vunpack.c.h.b16 %v1641
    %v1719 = vunpack.c.l.b16 %v1642
    %v1720 = vunpack.c.h.b16 %v1642
    %v1721 = vunpack.c.l.b16 %v1643
    %v1722 = vunpack.c.h.b16 %v1643
    %v1723 = vunpack.c.l.b16 %v1644
    %v1724 = vunpack.c.h.b16 %v1644
    %v1725 = vunpack.c.l.b16 %v1645
    %v1726 = vunpack.c.h.b16 %v1645
    %v1727 = vunpack.c.l.b16 %v1646
    %v1728 = vunpack.c.h.b16 %v1646
    %v1729 = vunpack.c.l.b16 %v1647
    %v1730 = vunpack.c.h.b16 %v1647
    %v1731 = vunpack.c.l.b16 %v1648
    %v1732 = vunpack.c.h.b16 %v1648
    %v1733 = vunpack.c.l.b16 %v1649
    %v1734 = vunpack.c.h.b16 %v1649
    %v1735 = vunpack.c.l.b16 %v1650
    %v1736 = vunpack.c.h.b16 %v1650
    %v1737 = vunpack.c.l.b16 %v1651
    %v1738 = vunpack.c.h.b16 %v1651
    %v1739 = vunpack.c.l.b16 %v1652
    %v1740 = vunpack.c.h.b16 %v1652
    %v1741 = vunpack.c.l.b16 %v1653
    %v1742 = vunpack.c.h.b16 %v1653
    %v1743 = vunpack.c.l.b16 %v1654
    %v1744 = vunpack.c.h.b16 %v1654
    %v1745 = vunpack.c.l.b16 %v1655
    %v1746 = vunpack.c.h.b16 %v1655
    %v1747 = vunpack.c.l.b16 %v1656
    %v1748 = vunpack.c.h.b16 %v1656
    %v1749 = vunpack.c.l.b16 %v1657
    %v1750 = vunpack.c.h.b16 %v1657
    %v1751 = vunpack.c.l.b16 %v1658
    %v1752 = vunpack.c.h.b16 %v1658
    %v1753 = vunpack.c.l.b16 %v1659
    %v1754 = vunpack.c.h.b16 %v1659
    %v1755 = vunpack.c.l.b16 %v1660
    %v1756 = vunpack.c.h.b16 %v1660
    %v1757 = vunpack.c.l.b16 %v1661
    %v1758 = vunpack.c.h.b16 %v1661
    %v1759 = vunpack.c.l.b16 %v1662
    %v1760 = vunpack.c.h.b16 %v1662
    %v1761 = vunpack.c.l.b16 %v1663
    %v1762 = vunpack.c.h.b16 %v1663
    %v1763 = vpack.c.b16 %v1703, %v1699
    %v1764 = vpack.c.b16 %v1704, %v1700
    %v1765 = vpack.c.b16 %v1705, %v1701
    %v1766 = vpack.c.b16 %v1706, %v1702
    %v1767 = vpack.c.b16 %v1711, %v1707
    %v1768 = vpack.c.b16 %v1712, %v1708
    %v1769 = vpack.c.b16 %v1713, %v1709
    %v1770 = vpack.c.b16 %v1714, %v1710
    %v1771 = vpack.c.b16 %v1719, %v1715
    %v1772 = vpack.c.b16 %v1720, %v1716
    %v1773 = vpack.c.b16 %v1721, %v1717
    %v1774 = vpack.c.b16 %v1722, %v1718
    %v1775 = vpack.c.b16 %v1727, %v1723
    %v1776 = vpack.c.b16 %v1728, %v1724
    %v1777 = vpack.c.b16 %v1729, %v1725
    %v1778 = vpack.c.b16 %v1730, %v1726
    %v1779 = vpack.c.b16 %v1735, %v1731
    %v1780 = vpack.c.b16 %v1736, %v1732
    %v1781 = vpack.c.b16 %v1737, %v1733
    %v1782 = vpack.c.b16 %v1738, %v1734
    %v1783 = vpack.c.b16 %v1743, %v1739
    %v1784 = vpack.c.b16 %v1744, %v1740
    %v1785 = vpack.c.b16 %v1745, %v1741
    %v1786 = vpack.c.b16 %v1746, %v1742
    %v1787 = vpack.c.b16 %v1751, %v1747
    %v1788 = vpack.c.b16 %v1752, %v1748
    %v1789 = vpack.c.b16 %v1753, %v1749
    %v1790 = vpack.c.b16 %v1754, %v1750
    %v1791 = vpack.c.b16 %v1759, %v1755
    %v1792 = vpack.c.b16 %v1760, %v1756
    %v1793 = vpack.c.b16 %v1761, %v1757
    %v1794 = vpack.c.b16 %v1762, %v1758
    %v1828 = vcombine.high %v1666, %v1666
    %v1830 = vunpack.c.l.s4 1983009808
    %v1831 = vunpack.c.0.s8 %v1830
    %v1832 = vlaneseq
    %v1833 = vshrl.u32 %v1832, 7
    %v1834 = vsub.s32 %v1831, %v1833
    %v1835 = vrot.slane %v1666, %v1834
    %v1837 = vunpack.c.l.s4 1983009808
    %v1838 = vunpack.c.0.s8 %v1837
    %v1839 = vlaneseq
    %v1840 = vshrl.u32 %v1839, 7
    %v1841 = vsub.s32 %v1838, %v1840
    %v1842 = vrot.slane %v1828, %v1841
    %v1843 = vcombine.high %v1835, %v1835
    %v1844 = vcombine.high %v1842, %v1842
    %1849 = vmatprep.subr.bf16.mxu0 %v1764
    %1850 = vmatpush1.bf16.msra.mxu0 %v1763
    %1851 = vmatprep.subr.bf16.mxu0 %v1768
    %1852 = vmatpush1.bf16.msra.mxu0 %v1767
    %1853 = vmatprep.subr.bf16.mxu0 %v1772
    %1854 = vmatpush1.bf16.msra.mxu0 %v1771
    %1855 = vmatprep.subr.bf16.mxu0 %v1776
    %1856 = vmatpush1.bf16.msra.mxu0 %v1775
    %1857 = vmatprep.subr.bf16.mxu0 %v1780
    %1858 = vmatpush1.bf16.msra.mxu0 %v1779
    %1859 = vmatprep.subr.bf16.mxu0 %v1784
    %1860 = vmatpush1.bf16.msra.mxu0 %v1783
    %1861 = vmatprep.subr.bf16.mxu0 %v1788
    %1862 = vmatpush1.bf16.msra.mxu0 %v1787
    %1863 = vmatprep.subr.bf16.mxu0 %v1792
    %1864 = vmatpush1.bf16.msra.mxu0 %v1791
    %1865 = vmatprep.subr.bf16.mxu0 0
    %1866 = vmatpush1.bf16.msra.mxu0 0
    %1867 = vmatprep.subr.bf16.mxu0 0
    %1868 = vmatpush1.bf16.msra.mxu0 0
    %1869 = vmatprep.subr.bf16.mxu0 0
    %1870 = vmatpush1.bf16.msra.mxu0 0
    %1871 = vmatprep.subr.bf16.mxu0 0
    %1872 = vmatpush1.bf16.msra.mxu0 0
    %1873 = vmatprep.subr.bf16.mxu0 0
    %1874 = vmatpush1.bf16.msra.mxu0 0
    %1875 = vmatprep.subr.bf16.mxu0 0
    %1876 = vmatpush1.bf16.msra.mxu0 0
    %1877 = vmatprep.subr.bf16.mxu0 0
    %1878 = vmatpush1.bf16.msra.mxu0 0
    %1879 = vmatprep.subr.bf16.mxu0 0
    %1880 = vmatpush1.bf16.msra.mxu0 0
    %1881 = vmatprep.mubr.bf16.mxu0 0
    %1882 = vmatmul.mubr.bf16.gmra.mrb[0].mxu0 %v1629
    %v1883 = vpop.f32.mrb[0].mxu0
    %v1884 = vadd.f32 %v1835, %v1883
    %v1885 = vpop.f32.mrb[0].mxu0
    %v1886 = vadd.f32 %v1843, %v1885
    %v1887 = vpop.f32.mrb[0].mxu0
    %v1888 = vpop.f32.mrb[0].mxu0
    %1889 = vdwg.mxu0
    %1890 = vmatprep.subr.bf16.mxu0 %v1766
    %1891 = vmatpush1.bf16.msra.mxu0 %v1765
    %1892 = vmatprep.subr.bf16.mxu0 %v1770
    %1893 = vmatpush1.bf16.msra.mxu0 %v1769
    %1894 = vmatprep.subr.bf16.mxu0 %v1774
    %1895 = vmatpush1.bf16.msra.mxu0 %v1773
    %1896 = vmatprep.subr.bf16.mxu0 %v1778
    %1897 = vmatpush1.bf16.msra.mxu0 %v1777
    %1898 = vmatprep.subr.bf16.mxu0 %v1782
    %1899 = vmatpush1.bf16.msra.mxu0 %v1781
    %1900 = vmatprep.subr.bf16.mxu0 %v1786
    %1901 = vmatpush1.bf16.msra.mxu0 %v1785
    %1902 = vmatprep.subr.bf16.mxu0 %v1790
    %1903 = vmatpush1.bf16.msra.mxu0 %v1789
    %1904 = vmatprep.subr.bf16.mxu0 %v1794
    %1905 = vmatpush1.bf16.msra.mxu0 %v1793
    %1906 = vmatprep.subr.bf16.mxu0 0
    %1907 = vmatpush1.bf16.msra.mxu0 0
    %1908 = vmatprep.subr.bf16.mxu0 0
    %1909 = vmatpush1.bf16.msra.mxu0 0
    %1910 = vmatprep.subr.bf16.mxu0 0
    %1911 = vmatpush1.bf16.msra.mxu0 0
    %1912 = vmatprep.subr.bf16.mxu0 0
    %1913 = vmatpush1.bf16.msra.mxu0 0
    %1914 = vmatprep.subr.bf16.mxu0 0
    %1915 = vmatpush1.bf16.msra.mxu0 0
    %1916 = vmatprep.subr.bf16.mxu0 0
    %1917 = vmatpush1.bf16.msra.mxu0 0
    %1918 = vmatprep.subr.bf16.mxu0 0
    %1919 = vmatpush1.bf16.msra.mxu0 0
    %1920 = vmatprep.subr.bf16.mxu0 0
    %1921 = vmatpush1.bf16.msra.mxu0 0
    %1922 = vmatprep.mubr.bf16.mxu0 0
    %1923 = vmatmul.mubr.bf16.gmra.mrb[0].mxu0 %v1629
    %v1924 = vpop.f32.mrb[0].mxu0
    %v1925 = vadd.f32 %v1842, %v1924
    %v1926 = vpop.f32.mrb[0].mxu0
    %v1927 = vadd.f32 %v1844, %v1926
    %v1928 = vpop.f32.mrb[0].mxu0
    %v1929 = vpop.f32.mrb[0].mxu0
    %1930 = vdwg.mxu0
    %v1931 = vmul.f32 %v1884, 0.5
    %v1932 = vtanh.pop %v1931
    %v1933 = vmul.f32 %v1932, 0.5
    %v1934 = vadd.f32 %v1933, 0.5
    %v1935 = vmul.f32 %v1886, 0.5
    %v1936 = vtanh.pop %v1935
    %v1937 = vmul.f32 %v1936, 0.5
    %v1938 = vadd.f32 %v1937, 0.5
    %v1939 = vtanh.pop %v1925
    %v1940 = vmul.f32 %v1927, 0.5
    %v1941 = vtanh.pop %v1940
    %v1942 = vmul.f32 %v1941, 0.5
    %v1943 = vadd.f32 %v1942, 0.5
    %v1944 = vmul.f32 %v1938, %v1626
    %v1945 = vmul.f32 %v1934, %v1939
    %v1946 = vadd.f32 %v1944, %v1945
    %v1947 = vtanh.pop %v1946
    %v1948 = vmul.f32 %v1943, %v1947
    %v1949 = vpack.c.bf16 %v1948, %v1948
    %s1950 = scalar_lea.vmem %s2, 5
    %1951 = vst [vmem:[%s1950] sm:$0x1] %v1949
    %v1952 = vld [vmem:[#allocation4] sm:$0xff]
    %v1953 = vld [vmem:[#allocation4 + $0x8] sm:$0xff]
    %v1954 = vld [vmem:[#allocation4 + $0x10] sm:$0xff]
    %v1955 = vld [vmem:[#allocation4 + $0x18] sm:$0xff]
    %v1956 = vld [vmem:[#allocation4 + $0x20] sm:$0xff]
    %v1957 = vld [vmem:[#allocation4 + $0x28] sm:$0xff]
    %v1958 = vld [vmem:[#allocation4 + $0x30] sm:$0xff]
    %v1959 = vld [vmem:[#allocation4 + $0x38] sm:$0xff]
    %v1960 = vld [vmem:[#allocation4 + $0x40] sm:$0xff]
    %v1961 = vld [vmem:[#allocation4 + $0x48] sm:$0xff]
    %v1962 = vld [vmem:[#allocation4 + $0x50] sm:$0xff]
    %v1963 = vld [vmem:[#allocation4 + $0x58] sm:$0xff]
    %v1964 = vld [vmem:[#allocation4 + $0x60] sm:$0xff]
    %v1965 = vld [vmem:[#allocation4 + $0x68] sm:$0xff]
    %v1966 = vld [vmem:[#allocation4 + $0x70] sm:$0xff]
    %v1967 = vld [vmem:[#allocation4 + $0x78] sm:$0xff]
    %v1968 = vld [vmem:[#allocation4 + $0x80] sm:$0xff]
    %v1969 = vld [vmem:[#allocation4 + $0x88] sm:$0xff]
    %v1970 = vld [vmem:[#allocation4 + $0x90] sm:$0xff]
    %v1971 = vld [vmem:[#allocation4 + $0x98] sm:$0xff]
    %v1972 = vld [vmem:[#allocation4 + $0xa0] sm:$0xff]
    %v1973 = vld [vmem:[#allocation4 + $0xa8] sm:$0xff]
    %v1974 = vld [vmem:[#allocation4 + $0xb0] sm:$0xff]
    %v1975 = vld [vmem:[#allocation4 + $0xb8] sm:$0xff]
    %v1976 = vld [vmem:[#allocation4 + $0xc0] sm:$0xff]
    %v1977 = vld [vmem:[#allocation4 + $0xc8] sm:$0xff]
    %v1978 = vld [vmem:[#allocation4 + $0xd0] sm:$0xff]
    %v1979 = vld [vmem:[#allocation4 + $0xd8] sm:$0xff]
    %v1980 = vld [vmem:[#allocation4 + $0xe0] sm:$0xff]
    %v1981 = vld [vmem:[#allocation4 + $0xe8] sm:$0xff]
    %v1982 = vld [vmem:[#allocation4 + $0xf0] sm:$0xff]
    %v1983 = vld [vmem:[#allocation4 + $0xf8] sm:$0xff]
    %s1984 = scalar_lea.vmem %s0, 24
    %v1985 = vld [vmem:[%s1984] sm:$0xf]
    %v1986 = vunpack.c.l.bf16 %v1985
    %v2019 = vunpack.c.l.b16 %v1952
    %v2020 = vunpack.c.h.b16 %v1952
    %v2021 = vunpack.c.l.b16 %v1953
    %v2022 = vunpack.c.h.b16 %v1953
    %v2023 = vunpack.c.l.b16 %v1954
    %v2024 = vunpack.c.h.b16 %v1954
    %v2025 = vunpack.c.l.b16 %v1955
    %v2026 = vunpack.c.h.b16 %v1955
    %v2027 = vunpack.c.l.b16 %v1956
    %v2028 = vunpack.c.h.b16 %v1956
    %v2029 = vunpack.c.l.b16 %v1957
    %v2030 = vunpack.c.h.b16 %v1957
    %v2031 = vunpack.c.l.b16 %v1958
    %v2032 = vunpack.c.h.b16 %v1958
    %v2033 = vunpack.c.l.b16 %v1959
    %v2034 = vunpack.c.h.b16 %v1959
    %v2035 = vunpack.c.l.b16 %v1960
    %v2036 = vunpack.c.h.b16 %v1960
    %v2037 = vunpack.c.l.b16 %v1961
    %v2038 = vunpack.c.h.b16 %v1961
    %v2039 = vunpack.c.l.b16 %v1962
    %v2040 = vunpack.c.h.b16 %v1962
    %v2041 = vunpack.c.l.b16 %v1963
    %v2042 = vunpack.c.h.b16 %v1963
    %v2043 = vunpack.c.l.b16 %v1964
    %v2044 = vunpack.c.h.b16 %v1964
    %v2045 = vunpack.c.l.b16 %v1965
    %v2046 = vunpack.c.h.b16 %v1965
    %v2047 = vunpack.c.l.b16 %v1966
    %v2048 = vunpack.c.h.b16 %v1966
    %v2049 = vunpack.c.l.b16 %v1967
    %v2050 = vunpack.c.h.b16 %v1967
    %v2051 = vunpack.c.l.b16 %v1968
    %v2052 = vunpack.c.h.b16 %v1968
    %v2053 = vunpack.c.l.b16 %v1969
    %v2054 = vunpack.c.h.b16 %v1969
    %v2055 = vunpack.c.l.b16 %v1970
    %v2056 = vunpack.c.h.b16 %v1970
    %v2057 = vunpack.c.l.b16 %v1971
    %v2058 = vunpack.c.h.b16 %v1971
    %v2059 = vunpack.c.l.b16 %v1972
    %v2060 = vunpack.c.h.b16 %v1972
    %v2061 = vunpack.c.l.b16 %v1973
    %v2062 = vunpack.c.h.b16 %v1973
    %v2063 = vunpack.c.l.b16 %v1974
    %v2064 = vunpack.c.h.b16 %v1974
    %v2065 = vunpack.c.l.b16 %v1975
    %v2066 = vunpack.c.h.b16 %v1975
    %v2067 = vunpack.c.l.b16 %v1976
    %v2068 = vunpack.c.h.b16 %v1976
    %v2069 = vunpack.c.l.b16 %v1977
    %v2070 = vunpack.c.h.b16 %v1977
    %v2071 = vunpack.c.l.b16 %v1978
    %v2072 = vunpack.c.h.b16 %v1978
    %v2073 = vunpack.c.l.b16 %v1979
    %v2074 = vunpack.c.h.b16 %v1979
    %v2075 = vunpack.c.l.b16 %v1980
    %v2076 = vunpack.c.h.b16 %v1980
    %v2077 = vunpack.c.l.b16 %v1981
    %v2078 = vunpack.c.h.b16 %v1981
    %v2079 = vunpack.c.l.b16 %v1982
    %v2080 = vunpack.c.h.b16 %v1982
    %v2081 = vunpack.c.l.b16 %v1983
    %v2082 = vunpack.c.h.b16 %v1983
    %v2083 = vpack.c.b16 %v2023, %v2019
    %v2084 = vpack.c.b16 %v2024, %v2020
    %v2085 = vpack.c.b16 %v2025, %v2021
    %v2086 = vpack.c.b16 %v2026, %v2022
    %v2087 = vpack.c.b16 %v2031, %v2027
    %v2088 = vpack.c.b16 %v2032, %v2028
    %v2089 = vpack.c.b16 %v2033, %v2029
    %v2090 = vpack.c.b16 %v2034, %v2030
    %v2091 = vpack.c.b16 %v2039, %v2035
    %v2092 = vpack.c.b16 %v2040, %v2036
    %v2093 = vpack.c.b16 %v2041, %v2037
    %v2094 = vpack.c.b16 %v2042, %v2038
    %v2095 = vpack.c.b16 %v2047, %v2043
    %v2096 = vpack.c.b16 %v2048, %v2044
    %v2097 = vpack.c.b16 %v2049, %v2045
    %v2098 = vpack.c.b16 %v2050, %v2046
    %v2099 = vpack.c.b16 %v2055, %v2051
    %v2100 = vpack.c.b16 %v2056, %v2052
    %v2101 = vpack.c.b16 %v2057, %v2053
    %v2102 = vpack.c.b16 %v2058, %v2054
    %v2103 = vpack.c.b16 %v2063, %v2059
    %v2104 = vpack.c.b16 %v2064, %v2060
    %v2105 = vpack.c.b16 %v2065, %v2061
    %v2106 = vpack.c.b16 %v2066, %v2062
    %v2107 = vpack.c.b16 %v2071, %v2067
    %v2108 = vpack.c.b16 %v2072, %v2068
    %v2109 = vpack.c.b16 %v2073, %v2069
    %v2110 = vpack.c.b16 %v2074, %v2070
    %v2111 = vpack.c.b16 %v2079, %v2075
    %v2112 = vpack.c.b16 %v2080, %v2076
    %v2113 = vpack.c.b16 %v2081, %v2077
    %v2114 = vpack.c.b16 %v2082, %v2078
    %v2148 = vcombine.high %v1986, %v1986
    %v2150 = vunpack.c.l.s4 1983009808
    %v2151 = vunpack.c.0.s8 %v2150
    %v2152 = vlaneseq
    %v2153 = vshrl.u32 %v2152, 7
    %v2154 = vsub.s32 %v2151, %v2153
    %v2155 = vrot.slane %v1986, %v2154
    %v2157 = vunpack.c.l.s4 1983009808
    %v2158 = vunpack.c.0.s8 %v2157
    %v2159 = vlaneseq
    %v2160 = vshrl.u32 %v2159, 7
    %v2161 = vsub.s32 %v2158, %v2160
    %v2162 = vrot.slane %v2148, %v2161
    %v2163 = vcombine.high %v2155, %v2155
    %v2164 = vcombine.high %v2162, %v2162
    %2169 = vmatprep.subr.bf16.mxu0 %v2084
    %2170 = vmatpush1.bf16.msra.mxu0 %v2083
    %2171 = vmatprep.subr.bf16.mxu0 %v2088
    %2172 = vmatpush1.bf16.msra.mxu0 %v2087
    %2173 = vmatprep.subr.bf16.mxu0 %v2092
    %2174 = vmatpush1.bf16.msra.mxu0 %v2091
    %2175 = vmatprep.subr.bf16.mxu0 %v2096
    %2176 = vmatpush1.bf16.msra.mxu0 %v2095
    %2177 = vmatprep.subr.bf16.mxu0 %v2100
    %2178 = vmatpush1.bf16.msra.mxu0 %v2099
    %2179 = vmatprep.subr.bf16.mxu0 %v2104
    %2180 = vmatpush1.bf16.msra.mxu0 %v2103
    %2181 = vmatprep.subr.bf16.mxu0 %v2108
    %2182 = vmatpush1.bf16.msra.mxu0 %v2107
    %2183 = vmatprep.subr.bf16.mxu0 %v2112
    %2184 = vmatpush1.bf16.msra.mxu0 %v2111
    %2185 = vmatprep.subr.bf16.mxu0 0
    %2186 = vmatpush1.bf16.msra.mxu0 0
    %2187 = vmatprep.subr.bf16.mxu0 0
    %2188 = vmatpush1.bf16.msra.mxu0 0
    %2189 = vmatprep.subr.bf16.mxu0 0
    %2190 = vmatpush1.bf16.msra.mxu0 0
    %2191 = vmatprep.subr.bf16.mxu0 0
    %2192 = vmatpush1.bf16.msra.mxu0 0
    %2193 = vmatprep.subr.bf16.mxu0 0
    %2194 = vmatpush1.bf16.msra.mxu0 0
    %2195 = vmatprep.subr.bf16.mxu0 0
    %2196 = vmatpush1.bf16.msra.mxu0 0
    %2197 = vmatprep.subr.bf16.mxu0 0
    %2198 = vmatpush1.bf16.msra.mxu0 0
    %2199 = vmatprep.subr.bf16.mxu0 0
    %2200 = vmatpush1.bf16.msra.mxu0 0
    %2201 = vmatprep.mubr.bf16.mxu0 0
    %2202 = vmatmul.mubr.bf16.gmra.mrb[0].mxu0 %v1949
    %v2203 = vpop.f32.mrb[0].mxu0
    %v2204 = vadd.f32 %v2155, %v2203
    %v2205 = vpop.f32.mrb[0].mxu0
    %v2206 = vadd.f32 %v2163, %v2205
    %v2207 = vpop.f32.mrb[0].mxu0
    %v2208 = vpop.f32.mrb[0].mxu0
    %2209 = vdwg.mxu0
    %2210 = vmatprep.subr.bf16.mxu0 %v2086
    %2211 = vmatpush1.bf16.msra.mxu0 %v2085
    %2212 = vmatprep.subr.bf16.mxu0 %v2090
    %2213 = vmatpush1.bf16.msra.mxu0 %v2089
    %2214 = vmatprep.subr.bf16.mxu0 %v2094
    %2215 = vmatpush1.bf16.msra.mxu0 %v2093
    %2216 = vmatprep.subr.bf16.mxu0 %v2098
    %2217 = vmatpush1.bf16.msra.mxu0 %v2097
    %2218 = vmatprep.subr.bf16.mxu0 %v2102
    %2219 = vmatpush1.bf16.msra.mxu0 %v2101
    %2220 = vmatprep.subr.bf16.mxu0 %v2106
    %2221 = vmatpush1.bf16.msra.mxu0 %v2105
    %2222 = vmatprep.subr.bf16.mxu0 %v2110
    %2223 = vmatpush1.bf16.msra.mxu0 %v2109
    %2224 = vmatprep.subr.bf16.mxu0 %v2114
    %2225 = vmatpush1.bf16.msra.mxu0 %v2113
    %2226 = vmatprep.subr.bf16.mxu0 0
    %2227 = vmatpush1.bf16.msra.mxu0 0
    %2228 = vmatprep.subr.bf16.mxu0 0
    %2229 = vmatpush1.bf16.msra.mxu0 0
    %2230 = vmatprep.subr.bf16.mxu0 0
    %2231 = vmatpush1.bf16.msra.mxu0 0
    %2232 = vmatprep.subr.bf16.mxu0 0
    %2233 = vmatpush1.bf16.msra.mxu0 0
    %2234 = vmatprep.subr.bf16.mxu0 0
    %2235 = vmatpush1.bf16.msra.mxu0 0
    %2236 = vmatprep.subr.bf16.mxu0 0
    %2237 = vmatpush1.bf16.msra.mxu0 0
    %2238 = vmatprep.subr.bf16.mxu0 0
    %2239 = vmatpush1.bf16.msra.mxu0 0
    %2240 = vmatprep.subr.bf16.mxu0 0
    %2241 = vmatpush1.bf16.msra.mxu0 0
    %2242 = vmatprep.mubr.bf16.mxu0 0
    %2243 = vmatmul.mubr.bf16.gmra.mrb[0].mxu0 %v1949
    %v2244 = vpop.f32.mrb[0].mxu0
    %v2245 = vadd.f32 %v2162, %v2244
    %v2246 = vpop.f32.mrb[0].mxu0
    %v2247 = vadd.f32 %v2164, %v2246
    %v2248 = vpop.f32.mrb[0].mxu0
    %v2249 = vpop.f32.mrb[0].mxu0
    %2250 = vdwg.mxu0
    %v2251 = vmul.f32 %v2204, 0.5
    %v2252 = vtanh.pop %v2251
    %v2253 = vmul.f32 %v2252, 0.5
    %v2254 = vadd.f32 %v2253, 0.5
    %v2255 = vmul.f32 %v2206, 0.5
    %v2256 = vtanh.pop %v2255
    %v2257 = vmul.f32 %v2256, 0.5
    %v2258 = vadd.f32 %v2257, 0.5
    %v2259 = vtanh.pop %v2245
    %v2260 = vmul.f32 %v2247, 0.5
    %v2261 = vtanh.pop %v2260
    %v2262 = vmul.f32 %v2261, 0.5
    %v2263 = vadd.f32 %v2262, 0.5
    %v2264 = vmul.f32 %v2258, %v1946
    %v2265 = vmul.f32 %v2254, %v2259
    %v2266 = vadd.f32 %v2264, %v2265
    %v2267 = vtanh.pop %v2266
    %v2268 = vmul.f32 %v2263, %v2267
    %v2269 = vpack.c.bf16 %v2268, %v2268
    %s2270 = scalar_lea.vmem %s2, 6
    %2271 = vst [vmem:[%s2270] sm:$0x1] %v2269
    %v2272 = vld [vmem:[#allocation4] sm:$0xff]
    %v2273 = vld [vmem:[#allocation4 + $0x8] sm:$0xff]
    %v2274 = vld [vmem:[#allocation4 + $0x10] sm:$0xff]
    %v2275 = vld [vmem:[#allocation4 + $0x18] sm:$0xff]
    %v2276 = vld [vmem:[#allocation4 + $0x20] sm:$0xff]
    %v2277 = vld [vmem:[#allocation4 + $0x28] sm:$0xff]
    %v2278 = vld [vmem:[#allocation4 + $0x30] sm:$0xff]
    %v2279 = vld [vmem:[#allocation4 + $0x38] sm:$0xff]
    %v2280 = vld [vmem:[#allocation4 + $0x40] sm:$0xff]
    %v2281 = vld [vmem:[#allocation4 + $0x48] sm:$0xff]
    %v2282 = vld [vmem:[#allocation4 + $0x50] sm:$0xff]
    %v2283 = vld [vmem:[#allocation4 + $0x58] sm:$0xff]
    %v2284 = vld [vmem:[#allocation4 + $0x60] sm:$0xff]
    %v2285 = vld [vmem:[#allocation4 + $0x68] sm:$0xff]
    %v2286 = vld [vmem:[#allocation4 + $0x70] sm:$0xff]
    %v2287 = vld [vmem:[#allocation4 + $0x78] sm:$0xff]
    %v2288 = vld [vmem:[#allocation4 + $0x80] sm:$0xff]
    %v2289 = vld [vmem:[#allocation4 + $0x88] sm:$0xff]
    %v2290 = vld [vmem:[#allocation4 + $0x90] sm:$0xff]
    %v2291 = vld [vmem:[#allocation4 + $0x98] sm:$0xff]
    %v2292 = vld [vmem:[#allocation4 + $0xa0] sm:$0xff]
    %v2293 = vld [vmem:[#allocation4 + $0xa8] sm:$0xff]
    %v2294 = vld [vmem:[#allocation4 + $0xb0] sm:$0xff]
    %v2295 = vld [vmem:[#allocation4 + $0xb8] sm:$0xff]
    %v2296 = vld [vmem:[#allocation4 + $0xc0] sm:$0xff]
    %v2297 = vld [vmem:[#allocation4 + $0xc8] sm:$0xff]
    %v2298 = vld [vmem:[#allocation4 + $0xd0] sm:$0xff]
    %v2299 = vld [vmem:[#allocation4 + $0xd8] sm:$0xff]
    %v2300 = vld [vmem:[#allocation4 + $0xe0] sm:$0xff]
    %v2301 = vld [vmem:[#allocation4 + $0xe8] sm:$0xff]
    %v2302 = vld [vmem:[#allocation4 + $0xf0] sm:$0xff]
    %v2303 = vld [vmem:[#allocation4 + $0xf8] sm:$0xff]
    %s2304 = scalar_lea.vmem %s0, 28
    %v2305 = vld [vmem:[%s2304] sm:$0xf]
    %v2306 = vunpack.c.l.bf16 %v2305
    %v2339 = vunpack.c.l.b16 %v2272
    %v2340 = vunpack.c.h.b16 %v2272
    %v2341 = vunpack.c.l.b16 %v2273
    %v2342 = vunpack.c.h.b16 %v2273
    %v2343 = vunpack.c.l.b16 %v2274
    %v2344 = vunpack.c.h.b16 %v2274
    %v2345 = vunpack.c.l.b16 %v2275
    %v2346 = vunpack.c.h.b16 %v2275
    %v2347 = vunpack.c.l.b16 %v2276
    %v2348 = vunpack.c.h.b16 %v2276
    %v2349 = vunpack.c.l.b16 %v2277
    %v2350 = vunpack.c.h.b16 %v2277
    %v2351 = vunpack.c.l.b16 %v2278
    %v2352 = vunpack.c.h.b16 %v2278
    %v2353 = vunpack.c.l.b16 %v2279
    %v2354 = vunpack.c.h.b16 %v2279
    %v2355 = vunpack.c.l.b16 %v2280
    %v2356 = vunpack.c.h.b16 %v2280
    %v2357 = vunpack.c.l.b16 %v2281
    %v2358 = vunpack.c.h.b16 %v2281
    %v2359 = vunpack.c.l.b16 %v2282
    %v2360 = vunpack.c.h.b16 %v2282
    %v2361 = vunpack.c.l.b16 %v2283
    %v2362 = vunpack.c.h.b16 %v2283
    %v2363 = vunpack.c.l.b16 %v2284
    %v2364 = vunpack.c.h.b16 %v2284
    %v2365 = vunpack.c.l.b16 %v2285
    %v2366 = vunpack.c.h.b16 %v2285
    %v2367 = vunpack.c.l.b16 %v2286
    %v2368 = vunpack.c.h.b16 %v2286
    %v2369 = vunpack.c.l.b16 %v2287
    %v2370 = vunpack.c.h.b16 %v2287
    %v2371 = vunpack.c.l.b16 %v2288
    %v2372 = vunpack.c.h.b16 %v2288
    %v2373 = vunpack.c.l.b16 %v2289
    %v2374 = vunpack.c.h.b16 %v2289
    %v2375 = vunpack.c.l.b16 %v2290
    %v2376 = vunpack.c.h.b16 %v2290
    %v2377 = vunpack.c.l.b16 %v2291
    %v2378 = vunpack.c.h.b16 %v2291
    %v2379 = vunpack.c.l.b16 %v2292
    %v2380 = vunpack.c.h.b16 %v2292
    %v2381 = vunpack.c.l.b16 %v2293
    %v2382 = vunpack.c.h.b16 %v2293
    %v2383 = vunpack.c.l.b16 %v2294
    %v2384 = vunpack.c.h.b16 %v2294
    %v2385 = vunpack.c.l.b16 %v2295
    %v2386 = vunpack.c.h.b16 %v2295
    %v2387 = vunpack.c.l.b16 %v2296
    %v2388 = vunpack.c.h.b16 %v2296
    %v2389 = vunpack.c.l.b16 %v2297
    %v2390 = vunpack.c.h.b16 %v2297
    %v2391 = vunpack.c.l.b16 %v2298
    %v2392 = vunpack.c.h.b16 %v2298
    %v2393 = vunpack.c.l.b16 %v2299
    %v2394 = vunpack.c.h.b16 %v2299
    %v2395 = vunpack.c.l.b16 %v2300
    %v2396 = vunpack.c.h.b16 %v2300
    %v2397 = vunpack.c.l.b16 %v2301
    %v2398 = vunpack.c.h.b16 %v2301
    %v2399 = vunpack.c.l.b16 %v2302
    %v2400 = vunpack.c.h.b16 %v2302
    %v2401 = vunpack.c.l.b16 %v2303
    %v2402 = vunpack.c.h.b16 %v2303
    %v2403 = vpack.c.b16 %v2343, %v2339
    %v2404 = vpack.c.b16 %v2344, %v2340
    %v2405 = vpack.c.b16 %v2345, %v2341
    %v2406 = vpack.c.b16 %v2346, %v2342
    %v2407 = vpack.c.b16 %v2351, %v2347
    %v2408 = vpack.c.b16 %v2352, %v2348
    %v2409 = vpack.c.b16 %v2353, %v2349
    %v2410 = vpack.c.b16 %v2354, %v2350
    %v2411 = vpack.c.b16 %v2359, %v2355
    %v2412 = vpack.c.b16 %v2360, %v2356
    %v2413 = vpack.c.b16 %v2361, %v2357
    %v2414 = vpack.c.b16 %v2362, %v2358
    %v2415 = vpack.c.b16 %v2367, %v2363
    %v2416 = vpack.c.b16 %v2368, %v2364
    %v2417 = vpack.c.b16 %v2369, %v2365
    %v2418 = vpack.c.b16 %v2370, %v2366
    %v2419 = vpack.c.b16 %v2375, %v2371
    %v2420 = vpack.c.b16 %v2376, %v2372
    %v2421 = vpack.c.b16 %v2377, %v2373
    %v2422 = vpack.c.b16 %v2378, %v2374
    %v2423 = vpack.c.b16 %v2383, %v2379
    %v2424 = vpack.c.b16 %v2384, %v2380
    %v2425 = vpack.c.b16 %v2385, %v2381
    %v2426 = vpack.c.b16 %v2386, %v2382
    %v2427 = vpack.c.b16 %v2391, %v2387
    %v2428 = vpack.c.b16 %v2392, %v2388
    %v2429 = vpack.c.b16 %v2393, %v2389
    %v2430 = vpack.c.b16 %v2394, %v2390
    %v2431 = vpack.c.b16 %v2399, %v2395
    %v2432 = vpack.c.b16 %v2400, %v2396
    %v2433 = vpack.c.b16 %v2401, %v2397
    %v2434 = vpack.c.b16 %v2402, %v2398
    %v2468 = vcombine.high %v2306, %v2306
    %v2470 = vunpack.c.l.s4 1983009808
    %v2471 = vunpack.c.0.s8 %v2470
    %v2472 = vlaneseq
    %v2473 = vshrl.u32 %v2472, 7
    %v2474 = vsub.s32 %v2471, %v2473
    %v2475 = vrot.slane %v2306, %v2474
    %v2477 = vunpack.c.l.s4 1983009808
    %v2478 = vunpack.c.0.s8 %v2477
    %v2479 = vlaneseq
    %v2480 = vshrl.u32 %v2479, 7
    %v2481 = vsub.s32 %v2478, %v2480
    %v2482 = vrot.slane %v2468, %v2481
    %v2483 = vcombine.high %v2475, %v2475
    %v2484 = vcombine.high %v2482, %v2482
    %2489 = vmatprep.subr.bf16.mxu0 %v2404
    %2490 = vmatpush1.bf16.msra.mxu0 %v2403
    %2491 = vmatprep.subr.bf16.mxu0 %v2408
    %2492 = vmatpush1.bf16.msra.mxu0 %v2407
    %2493 = vmatprep.subr.bf16.mxu0 %v2412
    %2494 = vmatpush1.bf16.msra.mxu0 %v2411
    %2495 = vmatprep.subr.bf16.mxu0 %v2416
    %2496 = vmatpush1.bf16.msra.mxu0 %v2415
    %2497 = vmatprep.subr.bf16.mxu0 %v2420
    %2498 = vmatpush1.bf16.msra.mxu0 %v2419
    %2499 = vmatprep.subr.bf16.mxu0 %v2424
    %2500 = vmatpush1.bf16.msra.mxu0 %v2423
    %2501 = vmatprep.subr.bf16.mxu0 %v2428
    %2502 = vmatpush1.bf16.msra.mxu0 %v2427
    %2503 = vmatprep.subr.bf16.mxu0 %v2432
    %2504 = vmatpush1.bf16.msra.mxu0 %v2431
    %2505 = vmatprep.subr.bf16.mxu0 0
    %2506 = vmatpush1.bf16.msra.mxu0 0
    %2507 = vmatprep.subr.bf16.mxu0 0
    %2508 = vmatpush1.bf16.msra.mxu0 0
    %2509 = vmatprep.subr.bf16.mxu0 0
    %2510 = vmatpush1.bf16.msra.mxu0 0
    %2511 = vmatprep.subr.bf16.mxu0 0
    %2512 = vmatpush1.bf16.msra.mxu0 0
    %2513 = vmatprep.subr.bf16.mxu0 0
    %2514 = vmatpush1.bf16.msra.mxu0 0
    %2515 = vmatprep.subr.bf16.mxu0 0
    %2516 = vmatpush1.bf16.msra.mxu0 0
    %2517 = vmatprep.subr.bf16.mxu0 0
    %2518 = vmatpush1.bf16.msra.mxu0 0
    %2519 = vmatprep.subr.bf16.mxu0 0
    %2520 = vmatpush1.bf16.msra.mxu0 0
    %2521 = vmatprep.mubr.bf16.mxu0 0
    %2522 = vmatmul.mubr.bf16.gmra.mrb[0].mxu0 %v2269
    %v2523 = vpop.f32.mrb[0].mxu0
    %v2524 = vadd.f32 %v2475, %v2523
    %v2525 = vpop.f32.mrb[0].mxu0
    %v2526 = vadd.f32 %v2483, %v2525
    %v2527 = vpop.f32.mrb[0].mxu0
    %v2528 = vpop.f32.mrb[0].mxu0
    %2529 = vdwg.mxu0
    %2530 = vmatprep.subr.bf16.mxu0 %v2406
    %2531 = vmatpush1.bf16.msra.mxu0 %v2405
    %2532 = vmatprep.subr.bf16.mxu0 %v2410
    %2533 = vmatpush1.bf16.msra.mxu0 %v2409
    %2534 = vmatprep.subr.bf16.mxu0 %v2414
    %2535 = vmatpush1.bf16.msra.mxu0 %v2413
    %2536 = vmatprep.subr.bf16.mxu0 %v2418
    %2537 = vmatpush1.bf16.msra.mxu0 %v2417
    %2538 = vmatprep.subr.bf16.mxu0 %v2422
    %2539 = vmatpush1.bf16.msra.mxu0 %v2421
    %2540 = vmatprep.subr.bf16.mxu0 %v2426
    %2541 = vmatpush1.bf16.msra.mxu0 %v2425
    %2542 = vmatprep.subr.bf16.mxu0 %v2430
    %2543 = vmatpush1.bf16.msra.mxu0 %v2429
    %2544 = vmatprep.subr.bf16.mxu0 %v2434
    %2545 = vmatpush1.bf16.msra.mxu0 %v2433
    %2546 = vmatprep.subr.bf16.mxu0 0
    %2547 = vmatpush1.bf16.msra.mxu0 0
    %2548 = vmatprep.subr.bf16.mxu0 0
    %2549 = vmatpush1.bf16.msra.mxu0 0
    %2550 = vmatprep.subr.bf16.mxu0 0
    %2551 = vmatpush1.bf16.msra.mxu0 0
    %2552 = vmatprep.subr.bf16.mxu0 0
    %2553 = vmatpush1.bf16.msra.mxu0 0
    %2554 = vmatprep.subr.bf16.mxu0 0
    %2555 = vmatpush1.bf16.msra.mxu0 0
    %2556 = vmatprep.subr.bf16.mxu0 0
    %2557 = vmatpush1.bf16.msra.mxu0 0
    %2558 = vmatprep.subr.bf16.mxu0 0
    %2559 = vmatpush1.bf16.msra.mxu0 0
    %2560 = vmatprep.subr.bf16.mxu0 0
    %2561 = vmatpush1.bf16.msra.mxu0 0
    %2562 = vmatprep.mubr.bf16.mxu0 0
    %2563 = vmatmul.mubr.bf16.gmra.mrb[0].mxu0 %v2269
    %v2564 = vpop.f32.mrb[0].mxu0
    %v2565 = vadd.f32 %v2482, %v2564
    %v2566 = vpop.f32.mrb[0].mxu0
    %v2567 = vadd.f32 %v2484, %v2566
    %v2568 = vpop.f32.mrb[0].mxu0
    %v2569 = vpop.f32.mrb[0].mxu0
    %2570 = vdwg.mxu0
    %v2571 = vmul.f32 %v2524, 0.5
    %v2572 = vtanh.pop %v2571
    %v2573 = vmul.f32 %v2572, 0.5
    %v2574 = vadd.f32 %v2573, 0.5
    %v2575 = vmul.f32 %v2526, 0.5
    %v2576 = vtanh.pop %v2575
    %v2577 = vmul.f32 %v2576, 0.5
    %v2578 = vadd.f32 %v2577, 0.5
    %v2579 = vtanh.pop %v2565
    %v2580 = vmul.f32 %v2567, 0.5
    %v2581 = vtanh.pop %v2580
    %v2582 = vmul.f32 %v2581, 0.5
    %v2583 = vadd.f32 %v2582, 0.5
    %v2584 = vmul.f32 %v2578, %v2266
    %v2585 = vmul.f32 %v2574, %v2579
    %v2586 = vadd.f32 %v2584, %v2585
    %v2587 = vtanh.pop %v2586
    %v2588 = vmul.f32 %v2583, %v2587
    %v2589 = vpack.c.bf16 %v2588, %v2588
    %s2590 = scalar_lea.vmem %s2, 7
    %2591 = vst [vmem:[%s2590] sm:$0x1] %v2589
    %2592 = vst [vmem:[#allocation2] sm:$0x1] %v2589
    %2593 = vst [vmem:[#allocation3] sm:$0x3] %v2586
    // Predicated region
    $region18: #{language_model_forward.6} parent=1 // pred_check
      _
    $region19: #{language_model_forward.6} parent=1 // pred_check_branch
      %2595 = sbr.rel (0) target = $region21
    $region20: #{language_model_forward.6} parent=1 // pred_region
      _
    $region21: #{language_model_forward.6} parent=1 // pred_fallthru
      _
    // Predicated region
    $region22: #{language_model_forward.6} parent=1 // pred_check
      _
    $region23: #{language_model_forward.6} parent=1 // pred_check_branch
      %2597 = sbr.rel (0) target = $region25
    $region24: #{language_model_forward.6} parent=1 // pred_region
      _
    $region25: #{language_model_forward.6} parent=1 // pred_fallthru
      _
    %2598 = vsyncpa [#allocation5], 1

</llo_original>
